<compile_context>
chip_gen: v7x
topology: tpu7x:2x2x1
jax: 0.10.0
libtpu: 0.0.40
codegen_flags: <defaults>
</compile_context>

<pallas_src>
import functools

import jax
import jax.numpy as jnp
from jax.experimental import pallas as pl
from jax.experimental.pallas import tpu as pltpu


# ------------------------------ activation ---------------------------------

def _apply_act(y, act):
    if act == "relu":
        return jnp.maximum(y, 0.0)
    if act == "leaky_relu":
        return jnp.where(y > 0, y, 0.01 * y)
    if act == "tanh":
        return jnp.tanh(y)
    return y  # "none" (final fc3)


# --------------------------- fused Pallas kernel ----------------------------

def _maxpool2x2_interleaved(v, c, row_scr, out_scr):
    """2x2 stride-2 max pool of v in (H, W*C) channel-interleaved layout.

    Uses two tiny VMEM scratch buffers to reassemble the strided (even-index)
    selections with plain static stores (no reshapes / strided loads needed).
    """
    h, wc = v.shape
    w = wc // c
    # row direction: adjacent-row maxima, keep even rows.
    vr = jnp.maximum(v[0:h - 1, :], v[1:h, :])            # (h-1, w*c)
    for p in range(h // 2):
        row_scr[p:p + 1, :] = vr[2 * p:2 * p + 1, :]
    rows = row_scr[...]                                    # (h//2, w*c)
    # column (W-group) direction: adjacent-group maxima, keep even groups.
    vc = jnp.maximum(rows[:, 0:wc - c], rows[:, c:wc])     # (h//2, (w-1)*c)
    for q in range(w // 2):
        out_scr[:, q * c:(q + 1) * c] = vc[:, 2 * q * c:(2 * q + 1) * c]
    return out_scr[...]                                    # (h//2, (w//2)*c)


def _fused_forward_kernel(x_ref, wb1_ref, b1_ref, wb2_ref, b2_ref,
                          a1_ref, fb1_ref, w2_ref, fb2_ref, w3_ref, fb3_ref,
                          out_ref, p1r_scr, p1_scr, p2r_scr, p2_scr, *, act):
    batch = x_ref.shape[0]
    for b in range(batch):                     # B is tiny: unrolled at trace time
        xb = x_ref[b]                          # (32, 32*3) = (32, 96)

        # conv1 (5x5, 3->6) as 5 banded matmuls: (28,96) @ (96,168)
        acc1 = jnp.dot(xb[0:28, :], wb1_ref[0], preferred_element_type=jnp.float32)
        for i in range(1, 5):
            acc1 = acc1 + jnp.dot(xb[i:i + 28, :], wb1_ref[i],
                                  preferred_element_type=jnp.float32)
        acc1 = _apply_act(acc1 + b1_ref[...], act)          # (28, 28*6)
        p1 = _maxpool2x2_interleaved(acc1, 6, p1r_scr, p1_scr)   # (14, 14*6)

        # conv2 (5x5, 6->16) as 5 banded matmuls: (10,84) @ (84,160)
        acc2 = jnp.dot(p1[0:10, :], wb2_ref[0], preferred_element_type=jnp.float32)
        for i in range(1, 5):
            acc2 = acc2 + jnp.dot(p1[i:i + 10, :], wb2_ref[i],
                                  preferred_element_type=jnp.float32)
        acc2 = _apply_act(acc2 + b2_ref[...], act)          # (10, 10*16)
        p2 = _maxpool2x2_interleaved(acc2, 16, p2r_scr, p2_scr)  # (5, 5*16)

        # fc1: torch NCHW flatten is baked into a1 (5, 80, 120) -> sum over rows
        z = jnp.dot(p2[0:1, :], a1_ref[0], preferred_element_type=jnp.float32)
        for h in range(1, 5):
            z = z + jnp.dot(p2[h:h + 1, :], a1_ref[h],
                            preferred_element_type=jnp.float32)
        z = _apply_act(z + fb1_ref[...], act)               # (1, 120)
        z = _apply_act(jnp.dot(z, w2_ref[...],
                               preferred_element_type=jnp.float32) + fb2_ref[...],
                       act)                                 # (1, 84)
        z = jnp.dot(z, w3_ref[...],
                    preferred_element_type=jnp.float32) + fb3_ref[...]   # (1, 10)
        out_ref[b:b + 1, :] = z.astype(out_ref.dtype)


# ------------------------ weight prep (done once) ---------------------------

def _banded_conv_weights(w_oihw, out_w, in_w):
    """Build (KH, in_w*Cin, out_w*Cout) banded matrices for the interleaved conv.

    Wband[i, q*Cin + ci, p*Cout + co] = w[co, ci, i, q - p] if 0 <= q-p < KW else 0
    so that  conv_out[:, p*Cout+co] = sum_i  x[i:i+OH, :] @ Wband[i].
    """
    cout, cin, kh, kw = w_oihw.shape
    wt = jnp.transpose(w_oihw.astype(jnp.float32), (2, 3, 1, 0))      # (kh,kw,ci,co)
    bands = jnp.stack([jnp.eye(out_w, in_w, k=j, dtype=jnp.float32)
                       for j in range(kw)])                           # (kw, out_w, in_w)
    wb = jnp.einsum('jpq,ijcd->iqcpd', bands, wt)                     # (kh,in_w,ci,out_w,co)
    return wb.reshape(kh, in_w * cin, out_w * cout)


def prepare_params(params):
    """One-time rearrangement of the PyTorch-layout weights into kernel layout."""
    f32 = jnp.float32
    wb1 = _banded_conv_weights(params["conv1_w"], 28, 32)             # (5, 96, 168)
    b1t = jnp.tile(params["conv1_b"].astype(f32), 28).reshape(1, 28 * 6)
    wb2 = _banded_conv_weights(params["conv2_w"], 10, 14)             # (5, 84, 160)
    b2t = jnp.tile(params["conv2_b"].astype(f32), 10).reshape(1, 10 * 16)
    # fc1: rows of the (400,120) matrix regrouped per pooled row h, in the
    # kernel's (w*16 + c) column order; matches torch .view(-1, 16*5*5).
    a1 = jnp.transpose(params["fc1_w"].astype(f32).reshape(120, 16, 5, 5),
                       (2, 3, 1, 0)).reshape(5, 80, 120)
    fb1 = params["fc1_b"].astype(f32).reshape(1, 120)
    w2 = params["fc2_w"].astype(f32).T                                # (120, 84)
    fb2 = params["fc2_b"].astype(f32).reshape(1, 84)
    w3 = params["fc3_w"].astype(f32).T                                # (84, 10)
    fb3 = params["fc3_b"].astype(f32).reshape(1, 10)
    return (wb1, b1t, wb2, b2t, a1, fb1, w2, fb2, w3, fb3)


# ------------------------------ forward pass --------------------------------

@functools.partial(jax.jit, static_argnames=("act",))
def custom_cnn_forward(prepped, x_nchw, act="tanh"):
    wb1, b1t, wb2, b2t, a1, fb1, w2, fb2, w3, fb3 = prepped
    B = x_nchw.shape[0]
    # NCHW -> channel-interleaved 2-D layout (B, H, W*C)  (cheap, input-only glue)
    x_il = jnp.transpose(x_nchw.astype(jnp.float32), (0, 2, 3, 1)).reshape(B, 32, 96)

    kernel = functools.partial(_fused_forward_kernel, act=act)
    return pl.pallas_call(
        kernel,
        out_shape=jax.ShapeDtypeStruct((B, 10), jnp.float32),
        scratch_shapes=[
            pltpu.VMEM((14, 28 * 6), jnp.float32),   # pool1 row-maxima
            pltpu.VMEM((14, 14 * 6), jnp.float32),   # pool1 output
            pltpu.VMEM((5, 10 * 16), jnp.float32),   # pool2 row-maxima
            pltpu.VMEM((5, 5 * 16), jnp.float32),    # pool2 output
        ],
    )(x_il, wb1, b1t, wb2, b2t, a1, fb1, w2, fb2, w3, fb3)


# ----------------------- deterministic parameter init ----------------------

def init_params(key):
    """PyTorch-default-style uniform(-1/sqrt(fan_in), 1/sqrt(fan_in)) init."""
    def uni(k, shape, fan_in):
        bound = 1.0 / jnp.sqrt(jnp.float32(fan_in))
        return jax.random.uniform(k, shape, jnp.float32, -bound, bound)

    ks = jax.random.split(key, 10)
    return {
        "conv1_w": uni(ks[0], (6, 3, 5, 5), 3 * 5 * 5),
        "conv1_b": uni(ks[1], (6,), 3 * 5 * 5),
        "conv2_w": uni(ks[2], (16, 6, 5, 5), 6 * 5 * 5),
        "conv2_b": uni(ks[3], (16,), 6 * 5 * 5),
        "fc1_w":  uni(ks[4], (120, 400), 400),
        "fc1_b":  uni(ks[5], (120,), 400),
        "fc2_w":  uni(ks[6], (84, 120), 120),
        "fc2_b":  uni(ks[7], (84,), 120),
        "fc3_w":  uni(ks[8], (10, 84), 84),
        "fc3_b":  uni(ks[9], (10,), 84),
    }


# -------------------------- pure-JAX reference -----------------------------

def _reference_forward(params, x_nchw, act="tanh"):
    def a(v):
        return _apply_act(v, act)

    def conv(x, w, b):
        y = jax.lax.conv_general_dilated(
            x, jnp.transpose(w, (2, 3, 1, 0)), (1, 1), "VALID",
            dimension_numbers=("NHWC", "HWIO", "NHWC"))
        return y + b

    def pool(x):
        return jax.lax.reduce_window(x, -jnp.inf, jax.lax.max,
                                     (1, 2, 2, 1), (1, 2, 2, 1), "VALID")

    x = jnp.transpose(x_nchw, (0, 2, 3, 1))
    x = pool(a(conv(x, params["conv1_w"], params["conv1_b"])))
    x = pool(a(conv(x, params["conv2_w"], params["conv2_b"])))
    x = jnp.transpose(x, (0, 3, 1, 2)).reshape(-1, 400)
    x = a(x @ params["fc1_w"].T + params["fc1_b"])
    x = a(x @ params["fc2_w"].T + params["fc2_b"])
    return x @ params["fc3_w"].T + params["fc3_b"]


# ---------------------------------- main ------------------------------------

if __name__ == "__main__":
    key = jax.random.PRNGKey(0)
    k_params, k_x = jax.random.split(key)
    params = init_params(k_params)

    # CIFAR-10 geometry is required by the fixed 16*5*5 flatten: (B, 3, 32, 32).
    x = jax.random.normal(k_x, (2, 3, 32, 32), jnp.float32)

    prepped = prepare_params(params)                      # one-time weight prep
    out = custom_cnn_forward(prepped, x, act="tanh")      # CustomCNN() default path
    out = jax.block_until_ready(out)
    assert out.shape == (2, 10) and out.dtype == jnp.float32

    ref = jax.block_until_ready(_reference_forward(params, x, act="tanh"))
    assert jnp.allclose(out, ref, atol=1e-4, rtol=1e-4), "mismatch vs reference"

    print("KERNEL_OK")
</pallas_src>

<mosaic_0001>
module attributes {stable_mosaic.version = 11 : i64} {
  func.func @_fused_forward_kernel(%arg0: memref<2x32x96xf32, #tpu.memory_space<vmem>>, %arg1: memref<5x96x168xf32, #tpu.memory_space<vmem>>, %arg2: memref<1x168xf32, #tpu.memory_space<vmem>>, %arg3: memref<5x84x160xf32, #tpu.memory_space<vmem>>, %arg4: memref<1x160xf32, #tpu.memory_space<vmem>>, %arg5: memref<5x80x120xf32, #tpu.memory_space<vmem>>, %arg6: memref<1x120xf32, #tpu.memory_space<vmem>>, %arg7: memref<120x84xf32, #tpu.memory_space<vmem>>, %arg8: memref<1x84xf32, #tpu.memory_space<vmem>>, %arg9: memref<84x10xf32, #tpu.memory_space<vmem>>, %arg10: memref<1x10xf32, #tpu.memory_space<vmem>>, %arg11: memref<2x10xf32, #tpu.memory_space<vmem>>, %arg12: memref<14x168xf32, #tpu.memory_space<vmem>>, %arg13: memref<14x84xf32, #tpu.memory_space<vmem>>, %arg14: memref<5x160xf32, #tpu.memory_space<vmem>>, %arg15: memref<5x80xf32, #tpu.memory_space<vmem>>) attributes {dimension_semantics = [], scalar_prefetch = 0 : i64, scratch_operands = 4 : i64, tpu.core_type = #tpu.core_type<tc>} {
    %c0 = arith.constant 0 : index
    %c0_0 = arith.constant 0 : index
    %c0_1 = arith.constant 0 : index
    %0 = vector.load %arg0[%c0, %c0_0, %c0_1] : memref<2x32x96xf32, #tpu.memory_space<vmem>>, vector<1x32x96xf32>
    %1 = vector.shape_cast %0 : vector<1x32x96xf32> to vector<32x96xf32>
    %2 = vector.extract_strided_slice %1 {offsets = [0, 0], sizes = [28, 96], strides = [1, 1]} : vector<32x96xf32> to vector<28x96xf32>
    %c0_2 = arith.constant 0 : index
    %c0_3 = arith.constant 0 : index
    %c0_4 = arith.constant 0 : index
    %3 = vector.load %arg1[%c0_2, %c0_3, %c0_4] : memref<5x96x168xf32, #tpu.memory_space<vmem>>, vector<1x96x168xf32>
    %4 = vector.shape_cast %3 : vector<1x96x168xf32> to vector<96x168xf32>
    %cst = arith.constant dense<0.000000e+00> : vector<28x168xf32>
    %5 = tpu.matmul %2, %4, %cst {dimension_numbers = #tpu.dot_dimension_numbers<[1], [0], [0], [1], [0, 0, 1, 1], [], []>} : vector<28x96xf32>, vector<96x168xf32>, vector<28x168xf32> -> vector<28x168xf32>
    %6 = vector.extract_strided_slice %1 {offsets = [1, 0], sizes = [28, 96], strides = [1, 1]} : vector<32x96xf32> to vector<28x96xf32>
    %c1 = arith.constant 1 : index
    %c0_5 = arith.constant 0 : index
    %c0_6 = arith.constant 0 : index
    %7 = vector.load %arg1[%c1, %c0_5, %c0_6] : memref<5x96x168xf32, #tpu.memory_space<vmem>>, vector<1x96x168xf32>
    %8 = vector.shape_cast %7 : vector<1x96x168xf32> to vector<96x168xf32>
    %cst_7 = arith.constant dense<0.000000e+00> : vector<28x168xf32>
    %9 = tpu.matmul %6, %8, %cst_7 {dimension_numbers = #tpu.dot_dimension_numbers<[1], [0], [0], [1], [0, 0, 1, 1], [], []>} : vector<28x96xf32>, vector<96x168xf32>, vector<28x168xf32> -> vector<28x168xf32>
    %10 = arith.addf %5, %9 : vector<28x168xf32>
    %11 = vector.extract_strided_slice %1 {offsets = [2, 0], sizes = [28, 96], strides = [1, 1]} : vector<32x96xf32> to vector<28x96xf32>
    %c2 = arith.constant 2 : index
    %c0_8 = arith.constant 0 : index
    %c0_9 = arith.constant 0 : index
    %12 = vector.load %arg1[%c2, %c0_8, %c0_9] : memref<5x96x168xf32, #tpu.memory_space<vmem>>, vector<1x96x168xf32>
    %13 = vector.shape_cast %12 : vector<1x96x168xf32> to vector<96x168xf32>
    %cst_10 = arith.constant dense<0.000000e+00> : vector<28x168xf32>
    %14 = tpu.matmul %11, %13, %cst_10 {dimension_numbers = #tpu.dot_dimension_numbers<[1], [0], [0], [1], [0, 0, 1, 1], [], []>} : vector<28x96xf32>, vector<96x168xf32>, vector<28x168xf32> -> vector<28x168xf32>
    %15 = arith.addf %10, %14 : vector<28x168xf32>
    %16 = vector.extract_strided_slice %1 {offsets = [3, 0], sizes = [28, 96], strides = [1, 1]} : vector<32x96xf32> to vector<28x96xf32>
    %c3 = arith.constant 3 : index
    %c0_11 = arith.constant 0 : index
    %c0_12 = arith.constant 0 : index
    %17 = vector.load %arg1[%c3, %c0_11, %c0_12] : memref<5x96x168xf32, #tpu.memory_space<vmem>>, vector<1x96x168xf32>
    %18 = vector.shape_cast %17 : vector<1x96x168xf32> to vector<96x168xf32>
    %cst_13 = arith.constant dense<0.000000e+00> : vector<28x168xf32>
    %19 = tpu.matmul %16, %18, %cst_13 {dimension_numbers = #tpu.dot_dimension_numbers<[1], [0], [0], [1], [0, 0, 1, 1], [], []>} : vector<28x96xf32>, vector<96x168xf32>, vector<28x168xf32> -> vector<28x168xf32>
    %20 = arith.addf %15, %19 : vector<28x168xf32>
    %21 = vector.extract_strided_slice %1 {offsets = [4, 0], sizes = [28, 96], strides = [1, 1]} : vector<32x96xf32> to vector<28x96xf32>
    %c4 = arith.constant 4 : index
    %c0_14 = arith.constant 0 : index
    %c0_15 = arith.constant 0 : index
    %22 = vector.load %arg1[%c4, %c0_14, %c0_15] : memref<5x96x168xf32, #tpu.memory_space<vmem>>, vector<1x96x168xf32>
    %23 = vector.shape_cast %22 : vector<1x96x168xf32> to vector<96x168xf32>
    %cst_16 = arith.constant dense<0.000000e+00> : vector<28x168xf32>
    %24 = tpu.matmul %21, %23, %cst_16 {dimension_numbers = #tpu.dot_dimension_numbers<[1], [0], [0], [1], [0, 0, 1, 1], [], []>} : vector<28x96xf32>, vector<96x168xf32>, vector<28x168xf32> -> vector<28x168xf32>
    %25 = arith.addf %20, %24 : vector<28x168xf32>
    %c0_17 = arith.constant 0 : index
    %c0_18 = arith.constant 0 : index
    %26 = vector.load %arg2[%c0_17, %c0_18] : memref<1x168xf32, #tpu.memory_space<vmem>>, vector<1x168xf32>
    %27 = vector.broadcast %26 : vector<1x168xf32> to vector<28x168xf32>
    %28 = arith.addf %25, %27 : vector<28x168xf32>
    %29 = math.tanh %28 : vector<28x168xf32>
    %30 = vector.extract_strided_slice %29 {offsets = [0, 0], sizes = [27, 168], strides = [1, 1]} : vector<28x168xf32> to vector<27x168xf32>
    %31 = vector.extract_strided_slice %29 {offsets = [1, 0], sizes = [27, 168], strides = [1, 1]} : vector<28x168xf32> to vector<27x168xf32>
    %32 = arith.maximumf %30, %31 : vector<27x168xf32>
    %33 = vector.extract_strided_slice %32 {offsets = [0, 0], sizes = [1, 168], strides = [1, 1]} : vector<27x168xf32> to vector<1x168xf32>
    %c0_19 = arith.constant 0 : index
    %c0_20 = arith.constant 0 : index
    %34 = vector.load %arg12[%c0_19, %c0_20] : memref<14x168xf32, #tpu.memory_space<vmem>>, vector<1x168xf32>
    tpu.vector_store %arg12[%c0_19, %c0_20], %33 {strides = array<i32>} : memref<14x168xf32, #tpu.memory_space<vmem>>, vector<1x168xf32>,
    %35 = vector.extract_strided_slice %32 {offsets = [2, 0], sizes = [1, 168], strides = [1, 1]} : vector<27x168xf32> to vector<1x168xf32>
    %c1_21 = arith.constant 1 : index
    %c0_22 = arith.constant 0 : index
    %36 = vector.load %arg12[%c1_21, %c0_22] : memref<14x168xf32, #tpu.memory_space<vmem>>, vector<1x168xf32>
    tpu.vector_store %arg12[%c1_21, %c0_22], %35 {strides = array<i32>} : memref<14x168xf32, #tpu.memory_space<vmem>>, vector<1x168xf32>,
    %37 = vector.extract_strided_slice %32 {offsets = [4, 0], sizes = [1, 168], strides = [1, 1]} : vector<27x168xf32> to vector<1x168xf32>
    %c2_23 = arith.constant 2 : index
    %c0_24 = arith.constant 0 : index
    %38 = vector.load %arg12[%c2_23, %c0_24] : memref<14x168xf32, #tpu.memory_space<vmem>>, vector<1x168xf32>
    tpu.vector_store %arg12[%c2_23, %c0_24], %37 {strides = array<i32>} : memref<14x168xf32, #tpu.memory_space<vmem>>, vector<1x168xf32>,
    %39 = vector.extract_strided_slice %32 {offsets = [6, 0], sizes = [1, 168], strides = [1, 1]} : vector<27x168xf32> to vector<1x168xf32>
    %c3_25 = arith.constant 3 : index
    %c0_26 = arith.constant 0 : index
    %40 = vector.load %arg12[%c3_25, %c0_26] : memref<14x168xf32, #tpu.memory_space<vmem>>, vector<1x168xf32>
    tpu.vector_store %arg12[%c3_25, %c0_26], %39 {strides = array<i32>} : memref<14x168xf32, #tpu.memory_space<vmem>>, vector<1x168xf32>,
    %41 = vector.extract_strided_slice %32 {offsets = [8, 0], sizes = [1, 168], strides = [1, 1]} : vector<27x168xf32> to vector<1x168xf32>
    %c4_27 = arith.constant 4 : index
    %c0_28 = arith.constant 0 : index
    %42 = vector.load %arg12[%c4_27, %c0_28] : memref<14x168xf32, #tpu.memory_space<vmem>>, vector<1x168xf32>
    tpu.vector_store %arg12[%c4_27, %c0_28], %41 {strides = array<i32>} : memref<14x168xf32, #tpu.memory_space<vmem>>, vector<1x168xf32>,
    %43 = vector.extract_strided_slice %32 {offsets = [10, 0], sizes = [1, 168], strides = [1, 1]} : vector<27x168xf32> to vector<1x168xf32>
    %c5 = arith.constant 5 : index
    %c0_29 = arith.constant 0 : index
    %44 = vector.load %arg12[%c5, %c0_29] : memref<14x168xf32, #tpu.memory_space<vmem>>, vector<1x168xf32>
    tpu.vector_store %arg12[%c5, %c0_29], %43 {strides = array<i32>} : memref<14x168xf32, #tpu.memory_space<vmem>>, vector<1x168xf32>,
    %45 = vector.extract_strided_slice %32 {offsets = [12, 0], sizes = [1, 168], strides = [1, 1]} : vector<27x168xf32> to vector<1x168xf32>
    %c6 = arith.constant 6 : index
    %c0_30 = arith.constant 0 : index
    %46 = vector.load %arg12[%c6, %c0_30] : memref<14x168xf32, #tpu.memory_space<vmem>>, vector<1x168xf32>
    tpu.vector_store %arg12[%c6, %c0_30], %45 {strides = array<i32>} : memref<14x168xf32, #tpu.memory_space<vmem>>, vector<1x168xf32>,
    %47 = vector.extract_strided_slice %32 {offsets = [14, 0], sizes = [1, 168], strides = [1, 1]} : vector<27x168xf32> to vector<1x168xf32>
    %c7 = arith.constant 7 : index
    %c0_31 = arith.constant 0 : index
    %48 = vector.load %arg12[%c7, %c0_31] : memref<14x168xf32, #tpu.memory_space<vmem>>, vector<1x168xf32>
    tpu.vector_store %arg12[%c7, %c0_31], %47 {strides = array<i32>} : memref<14x168xf32, #tpu.memory_space<vmem>>, vector<1x168xf32>,
    %49 = vector.extract_strided_slice %32 {offsets = [16, 0], sizes = [1, 168], strides = [1, 1]} : vector<27x168xf32> to vector<1x168xf32>
    %c8 = arith.constant 8 : index
    %c0_32 = arith.constant 0 : index
    %50 = vector.load %arg12[%c8, %c0_32] : memref<14x168xf32, #tpu.memory_space<vmem>>, vector<1x168xf32>
    tpu.vector_store %arg12[%c8, %c0_32], %49 {strides = array<i32>} : memref<14x168xf32, #tpu.memory_space<vmem>>, vector<1x168xf32>,
    %51 = vector.extract_strided_slice %32 {offsets = [18, 0], sizes = [1, 168], strides = [1, 1]} : vector<27x168xf32> to vector<1x168xf32>
    %c9 = arith.constant 9 : index
    %c0_33 = arith.constant 0 : index
    %52 = vector.load %arg12[%c9, %c0_33] : memref<14x168xf32, #tpu.memory_space<vmem>>, vector<1x168xf32>
    tpu.vector_store %arg12[%c9, %c0_33], %51 {strides = array<i32>} : memref<14x168xf32, #tpu.memory_space<vmem>>, vector<1x168xf32>,
    %53 = vector.extract_strided_slice %32 {offsets = [20, 0], sizes = [1, 168], strides = [1, 1]} : vector<27x168xf32> to vector<1x168xf32>
    %c10 = arith.constant 10 : index
    %c0_34 = arith.constant 0 : index
    %54 = vector.load %arg12[%c10, %c0_34] : memref<14x168xf32, #tpu.memory_space<vmem>>, vector<1x168xf32>
    tpu.vector_store %arg12[%c10, %c0_34], %53 {strides = array<i32>} : memref<14x168xf32, #tpu.memory_space<vmem>>, vector<1x168xf32>,
    %55 = vector.extract_strided_slice %32 {offsets = [22, 0], sizes = [1, 168], strides = [1, 1]} : vector<27x168xf32> to vector<1x168xf32>
    %c11 = arith.constant 11 : index
    %c0_35 = arith.constant 0 : index
    %56 = vector.load %arg12[%c11, %c0_35] : memref<14x168xf32, #tpu.memory_space<vmem>>, vector<1x168xf32>
    tpu.vector_store %arg12[%c11, %c0_35], %55 {strides = array<i32>} : memref<14x168xf32, #tpu.memory_space<vmem>>, vector<1x168xf32>,
    %57 = vector.extract_strided_slice %32 {offsets = [24, 0], sizes = [1, 168], strides = [1, 1]} : vector<27x168xf32> to vector<1x168xf32>
    %c12 = arith.constant 12 : index
    %c0_36 = arith.constant 0 : index
    %58 = vector.load %arg12[%c12, %c0_36] : memref<14x168xf32, #tpu.memory_space<vmem>>, vector<1x168xf32>
    tpu.vector_store %arg12[%c12, %c0_36], %57 {strides = array<i32>} : memref<14x168xf32, #tpu.memory_space<vmem>>, vector<1x168xf32>,
    %59 = vector.extract_strided_slice %32 {offsets = [26, 0], sizes = [1, 168], strides = [1, 1]} : vector<27x168xf32> to vector<1x168xf32>
    %c13 = arith.constant 13 : index
    %c0_37 = arith.constant 0 : index
    %60 = vector.load %arg12[%c13, %c0_37] : memref<14x168xf32, #tpu.memory_space<vmem>>, vector<1x168xf32>
    tpu.vector_store %arg12[%c13, %c0_37], %59 {strides = array<i32>} : memref<14x168xf32, #tpu.memory_space<vmem>>, vector<1x168xf32>,
    %c0_38 = arith.constant 0 : index
    %c0_39 = arith.constant 0 : index
    %61 = vector.load %arg12[%c0_38, %c0_39] : memref<14x168xf32, #tpu.memory_space<vmem>>, vector<14x168xf32>
    %62 = vector.extract_strided_slice %61 {offsets = [0, 0], sizes = [14, 162], strides = [1, 1]} : vector<14x168xf32> to vector<14x162xf32>
    %63 = vector.extract_strided_slice %61 {offsets = [0, 6], sizes = [14, 162], strides = [1, 1]} : vector<14x168xf32> to vector<14x162xf32>
    %64 = arith.maximumf %62, %63 : vector<14x162xf32>
    %65 = vector.extract_strided_slice %64 {offsets = [0, 0], sizes = [14, 6], strides = [1, 1]} : vector<14x162xf32> to vector<14x6xf32>
    %c0_40 = arith.constant 0 : index
    %c0_41 = arith.constant 0 : index
    %66 = vector.load %arg13[%c0_40, %c0_41] : memref<14x84xf32, #tpu.memory_space<vmem>>, vector<14x6xf32>
    tpu.vector_store %arg13[%c0_40, %c0_41], %65 {strides = array<i32>} : memref<14x84xf32, #tpu.memory_space<vmem>>, vector<14x6xf32>,
    %67 = vector.extract_strided_slice %64 {offsets = [0, 12], sizes = [14, 6], strides = [1, 1]} : vector<14x162xf32> to vector<14x6xf32>
    %c0_42 = arith.constant 0 : index
    %c6_43 = arith.constant 6 : index
    %68 = vector.load %arg13[%c0_42, %c6_43] : memref<14x84xf32, #tpu.memory_space<vmem>>, vector<14x6xf32>
    tpu.vector_store %arg13[%c0_42, %c6_43], %67 {strides = array<i32>} : memref<14x84xf32, #tpu.memory_space<vmem>>, vector<14x6xf32>,
    %69 = vector.extract_strided_slice %64 {offsets = [0, 24], sizes = [14, 6], strides = [1, 1]} : vector<14x162xf32> to vector<14x6xf32>
    %c0_44 = arith.constant 0 : index
    %c12_45 = arith.constant 12 : index
    %70 = vector.load %arg13[%c0_44, %c12_45] : memref<14x84xf32, #tpu.memory_space<vmem>>, vector<14x6xf32>
    tpu.vector_store %arg13[%c0_44, %c12_45], %69 {strides = array<i32>} : memref<14x84xf32, #tpu.memory_space<vmem>>, vector<14x6xf32>,
    %71 = vector.extract_strided_slice %64 {offsets = [0, 36], sizes = [14, 6], strides = [1, 1]} : vector<14x162xf32> to vector<14x6xf32>
    %c0_46 = arith.constant 0 : index
    %c18 = arith.constant 18 : index
    %72 = vector.load %arg13[%c0_46, %c18] : memref<14x84xf32, #tpu.memory_space<vmem>>, vector<14x6xf32>
    tpu.vector_store %arg13[%c0_46, %c18], %71 {strides = array<i32>} : memref<14x84xf32, #tpu.memory_space<vmem>>, vector<14x6xf32>,
    %73 = vector.extract_strided_slice %64 {offsets = [0, 48], sizes = [14, 6], strides = [1, 1]} : vector<14x162xf32> to vector<14x6xf32>
    %c0_47 = arith.constant 0 : index
    %c24 = arith.constant 24 : index
    %74 = vector.load %arg13[%c0_47, %c24] : memref<14x84xf32, #tpu.memory_space<vmem>>, vector<14x6xf32>
    tpu.vector_store %arg13[%c0_47, %c24], %73 {strides = array<i32>} : memref<14x84xf32, #tpu.memory_space<vmem>>, vector<14x6xf32>,
    %75 = vector.extract_strided_slice %64 {offsets = [0, 60], sizes = [14, 6], strides = [1, 1]} : vector<14x162xf32> to vector<14x6xf32>
    %c0_48 = arith.constant 0 : index
    %c30 = arith.constant 30 : index
    %76 = vector.load %arg13[%c0_48, %c30] : memref<14x84xf32, #tpu.memory_space<vmem>>, vector<14x6xf32>
    tpu.vector_store %arg13[%c0_48, %c30], %75 {strides = array<i32>} : memref<14x84xf32, #tpu.memory_space<vmem>>, vector<14x6xf32>,
    %77 = vector.extract_strided_slice %64 {offsets = [0, 72], sizes = [14, 6], strides = [1, 1]} : vector<14x162xf32> to vector<14x6xf32>
    %c0_49 = arith.constant 0 : index
    %c36 = arith.constant 36 : index
    %78 = vector.load %arg13[%c0_49, %c36] : memref<14x84xf32, #tpu.memory_space<vmem>>, vector<14x6xf32>
    tpu.vector_store %arg13[%c0_49, %c36], %77 {strides = array<i32>} : memref<14x84xf32, #tpu.memory_space<vmem>>, vector<14x6xf32>,
    %79 = vector.extract_strided_slice %64 {offsets = [0, 84], sizes = [14, 6], strides = [1, 1]} : vector<14x162xf32> to vector<14x6xf32>
    %c0_50 = arith.constant 0 : index
    %c42 = arith.constant 42 : index
    %80 = vector.load %arg13[%c0_50, %c42] : memref<14x84xf32, #tpu.memory_space<vmem>>, vector<14x6xf32>
    tpu.vector_store %arg13[%c0_50, %c42], %79 {strides = array<i32>} : memref<14x84xf32, #tpu.memory_space<vmem>>, vector<14x6xf32>,
    %81 = vector.extract_strided_slice %64 {offsets = [0, 96], sizes = [14, 6], strides = [1, 1]} : vector<14x162xf32> to vector<14x6xf32>
    %c0_51 = arith.constant 0 : index
    %c48 = arith.constant 48 : index
    %82 = vector.load %arg13[%c0_51, %c48] : memref<14x84xf32, #tpu.memory_space<vmem>>, vector<14x6xf32>
    tpu.vector_store %arg13[%c0_51, %c48], %81 {strides = array<i32>} : memref<14x84xf32, #tpu.memory_space<vmem>>, vector<14x6xf32>,
    %83 = vector.extract_strided_slice %64 {offsets = [0, 108], sizes = [14, 6], strides = [1, 1]} : vector<14x162xf32> to vector<14x6xf32>
    %c0_52 = arith.constant 0 : index
    %c54 = arith.constant 54 : index
    %84 = vector.load %arg13[%c0_52, %c54] : memref<14x84xf32, #tpu.memory_space<vmem>>, vector<14x6xf32>
    tpu.vector_store %arg13[%c0_52, %c54], %83 {strides = array<i32>} : memref<14x84xf32, #tpu.memory_space<vmem>>, vector<14x6xf32>,
    %85 = vector.extract_strided_slice %64 {offsets = [0, 120], sizes = [14, 6], strides = [1, 1]} : vector<14x162xf32> to vector<14x6xf32>
    %c0_53 = arith.constant 0 : index
    %c60 = arith.constant 60 : index
    %86 = vector.load %arg13[%c0_53, %c60] : memref<14x84xf32, #tpu.memory_space<vmem>>, vector<14x6xf32>
    tpu.vector_store %arg13[%c0_53, %c60], %85 {strides = array<i32>} : memref<14x84xf32, #tpu.memory_space<vmem>>, vector<14x6xf32>,
    %87 = vector.extract_strided_slice %64 {offsets = [0, 132], sizes = [14, 6], strides = [1, 1]} : vector<14x162xf32> to vector<14x6xf32>
    %c0_54 = arith.constant 0 : index
    %c66 = arith.constant 66 : index
    %88 = vector.load %arg13[%c0_54, %c66] : memref<14x84xf32, #tpu.memory_space<vmem>>, vector<14x6xf32>
    tpu.vector_store %arg13[%c0_54, %c66], %87 {strides = array<i32>} : memref<14x84xf32, #tpu.memory_space<vmem>>, vector<14x6xf32>,
    %89 = vector.extract_strided_slice %64 {offsets = [0, 144], sizes = [14, 6], strides = [1, 1]} : vector<14x162xf32> to vector<14x6xf32>
    %c0_55 = arith.constant 0 : index
    %c72 = arith.constant 72 : index
    %90 = vector.load %arg13[%c0_55, %c72] : memref<14x84xf32, #tpu.memory_space<vmem>>, vector<14x6xf32>
    tpu.vector_store %arg13[%c0_55, %c72], %89 {strides = array<i32>} : memref<14x84xf32, #tpu.memory_space<vmem>>, vector<14x6xf32>,
    %91 = vector.extract_strided_slice %64 {offsets = [0, 156], sizes = [14, 6], strides = [1, 1]} : vector<14x162xf32> to vector<14x6xf32>
    %c0_56 = arith.constant 0 : index
    %c78 = arith.constant 78 : index
    %92 = vector.load %arg13[%c0_56, %c78] : memref<14x84xf32, #tpu.memory_space<vmem>>, vector<14x6xf32>
    tpu.vector_store %arg13[%c0_56, %c78], %91 {strides = array<i32>} : memref<14x84xf32, #tpu.memory_space<vmem>>, vector<14x6xf32>,
    %c0_57 = arith.constant 0 : index
    %c0_58 = arith.constant 0 : index
    %93 = vector.load %arg13[%c0_57, %c0_58] : memref<14x84xf32, #tpu.memory_space<vmem>>, vector<14x84xf32>
    %94 = vector.extract_strided_slice %93 {offsets = [0, 0], sizes = [10, 84], strides = [1, 1]} : vector<14x84xf32> to vector<10x84xf32>
    %c0_59 = arith.constant 0 : index
    %c0_60 = arith.constant 0 : index
    %c0_61 = arith.constant 0 : index
    %95 = vector.load %arg3[%c0_59, %c0_60, %c0_61] : memref<5x84x160xf32, #tpu.memory_space<vmem>>, vector<1x84x160xf32>
    %96 = vector.shape_cast %95 : vector<1x84x160xf32> to vector<84x160xf32>
    %cst_62 = arith.constant dense<0.000000e+00> : vector<10x160xf32>
    %97 = tpu.matmul %94, %96, %cst_62 {dimension_numbers = #tpu.dot_dimension_numbers<[1], [0], [0], [1], [0, 0, 1, 1], [], []>} : vector<10x84xf32>, vector<84x160xf32>, vector<10x160xf32> -> vector<10x160xf32>
    %98 = vector.extract_strided_slice %93 {offsets = [1, 0], sizes = [10, 84], strides = [1, 1]} : vector<14x84xf32> to vector<10x84xf32>
    %c1_63 = arith.constant 1 : index
    %c0_64 = arith.constant 0 : index
    %c0_65 = arith.constant 0 : index
    %99 = vector.load %arg3[%c1_63, %c0_64, %c0_65] : memref<5x84x160xf32, #tpu.memory_space<vmem>>, vector<1x84x160xf32>
    %100 = vector.shape_cast %99 : vector<1x84x160xf32> to vector<84x160xf32>
    %cst_66 = arith.constant dense<0.000000e+00> : vector<10x160xf32>
    %101 = tpu.matmul %98, %100, %cst_66 {dimension_numbers = #tpu.dot_dimension_numbers<[1], [0], [0], [1], [0, 0, 1, 1], [], []>} : vector<10x84xf32>, vector<84x160xf32>, vector<10x160xf32> -> vector<10x160xf32>
    %102 = arith.addf %97, %101 : vector<10x160xf32>
    %103 = vector.extract_strided_slice %93 {offsets = [2, 0], sizes = [10, 84], strides = [1, 1]} : vector<14x84xf32> to vector<10x84xf32>
    %c2_67 = arith.constant 2 : index
    %c0_68 = arith.constant 0 : index
    %c0_69 = arith.constant 0 : index
    %104 = vector.load %arg3[%c2_67, %c0_68, %c0_69] : memref<5x84x160xf32, #tpu.memory_space<vmem>>, vector<1x84x160xf32>
    %105 = vector.shape_cast %104 : vector<1x84x160xf32> to vector<84x160xf32>
    %cst_70 = arith.constant dense<0.000000e+00> : vector<10x160xf32>
    %106 = tpu.matmul %103, %105, %cst_70 {dimension_numbers = #tpu.dot_dimension_numbers<[1], [0], [0], [1], [0, 0, 1, 1], [], []>} : vector<10x84xf32>, vector<84x160xf32>, vector<10x160xf32> -> vector<10x160xf32>
    %107 = arith.addf %102, %106 : vector<10x160xf32>
    %108 = vector.extract_strided_slice %93 {offsets = [3, 0], sizes = [10, 84], strides = [1, 1]} : vector<14x84xf32> to vector<10x84xf32>
    %c3_71 = arith.constant 3 : index
    %c0_72 = arith.constant 0 : index
    %c0_73 = arith.constant 0 : index
    %109 = vector.load %arg3[%c3_71, %c0_72, %c0_73] : memref<5x84x160xf32, #tpu.memory_space<vmem>>, vector<1x84x160xf32>
    %110 = vector.shape_cast %109 : vector<1x84x160xf32> to vector<84x160xf32>
    %cst_74 = arith.constant dense<0.000000e+00> : vector<10x160xf32>
    %111 = tpu.matmul %108, %110, %cst_74 {dimension_numbers = #tpu.dot_dimension_numbers<[1], [0], [0], [1], [0, 0, 1, 1], [], []>} : vector<10x84xf32>, vector<84x160xf32>, vector<10x160xf32> -> vector<10x160xf32>
    %112 = arith.addf %107, %111 : vector<10x160xf32>
    %113 = vector.extract_strided_slice %93 {offsets = [4, 0], sizes = [10, 84], strides = [1, 1]} : vector<14x84xf32> to vector<10x84xf32>
    %c4_75 = arith.constant 4 : index
    %c0_76 = arith.constant 0 : index
    %c0_77 = arith.constant 0 : index
    %114 = vector.load %arg3[%c4_75, %c0_76, %c0_77] : memref<5x84x160xf32, #tpu.memory_space<vmem>>, vector<1x84x160xf32>
    %115 = vector.shape_cast %114 : vector<1x84x160xf32> to vector<84x160xf32>
    %cst_78 = arith.constant dense<0.000000e+00> : vector<10x160xf32>
    %116 = tpu.matmul %113, %115, %cst_78 {dimension_numbers = #tpu.dot_dimension_numbers<[1], [0], [0], [1], [0, 0, 1, 1], [], []>} : vector<10x84xf32>, vector<84x160xf32>, vector<10x160xf32> -> vector<10x160xf32>
    %117 = arith.addf %112, %116 : vector<10x160xf32>
    %c0_79 = arith.constant 0 : index
    %c0_80 = arith.constant 0 : index
    %118 = vector.load %arg4[%c0_79, %c0_80] : memref<1x160xf32, #tpu.memory_space<vmem>>, vector<1x160xf32>
    %119 = vector.broadcast %118 : vector<1x160xf32> to vector<10x160xf32>
    %120 = arith.addf %117, %119 : vector<10x160xf32>
    %121 = math.tanh %120 : vector<10x160xf32>
    %122 = vector.extract_strided_slice %121 {offsets = [0, 0], sizes = [9, 160], strides = [1, 1]} : vector<10x160xf32> to vector<9x160xf32>
    %123 = vector.extract_strided_slice %121 {offsets = [1, 0], sizes = [9, 160], strides = [1, 1]} : vector<10x160xf32> to vector<9x160xf32>
    %124 = arith.maximumf %122, %123 : vector<9x160xf32>
    %125 = vector.extract_strided_slice %124 {offsets = [0, 0], sizes = [1, 160], strides = [1, 1]} : vector<9x160xf32> to vector<1x160xf32>
    %c0_81 = arith.constant 0 : index
    %c0_82 = arith.constant 0 : index
    %126 = vector.load %arg14[%c0_81, %c0_82] : memref<5x160xf32, #tpu.memory_space<vmem>>, vector<1x160xf32>
    tpu.vector_store %arg14[%c0_81, %c0_82], %125 {strides = array<i32>} : memref<5x160xf32, #tpu.memory_space<vmem>>, vector<1x160xf32>,
    %127 = vector.extract_strided_slice %124 {offsets = [2, 0], sizes = [1, 160], strides = [1, 1]} : vector<9x160xf32> to vector<1x160xf32>
    %c1_83 = arith.constant 1 : index
    %c0_84 = arith.constant 0 : index
    %128 = vector.load %arg14[%c1_83, %c0_84] : memref<5x160xf32, #tpu.memory_space<vmem>>, vector<1x160xf32>
    tpu.vector_store %arg14[%c1_83, %c0_84], %127 {strides = array<i32>} : memref<5x160xf32, #tpu.memory_space<vmem>>, vector<1x160xf32>,
    %129 = vector.extract_strided_slice %124 {offsets = [4, 0], sizes = [1, 160], strides = [1, 1]} : vector<9x160xf32> to vector<1x160xf32>
    %c2_85 = arith.constant 2 : index
    %c0_86 = arith.constant 0 : index
    %130 = vector.load %arg14[%c2_85, %c0_86] : memref<5x160xf32, #tpu.memory_space<vmem>>, vector<1x160xf32>
    tpu.vector_store %arg14[%c2_85, %c0_86], %129 {strides = array<i32>} : memref<5x160xf32, #tpu.memory_space<vmem>>, vector<1x160xf32>,
    %131 = vector.extract_strided_slice %124 {offsets = [6, 0], sizes = [1, 160], strides = [1, 1]} : vector<9x160xf32> to vector<1x160xf32>
    %c3_87 = arith.constant 3 : index
    %c0_88 = arith.constant 0 : index
    %132 = vector.load %arg14[%c3_87, %c0_88] : memref<5x160xf32, #tpu.memory_space<vmem>>, vector<1x160xf32>
    tpu.vector_store %arg14[%c3_87, %c0_88], %131 {strides = array<i32>} : memref<5x160xf32, #tpu.memory_space<vmem>>, vector<1x160xf32>,
    %133 = vector.extract_strided_slice %124 {offsets = [8, 0], sizes = [1, 160], strides = [1, 1]} : vector<9x160xf32> to vector<1x160xf32>
    %c4_89 = arith.constant 4 : index
    %c0_90 = arith.constant 0 : index
    %134 = vector.load %arg14[%c4_89, %c0_90] : memref<5x160xf32, #tpu.memory_space<vmem>>, vector<1x160xf32>
    tpu.vector_store %arg14[%c4_89, %c0_90], %133 {strides = array<i32>} : memref<5x160xf32, #tpu.memory_space<vmem>>, vector<1x160xf32>,
    %c0_91 = arith.constant 0 : index
    %c0_92 = arith.constant 0 : index
    %135 = vector.load %arg14[%c0_91, %c0_92] : memref<5x160xf32, #tpu.memory_space<vmem>>, vector<5x160xf32>
    %136 = vector.extract_strided_slice %135 {offsets = [0, 0], sizes = [5, 144], strides = [1, 1]} : vector<5x160xf32> to vector<5x144xf32>
    %137 = vector.extract_strided_slice %135 {offsets = [0, 16], sizes = [5, 144], strides = [1, 1]} : vector<5x160xf32> to vector<5x144xf32>
    %138 = arith.maximumf %136, %137 : vector<5x144xf32>
    %139 = vector.extract_strided_slice %138 {offsets = [0, 0], sizes = [5, 16], strides = [1, 1]} : vector<5x144xf32> to vector<5x16xf32>
    %c0_93 = arith.constant 0 : index
    %c0_94 = arith.constant 0 : index
    %140 = vector.load %arg15[%c0_93, %c0_94] : memref<5x80xf32, #tpu.memory_space<vmem>>, vector<5x16xf32>
    tpu.vector_store %arg15[%c0_93, %c0_94], %139 {strides = array<i32>} : memref<5x80xf32, #tpu.memory_space<vmem>>, vector<5x16xf32>,
    %141 = vector.extract_strided_slice %138 {offsets = [0, 32], sizes = [5, 16], strides = [1, 1]} : vector<5x144xf32> to vector<5x16xf32>
    %c0_95 = arith.constant 0 : index
    %c16 = arith.constant 16 : index
    %142 = vector.load %arg15[%c0_95, %c16] : memref<5x80xf32, #tpu.memory_space<vmem>>, vector<5x16xf32>
    tpu.vector_store %arg15[%c0_95, %c16], %141 {strides = array<i32>} : memref<5x80xf32, #tpu.memory_space<vmem>>, vector<5x16xf32>,
    %143 = vector.extract_strided_slice %138 {offsets = [0, 64], sizes = [5, 16], strides = [1, 1]} : vector<5x144xf32> to vector<5x16xf32>
    %c0_96 = arith.constant 0 : index
    %c32 = arith.constant 32 : index
    %144 = vector.load %arg15[%c0_96, %c32] : memref<5x80xf32, #tpu.memory_space<vmem>>, vector<5x16xf32>
    tpu.vector_store %arg15[%c0_96, %c32], %143 {strides = array<i32>} : memref<5x80xf32, #tpu.memory_space<vmem>>, vector<5x16xf32>,
    %145 = vector.extract_strided_slice %138 {offsets = [0, 96], sizes = [5, 16], strides = [1, 1]} : vector<5x144xf32> to vector<5x16xf32>
    %c0_97 = arith.constant 0 : index
    %c48_98 = arith.constant 48 : index
    %146 = vector.load %arg15[%c0_97, %c48_98] : memref<5x80xf32, #tpu.memory_space<vmem>>, vector<5x16xf32>
    tpu.vector_store %arg15[%c0_97, %c48_98], %145 {strides = array<i32>} : memref<5x80xf32, #tpu.memory_space<vmem>>, vector<5x16xf32>,
    %147 = vector.extract_strided_slice %138 {offsets = [0, 128], sizes = [5, 16], strides = [1, 1]} : vector<5x144xf32> to vector<5x16xf32>
    %c0_99 = arith.constant 0 : index
    %c64 = arith.constant 64 : index
    %148 = vector.load %arg15[%c0_99, %c64] : memref<5x80xf32, #tpu.memory_space<vmem>>, vector<5x16xf32>
    tpu.vector_store %arg15[%c0_99, %c64], %147 {strides = array<i32>} : memref<5x80xf32, #tpu.memory_space<vmem>>, vector<5x16xf32>,
    %c0_100 = arith.constant 0 : index
    %c0_101 = arith.constant 0 : index
    %149 = vector.load %arg15[%c0_100, %c0_101] : memref<5x80xf32, #tpu.memory_space<vmem>>, vector<5x80xf32>
    %150 = vector.extract_strided_slice %149 {offsets = [0, 0], sizes = [1, 80], strides = [1, 1]} : vector<5x80xf32> to vector<1x80xf32>
    %c0_102 = arith.constant 0 : index
    %c0_103 = arith.constant 0 : index
    %c0_104 = arith.constant 0 : index
    %151 = vector.load %arg5[%c0_102, %c0_103, %c0_104] : memref<5x80x120xf32, #tpu.memory_space<vmem>>, vector<1x80x120xf32>
    %152 = vector.shape_cast %151 : vector<1x80x120xf32> to vector<80x120xf32>
    %cst_105 = arith.constant dense<0.000000e+00> : vector<1x120xf32>
    %153 = tpu.matmul %150, %152, %cst_105 {dimension_numbers = #tpu.dot_dimension_numbers<[1], [0], [0], [1], [0, 0, 1, 1], [], []>} : vector<1x80xf32>, vector<80x120xf32>, vector<1x120xf32> -> vector<1x120xf32>
    %154 = vector.extract_strided_slice %149 {offsets = [1, 0], sizes = [1, 80], strides = [1, 1]} : vector<5x80xf32> to vector<1x80xf32>
    %c1_106 = arith.constant 1 : index
    %c0_107 = arith.constant 0 : index
    %c0_108 = arith.constant 0 : index
    %155 = vector.load %arg5[%c1_106, %c0_107, %c0_108] : memref<5x80x120xf32, #tpu.memory_space<vmem>>, vector<1x80x120xf32>
    %156 = vector.shape_cast %155 : vector<1x80x120xf32> to vector<80x120xf32>
    %cst_109 = arith.constant dense<0.000000e+00> : vector<1x120xf32>
    %157 = tpu.matmul %154, %156, %cst_109 {dimension_numbers = #tpu.dot_dimension_numbers<[1], [0], [0], [1], [0, 0, 1, 1], [], []>} : vector<1x80xf32>, vector<80x120xf32>, vector<1x120xf32> -> vector<1x120xf32>
    %158 = arith.addf %153, %157 : vector<1x120xf32>
    %159 = vector.extract_strided_slice %149 {offsets = [2, 0], sizes = [1, 80], strides = [1, 1]} : vector<5x80xf32> to vector<1x80xf32>
    %c2_110 = arith.constant 2 : index
    %c0_111 = arith.constant 0 : index
    %c0_112 = arith.constant 0 : index
    %160 = vector.load %arg5[%c2_110, %c0_111, %c0_112] : memref<5x80x120xf32, #tpu.memory_space<vmem>>, vector<1x80x120xf32>
    %161 = vector.shape_cast %160 : vector<1x80x120xf32> to vector<80x120xf32>
    %cst_113 = arith.constant dense<0.000000e+00> : vector<1x120xf32>
    %162 = tpu.matmul %159, %161, %cst_113 {dimension_numbers = #tpu.dot_dimension_numbers<[1], [0], [0], [1], [0, 0, 1, 1], [], []>} : vector<1x80xf32>, vector<80x120xf32>, vector<1x120xf32> -> vector<1x120xf32>
    %163 = arith.addf %158, %162 : vector<1x120xf32>
    %164 = vector.extract_strided_slice %149 {offsets = [3, 0], sizes = [1, 80], strides = [1, 1]} : vector<5x80xf32> to vector<1x80xf32>
    %c3_114 = arith.constant 3 : index
    %c0_115 = arith.constant 0 : index
    %c0_116 = arith.constant 0 : index
    %165 = vector.load %arg5[%c3_114, %c0_115, %c0_116] : memref<5x80x120xf32, #tpu.memory_space<vmem>>, vector<1x80x120xf32>
    %166 = vector.shape_cast %165 : vector<1x80x120xf32> to vector<80x120xf32>
    %cst_117 = arith.constant dense<0.000000e+00> : vector<1x120xf32>
    %167 = tpu.matmul %164, %166, %cst_117 {dimension_numbers = #tpu.dot_dimension_numbers<[1], [0], [0], [1], [0, 0, 1, 1], [], []>} : vector<1x80xf32>, vector<80x120xf32>, vector<1x120xf32> -> vector<1x120xf32>
    %168 = arith.addf %163, %167 : vector<1x120xf32>
    %169 = vector.extract_strided_slice %149 {offsets = [4, 0], sizes = [1, 80], strides = [1, 1]} : vector<5x80xf32> to vector<1x80xf32>
    %c4_118 = arith.constant 4 : index
    %c0_119 = arith.constant 0 : index
    %c0_120 = arith.constant 0 : index
    %170 = vector.load %arg5[%c4_118, %c0_119, %c0_120] : memref<5x80x120xf32, #tpu.memory_space<vmem>>, vector<1x80x120xf32>
    %171 = vector.shape_cast %170 : vector<1x80x120xf32> to vector<80x120xf32>
    %cst_121 = arith.constant dense<0.000000e+00> : vector<1x120xf32>
    %172 = tpu.matmul %169, %171, %cst_121 {dimension_numbers = #tpu.dot_dimension_numbers<[1], [0], [0], [1], [0, 0, 1, 1], [], []>} : vector<1x80xf32>, vector<80x120xf32>, vector<1x120xf32> -> vector<1x120xf32>
    %173 = arith.addf %168, %172 : vector<1x120xf32>
    %c0_122 = arith.constant 0 : index
    %c0_123 = arith.constant 0 : index
    %174 = vector.load %arg6[%c0_122, %c0_123] : memref<1x120xf32, #tpu.memory_space<vmem>>, vector<1x120xf32>
    %175 = arith.addf %173, %174 : vector<1x120xf32>
    %176 = math.tanh %175 : vector<1x120xf32>
    %c0_124 = arith.constant 0 : index
    %c0_125 = arith.constant 0 : index
    %177 = vector.load %arg7[%c0_124, %c0_125] : memref<120x84xf32, #tpu.memory_space<vmem>>, vector<120x84xf32>
    %cst_126 = arith.constant dense<0.000000e+00> : vector<1x84xf32>
    %178 = tpu.matmul %176, %177, %cst_126 {dimension_numbers = #tpu.dot_dimension_numbers<[1], [0], [0], [1], [0, 0, 1, 1], [], []>} : vector<1x120xf32>, vector<120x84xf32>, vector<1x84xf32> -> vector<1x84xf32>
    %c0_127 = arith.constant 0 : index
    %c0_128 = arith.constant 0 : index
    %179 = vector.load %arg8[%c0_127, %c0_128] : memref<1x84xf32, #tpu.memory_space<vmem>>, vector<1x84xf32>
    %180 = arith.addf %178, %179 : vector<1x84xf32>
    %181 = math.tanh %180 : vector<1x84xf32>
    %c0_129 = arith.constant 0 : index
    %c0_130 = arith.constant 0 : index
    %182 = vector.load %arg9[%c0_129, %c0_130] : memref<84x10xf32, #tpu.memory_space<vmem>>, vector<84x10xf32>
    %cst_131 = arith.constant dense<0.000000e+00> : vector<1x10xf32>
    %183 = tpu.matmul %181, %182, %cst_131 {dimension_numbers = #tpu.dot_dimension_numbers<[1], [0], [0], [1], [0, 0, 1, 1], [], []>} : vector<1x84xf32>, vector<84x10xf32>, vector<1x10xf32> -> vector<1x10xf32>
    %c0_132 = arith.constant 0 : index
    %c0_133 = arith.constant 0 : index
    %184 = vector.load %arg10[%c0_132, %c0_133] : memref<1x10xf32, #tpu.memory_space<vmem>>, vector<1x10xf32>
    %185 = arith.addf %183, %184 : vector<1x10xf32>
    %c0_134 = arith.constant 0 : index
    %c0_135 = arith.constant 0 : index
    %186 = vector.load %arg11[%c0_134, %c0_135] : memref<2x10xf32, #tpu.memory_space<vmem>>, vector<1x10xf32>
    tpu.vector_store %arg11[%c0_134, %c0_135], %185 {strides = array<i32>} : memref<2x10xf32, #tpu.memory_space<vmem>>, vector<1x10xf32>,
    %c1_136 = arith.constant 1 : index
    %c0_137 = arith.constant 0 : index
    %c0_138 = arith.constant 0 : index
    %187 = vector.load %arg0[%c1_136, %c0_137, %c0_138] : memref<2x32x96xf32, #tpu.memory_space<vmem>>, vector<1x32x96xf32>
    %188 = vector.shape_cast %187 : vector<1x32x96xf32> to vector<32x96xf32>
    %189 = vector.extract_strided_slice %188 {offsets = [0, 0], sizes = [28, 96], strides = [1, 1]} : vector<32x96xf32> to vector<28x96xf32>
    %c0_139 = arith.constant 0 : index
    %c0_140 = arith.constant 0 : index
    %c0_141 = arith.constant 0 : index
    %190 = vector.load %arg1[%c0_139, %c0_140, %c0_141] : memref<5x96x168xf32, #tpu.memory_space<vmem>>, vector<1x96x168xf32>
    %191 = vector.shape_cast %190 : vector<1x96x168xf32> to vector<96x168xf32>
    %cst_142 = arith.constant dense<0.000000e+00> : vector<28x168xf32>
    %192 = tpu.matmul %189, %191, %cst_142 {dimension_numbers = #tpu.dot_dimension_numbers<[1], [0], [0], [1], [0, 0, 1, 1], [], []>} : vector<28x96xf32>, vector<96x168xf32>, vector<28x168xf32> -> vector<28x168xf32>
    %193 = vector.extract_strided_slice %188 {offsets = [1, 0], sizes = [28, 96], strides = [1, 1]} : vector<32x96xf32> to vector<28x96xf32>
    %c1_143 = arith.constant 1 : index
    %c0_144 = arith.constant 0 : index
    %c0_145 = arith.constant 0 : index
    %194 = vector.load %arg1[%c1_143, %c0_144, %c0_145] : memref<5x96x168xf32, #tpu.memory_space<vmem>>, vector<1x96x168xf32>
    %195 = vector.shape_cast %194 : vector<1x96x168xf32> to vector<96x168xf32>
    %cst_146 = arith.constant dense<0.000000e+00> : vector<28x168xf32>
    %196 = tpu.matmul %193, %195, %cst_146 {dimension_numbers = #tpu.dot_dimension_numbers<[1], [0], [0], [1], [0, 0, 1, 1], [], []>} : vector<28x96xf32>, vector<96x168xf32>, vector<28x168xf32> -> vector<28x168xf32>
    %197 = arith.addf %192, %196 : vector<28x168xf32>
    %198 = vector.extract_strided_slice %188 {offsets = [2, 0], sizes = [28, 96], strides = [1, 1]} : vector<32x96xf32> to vector<28x96xf32>
    %c2_147 = arith.constant 2 : index
    %c0_148 = arith.constant 0 : index
    %c0_149 = arith.constant 0 : index
    %199 = vector.load %arg1[%c2_147, %c0_148, %c0_149] : memref<5x96x168xf32, #tpu.memory_space<vmem>>, vector<1x96x168xf32>
    %200 = vector.shape_cast %199 : vector<1x96x168xf32> to vector<96x168xf32>
    %cst_150 = arith.constant dense<0.000000e+00> : vector<28x168xf32>
    %201 = tpu.matmul %198, %200, %cst_150 {dimension_numbers = #tpu.dot_dimension_numbers<[1], [0], [0], [1], [0, 0, 1, 1], [], []>} : vector<28x96xf32>, vector<96x168xf32>, vector<28x168xf32> -> vector<28x168xf32>
    %202 = arith.addf %197, %201 : vector<28x168xf32>
    %203 = vector.extract_strided_slice %188 {offsets = [3, 0], sizes = [28, 96], strides = [1, 1]} : vector<32x96xf32> to vector<28x96xf32>
    %c3_151 = arith.constant 3 : index
    %c0_152 = arith.constant 0 : index
    %c0_153 = arith.constant 0 : index
    %204 = vector.load %arg1[%c3_151, %c0_152, %c0_153] : memref<5x96x168xf32, #tpu.memory_space<vmem>>, vector<1x96x168xf32>
    %205 = vector.shape_cast %204 : vector<1x96x168xf32> to vector<96x168xf32>
    %cst_154 = arith.constant dense<0.000000e+00> : vector<28x168xf32>
    %206 = tpu.matmul %203, %205, %cst_154 {dimension_numbers = #tpu.dot_dimension_numbers<[1], [0], [0], [1], [0, 0, 1, 1], [], []>} : vector<28x96xf32>, vector<96x168xf32>, vector<28x168xf32> -> vector<28x168xf32>
    %207 = arith.addf %202, %206 : vector<28x168xf32>
    %208 = vector.extract_strided_slice %188 {offsets = [4, 0], sizes = [28, 96], strides = [1, 1]} : vector<32x96xf32> to vector<28x96xf32>
    %c4_155 = arith.constant 4 : index
    %c0_156 = arith.constant 0 : index
    %c0_157 = arith.constant 0 : index
    %209 = vector.load %arg1[%c4_155, %c0_156, %c0_157] : memref<5x96x168xf32, #tpu.memory_space<vmem>>, vector<1x96x168xf32>
    %210 = vector.shape_cast %209 : vector<1x96x168xf32> to vector<96x168xf32>
    %cst_158 = arith.constant dense<0.000000e+00> : vector<28x168xf32>
    %211 = tpu.matmul %208, %210, %cst_158 {dimension_numbers = #tpu.dot_dimension_numbers<[1], [0], [0], [1], [0, 0, 1, 1], [], []>} : vector<28x96xf32>, vector<96x168xf32>, vector<28x168xf32> -> vector<28x168xf32>
    %212 = arith.addf %207, %211 : vector<28x168xf32>
    %c0_159 = arith.constant 0 : index
    %c0_160 = arith.constant 0 : index
    %213 = vector.load %arg2[%c0_159, %c0_160] : memref<1x168xf32, #tpu.memory_space<vmem>>, vector<1x168xf32>
    %214 = vector.broadcast %213 : vector<1x168xf32> to vector<28x168xf32>
    %215 = arith.addf %212, %214 : vector<28x168xf32>
    %216 = math.tanh %215 : vector<28x168xf32>
    %217 = vector.extract_strided_slice %216 {offsets = [0, 0], sizes = [27, 168], strides = [1, 1]} : vector<28x168xf32> to vector<27x168xf32>
    %218 = vector.extract_strided_slice %216 {offsets = [1, 0], sizes = [27, 168], strides = [1, 1]} : vector<28x168xf32> to vector<27x168xf32>
    %219 = arith.maximumf %217, %218 : vector<27x168xf32>
    %220 = vector.extract_strided_slice %219 {offsets = [0, 0], sizes = [1, 168], strides = [1, 1]} : vector<27x168xf32> to vector<1x168xf32>
    %c0_161 = arith.constant 0 : index
    %c0_162 = arith.constant 0 : index
    %221 = vector.load %arg12[%c0_161, %c0_162] : memref<14x168xf32, #tpu.memory_space<vmem>>, vector<1x168xf32>
    tpu.vector_store %arg12[%c0_161, %c0_162], %220 {strides = array<i32>} : memref<14x168xf32, #tpu.memory_space<vmem>>, vector<1x168xf32>,
    %222 = vector.extract_strided_slice %219 {offsets = [2, 0], sizes = [1, 168], strides = [1, 1]} : vector<27x168xf32> to vector<1x168xf32>
    %c1_163 = arith.constant 1 : index
    %c0_164 = arith.constant 0 : index
    %223 = vector.load %arg12[%c1_163, %c0_164] : memref<14x168xf32, #tpu.memory_space<vmem>>, vector<1x168xf32>
    tpu.vector_store %arg12[%c1_163, %c0_164], %222 {strides = array<i32>} : memref<14x168xf32, #tpu.memory_space<vmem>>, vector<1x168xf32>,
    %224 = vector.extract_strided_slice %219 {offsets = [4, 0], sizes = [1, 168], strides = [1, 1]} : vector<27x168xf32> to vector<1x168xf32>
    %c2_165 = arith.constant 2 : index
    %c0_166 = arith.constant 0 : index
    %225 = vector.load %arg12[%c2_165, %c0_166] : memref<14x168xf32, #tpu.memory_space<vmem>>, vector<1x168xf32>
    tpu.vector_store %arg12[%c2_165, %c0_166], %224 {strides = array<i32>} : memref<14x168xf32, #tpu.memory_space<vmem>>, vector<1x168xf32>,
    %226 = vector.extract_strided_slice %219 {offsets = [6, 0], sizes = [1, 168], strides = [1, 1]} : vector<27x168xf32> to vector<1x168xf32>
    %c3_167 = arith.constant 3 : index
    %c0_168 = arith.constant 0 : index
    %227 = vector.load %arg12[%c3_167, %c0_168] : memref<14x168xf32, #tpu.memory_space<vmem>>, vector<1x168xf32>
    tpu.vector_store %arg12[%c3_167, %c0_168], %226 {strides = array<i32>} : memref<14x168xf32, #tpu.memory_space<vmem>>, vector<1x168xf32>,
    %228 = vector.extract_strided_slice %219 {offsets = [8, 0], sizes = [1, 168], strides = [1, 1]} : vector<27x168xf32> to vector<1x168xf32>
    %c4_169 = arith.constant 4 : index
    %c0_170 = arith.constant 0 : index
    %229 = vector.load %arg12[%c4_169, %c0_170] : memref<14x168xf32, #tpu.memory_space<vmem>>, vector<1x168xf32>
    tpu.vector_store %arg12[%c4_169, %c0_170], %228 {strides = array<i32>} : memref<14x168xf32, #tpu.memory_space<vmem>>, vector<1x168xf32>,
    %230 = vector.extract_strided_slice %219 {offsets = [10, 0], sizes = [1, 168], strides = [1, 1]} : vector<27x168xf32> to vector<1x168xf32>
    %c5_171 = arith.constant 5 : index
    %c0_172 = arith.constant 0 : index
    %231 = vector.load %arg12[%c5_171, %c0_172] : memref<14x168xf32, #tpu.memory_space<vmem>>, vector<1x168xf32>
    tpu.vector_store %arg12[%c5_171, %c0_172], %230 {strides = array<i32>} : memref<14x168xf32, #tpu.memory_space<vmem>>, vector<1x168xf32>,
    %232 = vector.extract_strided_slice %219 {offsets = [12, 0], sizes = [1, 168], strides = [1, 1]} : vector<27x168xf32> to vector<1x168xf32>
    %c6_173 = arith.constant 6 : index
    %c0_174 = arith.constant 0 : index
    %233 = vector.load %arg12[%c6_173, %c0_174] : memref<14x168xf32, #tpu.memory_space<vmem>>, vector<1x168xf32>
    tpu.vector_store %arg12[%c6_173, %c0_174], %232 {strides = array<i32>} : memref<14x168xf32, #tpu.memory_space<vmem>>, vector<1x168xf32>,
    %234 = vector.extract_strided_slice %219 {offsets = [14, 0], sizes = [1, 168], strides = [1, 1]} : vector<27x168xf32> to vector<1x168xf32>
    %c7_175 = arith.constant 7 : index
    %c0_176 = arith.constant 0 : index
    %235 = vector.load %arg12[%c7_175, %c0_176] : memref<14x168xf32, #tpu.memory_space<vmem>>, vector<1x168xf32>
    tpu.vector_store %arg12[%c7_175, %c0_176], %234 {strides = array<i32>} : memref<14x168xf32, #tpu.memory_space<vmem>>, vector<1x168xf32>,
    %236 = vector.extract_strided_slice %219 {offsets = [16, 0], sizes = [1, 168], strides = [1, 1]} : vector<27x168xf32> to vector<1x168xf32>
    %c8_177 = arith.constant 8 : index
    %c0_178 = arith.constant 0 : index
    %237 = vector.load %arg12[%c8_177, %c0_178] : memref<14x168xf32, #tpu.memory_space<vmem>>, vector<1x168xf32>
    tpu.vector_store %arg12[%c8_177, %c0_178], %236 {strides = array<i32>} : memref<14x168xf32, #tpu.memory_space<vmem>>, vector<1x168xf32>,
    %238 = vector.extract_strided_slice %219 {offsets = [18, 0], sizes = [1, 168], strides = [1, 1]} : vector<27x168xf32> to vector<1x168xf32>
    %c9_179 = arith.constant 9 : index
    %c0_180 = arith.constant 0 : index
    %239 = vector.load %arg12[%c9_179, %c0_180] : memref<14x168xf32, #tpu.memory_space<vmem>>, vector<1x168xf32>
    tpu.vector_store %arg12[%c9_179, %c0_180], %238 {strides = array<i32>} : memref<14x168xf32, #tpu.memory_space<vmem>>, vector<1x168xf32>,
    %240 = vector.extract_strided_slice %219 {offsets = [20, 0], sizes = [1, 168], strides = [1, 1]} : vector<27x168xf32> to vector<1x168xf32>
    %c10_181 = arith.constant 10 : index
    %c0_182 = arith.constant 0 : index
    %241 = vector.load %arg12[%c10_181, %c0_182] : memref<14x168xf32, #tpu.memory_space<vmem>>, vector<1x168xf32>
    tpu.vector_store %arg12[%c10_181, %c0_182], %240 {strides = array<i32>} : memref<14x168xf32, #tpu.memory_space<vmem>>, vector<1x168xf32>,
    %242 = vector.extract_strided_slice %219 {offsets = [22, 0], sizes = [1, 168], strides = [1, 1]} : vector<27x168xf32> to vector<1x168xf32>
    %c11_183 = arith.constant 11 : index
    %c0_184 = arith.constant 0 : index
    %243 = vector.load %arg12[%c11_183, %c0_184] : memref<14x168xf32, #tpu.memory_space<vmem>>, vector<1x168xf32>
    tpu.vector_store %arg12[%c11_183, %c0_184], %242 {strides = array<i32>} : memref<14x168xf32, #tpu.memory_space<vmem>>, vector<1x168xf32>,
    %244 = vector.extract_strided_slice %219 {offsets = [24, 0], sizes = [1, 168], strides = [1, 1]} : vector<27x168xf32> to vector<1x168xf32>
    %c12_185 = arith.constant 12 : index
    %c0_186 = arith.constant 0 : index
    %245 = vector.load %arg12[%c12_185, %c0_186] : memref<14x168xf32, #tpu.memory_space<vmem>>, vector<1x168xf32>
    tpu.vector_store %arg12[%c12_185, %c0_186], %244 {strides = array<i32>} : memref<14x168xf32, #tpu.memory_space<vmem>>, vector<1x168xf32>,
    %246 = vector.extract_strided_slice %219 {offsets = [26, 0], sizes = [1, 168], strides = [1, 1]} : vector<27x168xf32> to vector<1x168xf32>
    %c13_187 = arith.constant 13 : index
    %c0_188 = arith.constant 0 : index
    %247 = vector.load %arg12[%c13_187, %c0_188] : memref<14x168xf32, #tpu.memory_space<vmem>>, vector<1x168xf32>
    tpu.vector_store %arg12[%c13_187, %c0_188], %246 {strides = array<i32>} : memref<14x168xf32, #tpu.memory_space<vmem>>, vector<1x168xf32>,
    %c0_189 = arith.constant 0 : index
    %c0_190 = arith.constant 0 : index
    %248 = vector.load %arg12[%c0_189, %c0_190] : memref<14x168xf32, #tpu.memory_space<vmem>>, vector<14x168xf32>
    %249 = vector.extract_strided_slice %248 {offsets = [0, 0], sizes = [14, 162], strides = [1, 1]} : vector<14x168xf32> to vector<14x162xf32>
    %250 = vector.extract_strided_slice %248 {offsets = [0, 6], sizes = [14, 162], strides = [1, 1]} : vector<14x168xf32> to vector<14x162xf32>
    %251 = arith.maximumf %249, %250 : vector<14x162xf32>
    %252 = vector.extract_strided_slice %251 {offsets = [0, 0], sizes = [14, 6], strides = [1, 1]} : vector<14x162xf32> to vector<14x6xf32>
    %c0_191 = arith.constant 0 : index
    %c0_192 = arith.constant 0 : index
    %253 = vector.load %arg13[%c0_191, %c0_192] : memref<14x84xf32, #tpu.memory_space<vmem>>, vector<14x6xf32>
    tpu.vector_store %arg13[%c0_191, %c0_192], %252 {strides = array<i32>} : memref<14x84xf32, #tpu.memory_space<vmem>>, vector<14x6xf32>,
    %254 = vector.extract_strided_slice %251 {offsets = [0, 12], sizes = [14, 6], strides = [1, 1]} : vector<14x162xf32> to vector<14x6xf32>
    %c0_193 = arith.constant 0 : index
    %c6_194 = arith.constant 6 : index
    %255 = vector.load %arg13[%c0_193, %c6_194] : memref<14x84xf32, #tpu.memory_space<vmem>>, vector<14x6xf32>
    tpu.vector_store %arg13[%c0_193, %c6_194], %254 {strides = array<i32>} : memref<14x84xf32, #tpu.memory_space<vmem>>, vector<14x6xf32>,
    %256 = vector.extract_strided_slice %251 {offsets = [0, 24], sizes = [14, 6], strides = [1, 1]} : vector<14x162xf32> to vector<14x6xf32>
    %c0_195 = arith.constant 0 : index
    %c12_196 = arith.constant 12 : index
    %257 = vector.load %arg13[%c0_195, %c12_196] : memref<14x84xf32, #tpu.memory_space<vmem>>, vector<14x6xf32>
    tpu.vector_store %arg13[%c0_195, %c12_196], %256 {strides = array<i32>} : memref<14x84xf32, #tpu.memory_space<vmem>>, vector<14x6xf32>,
    %258 = vector.extract_strided_slice %251 {offsets = [0, 36], sizes = [14, 6], strides = [1, 1]} : vector<14x162xf32> to vector<14x6xf32>
    %c0_197 = arith.constant 0 : index
    %c18_198 = arith.constant 18 : index
    %259 = vector.load %arg13[%c0_197, %c18_198] : memref<14x84xf32, #tpu.memory_space<vmem>>, vector<14x6xf32>
    tpu.vector_store %arg13[%c0_197, %c18_198], %258 {strides = array<i32>} : memref<14x84xf32, #tpu.memory_space<vmem>>, vector<14x6xf32>,
    %260 = vector.extract_strided_slice %251 {offsets = [0, 48], sizes = [14, 6], strides = [1, 1]} : vector<14x162xf32> to vector<14x6xf32>
    %c0_199 = arith.constant 0 : index
    %c24_200 = arith.constant 24 : index
    %261 = vector.load %arg13[%c0_199, %c24_200] : memref<14x84xf32, #tpu.memory_space<vmem>>, vector<14x6xf32>
    tpu.vector_store %arg13[%c0_199, %c24_200], %260 {strides = array<i32>} : memref<14x84xf32, #tpu.memory_space<vmem>>, vector<14x6xf32>,
    %262 = vector.extract_strided_slice %251 {offsets = [0, 60], sizes = [14, 6], strides = [1, 1]} : vector<14x162xf32> to vector<14x6xf32>
    %c0_201 = arith.constant 0 : index
    %c30_202 = arith.constant 30 : index
    %263 = vector.load %arg13[%c0_201, %c30_202] : memref<14x84xf32, #tpu.memory_space<vmem>>, vector<14x6xf32>
    tpu.vector_store %arg13[%c0_201, %c30_202], %262 {strides = array<i32>} : memref<14x84xf32, #tpu.memory_space<vmem>>, vector<14x6xf32>,
    %264 = vector.extract_strided_slice %251 {offsets = [0, 72], sizes = [14, 6], strides = [1, 1]} : vector<14x162xf32> to vector<14x6xf32>
    %c0_203 = arith.constant 0 : index
    %c36_204 = arith.constant 36 : index
    %265 = vector.load %arg13[%c0_203, %c36_204] : memref<14x84xf32, #tpu.memory_space<vmem>>, vector<14x6xf32>
    tpu.vector_store %arg13[%c0_203, %c36_204], %264 {strides = array<i32>} : memref<14x84xf32, #tpu.memory_space<vmem>>, vector<14x6xf32>,
    %266 = vector.extract_strided_slice %251 {offsets = [0, 84], sizes = [14, 6], strides = [1, 1]} : vector<14x162xf32> to vector<14x6xf32>
    %c0_205 = arith.constant 0 : index
    %c42_206 = arith.constant 42 : index
    %267 = vector.load %arg13[%c0_205, %c42_206] : memref<14x84xf32, #tpu.memory_space<vmem>>, vector<14x6xf32>
    tpu.vector_store %arg13[%c0_205, %c42_206], %266 {strides = array<i32>} : memref<14x84xf32, #tpu.memory_space<vmem>>, vector<14x6xf32>,
    %268 = vector.extract_strided_slice %251 {offsets = [0, 96], sizes = [14, 6], strides = [1, 1]} : vector<14x162xf32> to vector<14x6xf32>
    %c0_207 = arith.constant 0 : index
    %c48_208 = arith.constant 48 : index
    %269 = vector.load %arg13[%c0_207, %c48_208] : memref<14x84xf32, #tpu.memory_space<vmem>>, vector<14x6xf32>
    tpu.vector_store %arg13[%c0_207, %c48_208], %268 {strides = array<i32>} : memref<14x84xf32, #tpu.memory_space<vmem>>, vector<14x6xf32>,
    %270 = vector.extract_strided_slice %251 {offsets = [0, 108], sizes = [14, 6], strides = [1, 1]} : vector<14x162xf32> to vector<14x6xf32>
    %c0_209 = arith.constant 0 : index
    %c54_210 = arith.constant 54 : index
    %271 = vector.load %arg13[%c0_209, %c54_210] : memref<14x84xf32, #tpu.memory_space<vmem>>, vector<14x6xf32>
    tpu.vector_store %arg13[%c0_209, %c54_210], %270 {strides = array<i32>} : memref<14x84xf32, #tpu.memory_space<vmem>>, vector<14x6xf32>,
    %272 = vector.extract_strided_slice %251 {offsets = [0, 120], sizes = [14, 6], strides = [1, 1]} : vector<14x162xf32> to vector<14x6xf32>
    %c0_211 = arith.constant 0 : index
    %c60_212 = arith.constant 60 : index
    %273 = vector.load %arg13[%c0_211, %c60_212] : memref<14x84xf32, #tpu.memory_space<vmem>>, vector<14x6xf32>
    tpu.vector_store %arg13[%c0_211, %c60_212], %272 {strides = array<i32>} : memref<14x84xf32, #tpu.memory_space<vmem>>, vector<14x6xf32>,
    %274 = vector.extract_strided_slice %251 {offsets = [0, 132], sizes = [14, 6], strides = [1, 1]} : vector<14x162xf32> to vector<14x6xf32>
    %c0_213 = arith.constant 0 : index
    %c66_214 = arith.constant 66 : index
    %275 = vector.load %arg13[%c0_213, %c66_214] : memref<14x84xf32, #tpu.memory_space<vmem>>, vector<14x6xf32>
    tpu.vector_store %arg13[%c0_213, %c66_214], %274 {strides = array<i32>} : memref<14x84xf32, #tpu.memory_space<vmem>>, vector<14x6xf32>,
    %276 = vector.extract_strided_slice %251 {offsets = [0, 144], sizes = [14, 6], strides = [1, 1]} : vector<14x162xf32> to vector<14x6xf32>
    %c0_215 = arith.constant 0 : index
    %c72_216 = arith.constant 72 : index
    %277 = vector.load %arg13[%c0_215, %c72_216] : memref<14x84xf32, #tpu.memory_space<vmem>>, vector<14x6xf32>
    tpu.vector_store %arg13[%c0_215, %c72_216], %276 {strides = array<i32>} : memref<14x84xf32, #tpu.memory_space<vmem>>, vector<14x6xf32>,
    %278 = vector.extract_strided_slice %251 {offsets = [0, 156], sizes = [14, 6], strides = [1, 1]} : vector<14x162xf32> to vector<14x6xf32>
    %c0_217 = arith.constant 0 : index
    %c78_218 = arith.constant 78 : index
    %279 = vector.load %arg13[%c0_217, %c78_218] : memref<14x84xf32, #tpu.memory_space<vmem>>, vector<14x6xf32>
    tpu.vector_store %arg13[%c0_217, %c78_218], %278 {strides = array<i32>} : memref<14x84xf32, #tpu.memory_space<vmem>>, vector<14x6xf32>,
    %c0_219 = arith.constant 0 : index
    %c0_220 = arith.constant 0 : index
    %280 = vector.load %arg13[%c0_219, %c0_220] : memref<14x84xf32, #tpu.memory_space<vmem>>, vector<14x84xf32>
    %281 = vector.extract_strided_slice %280 {offsets = [0, 0], sizes = [10, 84], strides = [1, 1]} : vector<14x84xf32> to vector<10x84xf32>
    %c0_221 = arith.constant 0 : index
    %c0_222 = arith.constant 0 : index
    %c0_223 = arith.constant 0 : index
    %282 = vector.load %arg3[%c0_221, %c0_222, %c0_223] : memref<5x84x160xf32, #tpu.memory_space<vmem>>, vector<1x84x160xf32>
    %283 = vector.shape_cast %282 : vector<1x84x160xf32> to vector<84x160xf32>
    %cst_224 = arith.constant dense<0.000000e+00> : vector<10x160xf32>
    %284 = tpu.matmul %281, %283, %cst_224 {dimension_numbers = #tpu.dot_dimension_numbers<[1], [0], [0], [1], [0, 0, 1, 1], [], []>} : vector<10x84xf32>, vector<84x160xf32>, vector<10x160xf32> -> vector<10x160xf32>
    %285 = vector.extract_strided_slice %280 {offsets = [1, 0], sizes = [10, 84], strides = [1, 1]} : vector<14x84xf32> to vector<10x84xf32>
    %c1_225 = arith.constant 1 : index
    %c0_226 = arith.constant 0 : index
    %c0_227 = arith.constant 0 : index
    %286 = vector.load %arg3[%c1_225, %c0_226, %c0_227] : memref<5x84x160xf32, #tpu.memory_space<vmem>>, vector<1x84x160xf32>
    %287 = vector.shape_cast %286 : vector<1x84x160xf32> to vector<84x160xf32>
    %cst_228 = arith.constant dense<0.000000e+00> : vector<10x160xf32>
    %288 = tpu.matmul %285, %287, %cst_228 {dimension_numbers = #tpu.dot_dimension_numbers<[1], [0], [0], [1], [0, 0, 1, 1], [], []>} : vector<10x84xf32>, vector<84x160xf32>, vector<10x160xf32> -> vector<10x160xf32>
    %289 = arith.addf %284, %288 : vector<10x160xf32>
    %290 = vector.extract_strided_slice %280 {offsets = [2, 0], sizes = [10, 84], strides = [1, 1]} : vector<14x84xf32> to vector<10x84xf32>
    %c2_229 = arith.constant 2 : index
    %c0_230 = arith.constant 0 : index
    %c0_231 = arith.constant 0 : index
    %291 = vector.load %arg3[%c2_229, %c0_230, %c0_231] : memref<5x84x160xf32, #tpu.memory_space<vmem>>, vector<1x84x160xf32>
    %292 = vector.shape_cast %291 : vector<1x84x160xf32> to vector<84x160xf32>
    %cst_232 = arith.constant dense<0.000000e+00> : vector<10x160xf32>
    %293 = tpu.matmul %290, %292, %cst_232 {dimension_numbers = #tpu.dot_dimension_numbers<[1], [0], [0], [1], [0, 0, 1, 1], [], []>} : vector<10x84xf32>, vector<84x160xf32>, vector<10x160xf32> -> vector<10x160xf32>
    %294 = arith.addf %289, %293 : vector<10x160xf32>
    %295 = vector.extract_strided_slice %280 {offsets = [3, 0], sizes = [10, 84], strides = [1, 1]} : vector<14x84xf32> to vector<10x84xf32>
    %c3_233 = arith.constant 3 : index
    %c0_234 = arith.constant 0 : index
    %c0_235 = arith.constant 0 : index
    %296 = vector.load %arg3[%c3_233, %c0_234, %c0_235] : memref<5x84x160xf32, #tpu.memory_space<vmem>>, vector<1x84x160xf32>
    %297 = vector.shape_cast %296 : vector<1x84x160xf32> to vector<84x160xf32>
    %cst_236 = arith.constant dense<0.000000e+00> : vector<10x160xf32>
    %298 = tpu.matmul %295, %297, %cst_236 {dimension_numbers = #tpu.dot_dimension_numbers<[1], [0], [0], [1], [0, 0, 1, 1], [], []>} : vector<10x84xf32>, vector<84x160xf32>, vector<10x160xf32> -> vector<10x160xf32>
    %299 = arith.addf %294, %298 : vector<10x160xf32>
    %300 = vector.extract_strided_slice %280 {offsets = [4, 0], sizes = [10, 84], strides = [1, 1]} : vector<14x84xf32> to vector<10x84xf32>
    %c4_237 = arith.constant 4 : index
    %c0_238 = arith.constant 0 : index
    %c0_239 = arith.constant 0 : index
    %301 = vector.load %arg3[%c4_237, %c0_238, %c0_239] : memref<5x84x160xf32, #tpu.memory_space<vmem>>, vector<1x84x160xf32>
    %302 = vector.shape_cast %301 : vector<1x84x160xf32> to vector<84x160xf32>
    %cst_240 = arith.constant dense<0.000000e+00> : vector<10x160xf32>
    %303 = tpu.matmul %300, %302, %cst_240 {dimension_numbers = #tpu.dot_dimension_numbers<[1], [0], [0], [1], [0, 0, 1, 1], [], []>} : vector<10x84xf32>, vector<84x160xf32>, vector<10x160xf32> -> vector<10x160xf32>
    %304 = arith.addf %299, %303 : vector<10x160xf32>
    %c0_241 = arith.constant 0 : index
    %c0_242 = arith.constant 0 : index
    %305 = vector.load %arg4[%c0_241, %c0_242] : memref<1x160xf32, #tpu.memory_space<vmem>>, vector<1x160xf32>
    %306 = vector.broadcast %305 : vector<1x160xf32> to vector<10x160xf32>
    %307 = arith.addf %304, %306 : vector<10x160xf32>
    %308 = math.tanh %307 : vector<10x160xf32>
    %309 = vector.extract_strided_slice %308 {offsets = [0, 0], sizes = [9, 160], strides = [1, 1]} : vector<10x160xf32> to vector<9x160xf32>
    %310 = vector.extract_strided_slice %308 {offsets = [1, 0], sizes = [9, 160], strides = [1, 1]} : vector<10x160xf32> to vector<9x160xf32>
    %311 = arith.maximumf %309, %310 : vector<9x160xf32>
    %312 = vector.extract_strided_slice %311 {offsets = [0, 0], sizes = [1, 160], strides = [1, 1]} : vector<9x160xf32> to vector<1x160xf32>
    %c0_243 = arith.constant 0 : index
    %c0_244 = arith.constant 0 : index
    %313 = vector.load %arg14[%c0_243, %c0_244] : memref<5x160xf32, #tpu.memory_space<vmem>>, vector<1x160xf32>
    tpu.vector_store %arg14[%c0_243, %c0_244], %312 {strides = array<i32>} : memref<5x160xf32, #tpu.memory_space<vmem>>, vector<1x160xf32>,
    %314 = vector.extract_strided_slice %311 {offsets = [2, 0], sizes = [1, 160], strides = [1, 1]} : vector<9x160xf32> to vector<1x160xf32>
    %c1_245 = arith.constant 1 : index
    %c0_246 = arith.constant 0 : index
    %315 = vector.load %arg14[%c1_245, %c0_246] : memref<5x160xf32, #tpu.memory_space<vmem>>, vector<1x160xf32>
    tpu.vector_store %arg14[%c1_245, %c0_246], %314 {strides = array<i32>} : memref<5x160xf32, #tpu.memory_space<vmem>>, vector<1x160xf32>,
    %316 = vector.extract_strided_slice %311 {offsets = [4, 0], sizes = [1, 160], strides = [1, 1]} : vector<9x160xf32> to vector<1x160xf32>
    %c2_247 = arith.constant 2 : index
    %c0_248 = arith.constant 0 : index
    %317 = vector.load %arg14[%c2_247, %c0_248] : memref<5x160xf32, #tpu.memory_space<vmem>>, vector<1x160xf32>
    tpu.vector_store %arg14[%c2_247, %c0_248], %316 {strides = array<i32>} : memref<5x160xf32, #tpu.memory_space<vmem>>, vector<1x160xf32>,
    %318 = vector.extract_strided_slice %311 {offsets = [6, 0], sizes = [1, 160], strides = [1, 1]} : vector<9x160xf32> to vector<1x160xf32>
    %c3_249 = arith.constant 3 : index
    %c0_250 = arith.constant 0 : index
    %319 = vector.load %arg14[%c3_249, %c0_250] : memref<5x160xf32, #tpu.memory_space<vmem>>, vector<1x160xf32>
    tpu.vector_store %arg14[%c3_249, %c0_250], %318 {strides = array<i32>} : memref<5x160xf32, #tpu.memory_space<vmem>>, vector<1x160xf32>,
    %320 = vector.extract_strided_slice %311 {offsets = [8, 0], sizes = [1, 160], strides = [1, 1]} : vector<9x160xf32> to vector<1x160xf32>
    %c4_251 = arith.constant 4 : index
    %c0_252 = arith.constant 0 : index
    %321 = vector.load %arg14[%c4_251, %c0_252] : memref<5x160xf32, #tpu.memory_space<vmem>>, vector<1x160xf32>
    tpu.vector_store %arg14[%c4_251, %c0_252], %320 {strides = array<i32>} : memref<5x160xf32, #tpu.memory_space<vmem>>, vector<1x160xf32>,
    %c0_253 = arith.constant 0 : index
    %c0_254 = arith.constant 0 : index
    %322 = vector.load %arg14[%c0_253, %c0_254] : memref<5x160xf32, #tpu.memory_space<vmem>>, vector<5x160xf32>
    %323 = vector.extract_strided_slice %322 {offsets = [0, 0], sizes = [5, 144], strides = [1, 1]} : vector<5x160xf32> to vector<5x144xf32>
    %324 = vector.extract_strided_slice %322 {offsets = [0, 16], sizes = [5, 144], strides = [1, 1]} : vector<5x160xf32> to vector<5x144xf32>
    %325 = arith.maximumf %323, %324 : vector<5x144xf32>
    %326 = vector.extract_strided_slice %325 {offsets = [0, 0], sizes = [5, 16], strides = [1, 1]} : vector<5x144xf32> to vector<5x16xf32>
    %c0_255 = arith.constant 0 : index
    %c0_256 = arith.constant 0 : index
    %327 = vector.load %arg15[%c0_255, %c0_256] : memref<5x80xf32, #tpu.memory_space<vmem>>, vector<5x16xf32>
    tpu.vector_store %arg15[%c0_255, %c0_256], %326 {strides = array<i32>} : memref<5x80xf32, #tpu.memory_space<vmem>>, vector<5x16xf32>,
    %328 = vector.extract_strided_slice %325 {offsets = [0, 32], sizes = [5, 16], strides = [1, 1]} : vector<5x144xf32> to vector<5x16xf32>
    %c0_257 = arith.constant 0 : index
    %c16_258 = arith.constant 16 : index
    %329 = vector.load %arg15[%c0_257, %c16_258] : memref<5x80xf32, #tpu.memory_space<vmem>>, vector<5x16xf32>
    tpu.vector_store %arg15[%c0_257, %c16_258], %328 {strides = array<i32>} : memref<5x80xf32, #tpu.memory_space<vmem>>, vector<5x16xf32>,
    %330 = vector.extract_strided_slice %325 {offsets = [0, 64], sizes = [5, 16], strides = [1, 1]} : vector<5x144xf32> to vector<5x16xf32>
    %c0_259 = arith.constant 0 : index
    %c32_260 = arith.constant 32 : index
    %331 = vector.load %arg15[%c0_259, %c32_260] : memref<5x80xf32, #tpu.memory_space<vmem>>, vector<5x16xf32>
    tpu.vector_store %arg15[%c0_259, %c32_260], %330 {strides = array<i32>} : memref<5x80xf32, #tpu.memory_space<vmem>>, vector<5x16xf32>,
    %332 = vector.extract_strided_slice %325 {offsets = [0, 96], sizes = [5, 16], strides = [1, 1]} : vector<5x144xf32> to vector<5x16xf32>
    %c0_261 = arith.constant 0 : index
    %c48_262 = arith.constant 48 : index
    %333 = vector.load %arg15[%c0_261, %c48_262] : memref<5x80xf32, #tpu.memory_space<vmem>>, vector<5x16xf32>
    tpu.vector_store %arg15[%c0_261, %c48_262], %332 {strides = array<i32>} : memref<5x80xf32, #tpu.memory_space<vmem>>, vector<5x16xf32>,
    %334 = vector.extract_strided_slice %325 {offsets = [0, 128], sizes = [5, 16], strides = [1, 1]} : vector<5x144xf32> to vector<5x16xf32>
    %c0_263 = arith.constant 0 : index
    %c64_264 = arith.constant 64 : index
    %335 = vector.load %arg15[%c0_263, %c64_264] : memref<5x80xf32, #tpu.memory_space<vmem>>, vector<5x16xf32>
    tpu.vector_store %arg15[%c0_263, %c64_264], %334 {strides = array<i32>} : memref<5x80xf32, #tpu.memory_space<vmem>>, vector<5x16xf32>,
    %c0_265 = arith.constant 0 : index
    %c0_266 = arith.constant 0 : index
    %336 = vector.load %arg15[%c0_265, %c0_266] : memref<5x80xf32, #tpu.memory_space<vmem>>, vector<5x80xf32>
    %337 = vector.extract_strided_slice %336 {offsets = [0, 0], sizes = [1, 80], strides = [1, 1]} : vector<5x80xf32> to vector<1x80xf32>
    %c0_267 = arith.constant 0 : index
    %c0_268 = arith.constant 0 : index
    %c0_269 = arith.constant 0 : index
    %338 = vector.load %arg5[%c0_267, %c0_268, %c0_269] : memref<5x80x120xf32, #tpu.memory_space<vmem>>, vector<1x80x120xf32>
    %339 = vector.shape_cast %338 : vector<1x80x120xf32> to vector<80x120xf32>
    %cst_270 = arith.constant dense<0.000000e+00> : vector<1x120xf32>
    %340 = tpu.matmul %337, %339, %cst_270 {dimension_numbers = #tpu.dot_dimension_numbers<[1], [0], [0], [1], [0, 0, 1, 1], [], []>} : vector<1x80xf32>, vector<80x120xf32>, vector<1x120xf32> -> vector<1x120xf32>
    %341 = vector.extract_strided_slice %336 {offsets = [1, 0], sizes = [1, 80], strides = [1, 1]} : vector<5x80xf32> to vector<1x80xf32>
    %c1_271 = arith.constant 1 : index
    %c0_272 = arith.constant 0 : index
    %c0_273 = arith.constant 0 : index
    %342 = vector.load %arg5[%c1_271, %c0_272, %c0_273] : memref<5x80x120xf32, #tpu.memory_space<vmem>>, vector<1x80x120xf32>
    %343 = vector.shape_cast %342 : vector<1x80x120xf32> to vector<80x120xf32>
    %cst_274 = arith.constant dense<0.000000e+00> : vector<1x120xf32>
    %344 = tpu.matmul %341, %343, %cst_274 {dimension_numbers = #tpu.dot_dimension_numbers<[1], [0], [0], [1], [0, 0, 1, 1], [], []>} : vector<1x80xf32>, vector<80x120xf32>, vector<1x120xf32> -> vector<1x120xf32>
    %345 = arith.addf %340, %344 : vector<1x120xf32>
    %346 = vector.extract_strided_slice %336 {offsets = [2, 0], sizes = [1, 80], strides = [1, 1]} : vector<5x80xf32> to vector<1x80xf32>
    %c2_275 = arith.constant 2 : index
    %c0_276 = arith.constant 0 : index
    %c0_277 = arith.constant 0 : index
    %347 = vector.load %arg5[%c2_275, %c0_276, %c0_277] : memref<5x80x120xf32, #tpu.memory_space<vmem>>, vector<1x80x120xf32>
    %348 = vector.shape_cast %347 : vector<1x80x120xf32> to vector<80x120xf32>
    %cst_278 = arith.constant dense<0.000000e+00> : vector<1x120xf32>
    %349 = tpu.matmul %346, %348, %cst_278 {dimension_numbers = #tpu.dot_dimension_numbers<[1], [0], [0], [1], [0, 0, 1, 1], [], []>} : vector<1x80xf32>, vector<80x120xf32>, vector<1x120xf32> -> vector<1x120xf32>
    %350 = arith.addf %345, %349 : vector<1x120xf32>
    %351 = vector.extract_strided_slice %336 {offsets = [3, 0], sizes = [1, 80], strides = [1, 1]} : vector<5x80xf32> to vector<1x80xf32>
    %c3_279 = arith.constant 3 : index
    %c0_280 = arith.constant 0 : index
    %c0_281 = arith.constant 0 : index
    %352 = vector.load %arg5[%c3_279, %c0_280, %c0_281] : memref<5x80x120xf32, #tpu.memory_space<vmem>>, vector<1x80x120xf32>
    %353 = vector.shape_cast %352 : vector<1x80x120xf32> to vector<80x120xf32>
    %cst_282 = arith.constant dense<0.000000e+00> : vector<1x120xf32>
    %354 = tpu.matmul %351, %353, %cst_282 {dimension_numbers = #tpu.dot_dimension_numbers<[1], [0], [0], [1], [0, 0, 1, 1], [], []>} : vector<1x80xf32>, vector<80x120xf32>, vector<1x120xf32> -> vector<1x120xf32>
    %355 = arith.addf %350, %354 : vector<1x120xf32>
    %356 = vector.extract_strided_slice %336 {offsets = [4, 0], sizes = [1, 80], strides = [1, 1]} : vector<5x80xf32> to vector<1x80xf32>
    %c4_283 = arith.constant 4 : index
    %c0_284 = arith.constant 0 : index
    %c0_285 = arith.constant 0 : index
    %357 = vector.load %arg5[%c4_283, %c0_284, %c0_285] : memref<5x80x120xf32, #tpu.memory_space<vmem>>, vector<1x80x120xf32>
    %358 = vector.shape_cast %357 : vector<1x80x120xf32> to vector<80x120xf32>
    %cst_286 = arith.constant dense<0.000000e+00> : vector<1x120xf32>
    %359 = tpu.matmul %356, %358, %cst_286 {dimension_numbers = #tpu.dot_dimension_numbers<[1], [0], [0], [1], [0, 0, 1, 1], [], []>} : vector<1x80xf32>, vector<80x120xf32>, vector<1x120xf32> -> vector<1x120xf32>
    %360 = arith.addf %355, %359 : vector<1x120xf32>
    %c0_287 = arith.constant 0 : index
    %c0_288 = arith.constant 0 : index
    %361 = vector.load %arg6[%c0_287, %c0_288] : memref<1x120xf32, #tpu.memory_space<vmem>>, vector<1x120xf32>
    %362 = arith.addf %360, %361 : vector<1x120xf32>
    %363 = math.tanh %362 : vector<1x120xf32>
    %c0_289 = arith.constant 0 : index
    %c0_290 = arith.constant 0 : index
    %364 = vector.load %arg7[%c0_289, %c0_290] : memref<120x84xf32, #tpu.memory_space<vmem>>, vector<120x84xf32>
    %cst_291 = arith.constant dense<0.000000e+00> : vector<1x84xf32>
    %365 = tpu.matmul %363, %364, %cst_291 {dimension_numbers = #tpu.dot_dimension_numbers<[1], [0], [0], [1], [0, 0, 1, 1], [], []>} : vector<1x120xf32>, vector<120x84xf32>, vector<1x84xf32> -> vector<1x84xf32>
    %c0_292 = arith.constant 0 : index
    %c0_293 = arith.constant 0 : index
    %366 = vector.load %arg8[%c0_292, %c0_293] : memref<1x84xf32, #tpu.memory_space<vmem>>, vector<1x84xf32>
    %367 = arith.addf %365, %366 : vector<1x84xf32>
    %368 = math.tanh %367 : vector<1x84xf32>
    %c0_294 = arith.constant 0 : index
    %c0_295 = arith.constant 0 : index
    %369 = vector.load %arg9[%c0_294, %c0_295] : memref<84x10xf32, #tpu.memory_space<vmem>>, vector<84x10xf32>
    %cst_296 = arith.constant dense<0.000000e+00> : vector<1x10xf32>
    %370 = tpu.matmul %368, %369, %cst_296 {dimension_numbers = #tpu.dot_dimension_numbers<[1], [0], [0], [1], [0, 0, 1, 1], [], []>} : vector<1x84xf32>, vector<84x10xf32>, vector<1x10xf32> -> vector<1x10xf32>
    %c0_297 = arith.constant 0 : index
    %c0_298 = arith.constant 0 : index
    %371 = vector.load %arg10[%c0_297, %c0_298] : memref<1x10xf32, #tpu.memory_space<vmem>>, vector<1x10xf32>
    %372 = arith.addf %370, %371 : vector<1x10xf32>
    %c1_299 = arith.constant 1 : index
    %c0_300 = arith.constant 0 : index
    %373 = vector.load %arg11[%c1_299, %c0_300] : memref<2x10xf32, #tpu.memory_space<vmem>>, vector<1x10xf32>
    tpu.vector_store %arg11[%c1_299, %c0_300], %372 {strides = array<i32>} : memref<2x10xf32, #tpu.memory_space<vmem>>, vector<1x10xf32>,
    return
  }
}

</mosaic_0001>

<llo_original>
// kernel: custom_cnn_forward.1
$region0: #{custom_cnn_forward.1}
  #allocation0 [shape = 'u32[]', space=smem, size = 0x4, offset = 0x4, fixed_abs, tag = 'smem constant byte address 0x4 - core index']
  #allocation1 [shape = 'u32[144,128]{1,0:T(1,128)}', space=vmem, size = 0x12000, scoped, tag = 'internal scratch']
  #allocation2 [shape = 'f32[14,168]{1,0:T(8,128)}', space=vmem, size = 0x4000, scoped, tag = 'scratch operand']
  #allocation3 [shape = 'f32[14,84]{1,0:T(8,128)}', space=vmem, size = 0x2000, scoped, tag = 'scratch operand']
  #allocation4 [shape = 'f32[5,160]{1,0:T(8,128)}', space=vmem, size = 0x2000, scoped, tag = 'scratch operand']
  #allocation5 [shape = 'f32[5,80]{1,0:T(8,128)}', space=vmem, size = 0x1000, scoped, tag = 'scratch operand']
  %s0 = inlined_call_operand.vmem [shape: f32[2,32,96], index: 0, kind: input, shape index: {}]
  %s1 = inlined_call_operand.vmem [shape: f32[5,96,168], index: 1, kind: input, shape index: {}]
  %s2 = inlined_call_operand.vmem [shape: f32[1,168], index: 2, kind: input, shape index: {}]
  %s3 = inlined_call_operand.vmem [shape: f32[5,84,160], index: 3, kind: input, shape index: {}]
  %s4 = inlined_call_operand.vmem [shape: f32[1,160], index: 4, kind: input, shape index: {}]
  %s5 = inlined_call_operand.vmem [shape: f32[5,80,120], index: 5, kind: input, shape index: {}]
  %s6 = inlined_call_operand.vmem [shape: f32[1,120], index: 6, kind: input, shape index: {}]
  %s7 = inlined_call_operand.vmem [shape: f32[120,84], index: 7, kind: input, shape index: {}]
  %s8 = inlined_call_operand.vmem [shape: f32[1,84], index: 8, kind: input, shape index: {}]
  %s9 = inlined_call_operand.vmem [shape: f32[84,10], index: 9, kind: input, shape index: {}]
  %s10 = inlined_call_operand.vmem [shape: f32[1,10], index: 10, kind: input, shape index: {}]
  %s11 = inlined_call_operand.hbm [shape: f32[2,10], index: 11, kind: output, shape index: {}]
  %s12 = sld [smem:[#allocation0]]
  $region54: #{custom_cnn_forward.1} parent=0
    _
  %s14 = ssub.s32 1, %s12
  %s15 = scalar_select 0, %s14, %s12
  $region1: #{custom_cnn_forward.1} parent=0
    #allocation6 [shape = 'u8[1024]{0}', space=vmem, size = 0x400, scoped, tag = 'output window, operand 0, single buffered']
    #allocation7 [shape = 's32[1]{0}', space=sflag, size = 0x4, scoped, tag = 'scoped memory for custom_cnn_forward.1']
    %16 = vsyncpa [#allocation7], 0
    // Predicated region
    $region2: #{custom_cnn_forward.1} parent=1 // pred_check
      _
    $region3: #{custom_cnn_forward.1} parent=1 // pred_check_branch
      %18 = sbr.rel (0) target = $region5
    $region4: #{custom_cnn_forward.1} parent=1 // pred_region
      _
    $region5: #{custom_cnn_forward.1} parent=1 // pred_fallthru
      _
    // Predicated region
    $region6: #{custom_cnn_forward.1} parent=1 // pred_check
      _
    $region7: #{custom_cnn_forward.1} parent=1 // pred_check_branch
      %20 = sbr.rel (0) target = $region9
    $region8: #{custom_cnn_forward.1} parent=1 // pred_region
      _
    $region9: #{custom_cnn_forward.1} parent=1 // pred_fallthru
      _
    // Predicated region
    $region10: #{custom_cnn_forward.1} parent=1 // pred_check
      _
    $region11: #{custom_cnn_forward.1} parent=1 // pred_check_branch
      %22 = sbr.rel (0) target = $region13
    $region12: #{custom_cnn_forward.1} parent=1 // pred_region
      _
    $region13: #{custom_cnn_forward.1} parent=1 // pred_fallthru
      _
    // Predicated region
    $region14: #{custom_cnn_forward.1} parent=1 // pred_check
      _
    $region15: #{custom_cnn_forward.1} parent=1 // pred_check_branch
      %24 = sbr.rel (0) target = $region17
    $region16: #{custom_cnn_forward.1} parent=1 // pred_region
      _
    $region17: #{custom_cnn_forward.1} parent=1 // pred_fallthru
      _
    // Predicated region
    $region18: #{custom_cnn_forward.1} parent=1 // pred_check
      _
    $region19: #{custom_cnn_forward.1} parent=1 // pred_check_branch
      %26 = sbr.rel (0) target = $region21
    $region20: #{custom_cnn_forward.1} parent=1 // pred_region
      _
    $region21: #{custom_cnn_forward.1} parent=1 // pred_fallthru
      _
    // Predicated region
    $region22: #{custom_cnn_forward.1} parent=1 // pred_check
      _
    $region23: #{custom_cnn_forward.1} parent=1 // pred_check_branch
      %28 = sbr.rel (0) target = $region25
    $region24: #{custom_cnn_forward.1} parent=1 // pred_region
      _
    $region25: #{custom_cnn_forward.1} parent=1 // pred_fallthru
      _
    // Predicated region
    $region26: #{custom_cnn_forward.1} parent=1 // pred_check
      _
    $region27: #{custom_cnn_forward.1} parent=1 // pred_check_branch
      %30 = sbr.rel (0) target = $region29
    $region28: #{custom_cnn_forward.1} parent=1 // pred_region
      _
    $region29: #{custom_cnn_forward.1} parent=1 // pred_fallthru
      _
    // Predicated region
    $region30: #{custom_cnn_forward.1} parent=1 // pred_check
      _
    $region31: #{custom_cnn_forward.1} parent=1 // pred_check_branch
      %32 = sbr.rel (0) target = $region33
    $region32: #{custom_cnn_forward.1} parent=1 // pred_region
      _
    $region33: #{custom_cnn_forward.1} parent=1 // pred_fallthru
      _
    // Predicated region
    $region34: #{custom_cnn_forward.1} parent=1 // pred_check
      _
    $region35: #{custom_cnn_forward.1} parent=1 // pred_check_branch
      %34 = sbr.rel (0) target = $region37
    $region36: #{custom_cnn_forward.1} parent=1 // pred_region
      _
    $region37: #{custom_cnn_forward.1} parent=1 // pred_fallthru
      _
    // Predicated region
    $region38: #{custom_cnn_forward.1} parent=1 // pred_check
      _
    $region39: #{custom_cnn_forward.1} parent=1 // pred_check_branch
      %36 = sbr.rel (0) target = $region41
    $region40: #{custom_cnn_forward.1} parent=1 // pred_region
      _
    $region41: #{custom_cnn_forward.1} parent=1 // pred_fallthru
      _
    // Predicated region
    $region42: #{custom_cnn_forward.1} parent=1 // pred_check
      _
    $region43: #{custom_cnn_forward.1} parent=1 // pred_check_branch
      %38 = sbr.rel (0) target = $region45
    $region44: #{custom_cnn_forward.1} parent=1 // pred_region
      _
    $region45: #{custom_cnn_forward.1} parent=1 // pred_fallthru
      _
    %v39 = vld [vmem:[%s0] sm:$0xff]
    %v40 = vld [vmem:[%s0 + $0x8] sm:$0xff]
    %v41 = vld [vmem:[%s0 + $0x10] sm:$0xff]
    %v42 = vld [vmem:[%s0 + $0x18] sm:$0xff]
    %v43 = vld [vmem:[%s1] sm:$0xff]
    %v44 = vld [vmem:[%s1 + $0x8] sm:$0xff]
    %v45 = vld [vmem:[%s1 + $0x10] sm:$0xff]
    %v46 = vld [vmem:[%s1 + $0x18] sm:$0xff]
    %v47 = vld [vmem:[%s1 + $0x20] sm:$0xff]
    %v48 = vld [vmem:[%s1 + $0x28] sm:$0xff]
    %v49 = vld [vmem:[%s1 + $0x30] sm:$0xff]
    %v50 = vld [vmem:[%s1 + $0x38] sm:$0xff]
    %v51 = vld [vmem:[%s1 + $0x40] sm:$0xff]
    %v52 = vld [vmem:[%s1 + $0x48] sm:$0xff]
    %v53 = vld [vmem:[%s1 + $0x50] sm:$0xff]
    %v54 = vld [vmem:[%s1 + $0x58] sm:$0xff]
    %v55 = vld [vmem:[%s1 + $0x60] sm:$0xff]
    %v56 = vld [vmem:[%s1 + $0x68] sm:$0xff]
    %v57 = vld [vmem:[%s1 + $0x70] sm:$0xff]
    %v58 = vld [vmem:[%s1 + $0x78] sm:$0xff]
    %v59 = vld [vmem:[%s1 + $0x80] sm:$0xff]
    %v60 = vld [vmem:[%s1 + $0x88] sm:$0xff]
    %v61 = vld [vmem:[%s1 + $0x90] sm:$0xff]
    %v62 = vld [vmem:[%s1 + $0x98] sm:$0xff]
    %v63 = vld [vmem:[%s1 + $0xa0] sm:$0xff]
    %v64 = vld [vmem:[%s1 + $0xa8] sm:$0xff]
    %v65 = vld [vmem:[%s1 + $0xb0] sm:$0xff]
    %v66 = vld [vmem:[%s1 + $0xb8] sm:$0xff]
    %s67 = scalar_lea.vmem %s1, 192
    %v68 = vld [vmem:[%s67] sm:$0xff]
    %v69 = vld [vmem:[%s67 + $0x8] sm:$0xff]
    %v70 = vld [vmem:[%s67 + $0x10] sm:$0xff]
    %v71 = vld [vmem:[%s67 + $0x18] sm:$0xff]
    %v72 = vld [vmem:[%s67 + $0x20] sm:$0xff]
    %v73 = vld [vmem:[%s67 + $0x28] sm:$0xff]
    %v74 = vld [vmem:[%s67 + $0x30] sm:$0xff]
    %v75 = vld [vmem:[%s67 + $0x38] sm:$0xff]
    %v76 = vld [vmem:[%s67 + $0x40] sm:$0xff]
    %v77 = vld [vmem:[%s67 + $0x48] sm:$0xff]
    %v78 = vld [vmem:[%s67 + $0x50] sm:$0xff]
    %v79 = vld [vmem:[%s67 + $0x58] sm:$0xff]
    %v80 = vld [vmem:[%s67 + $0x60] sm:$0xff]
    %v81 = vld [vmem:[%s67 + $0x68] sm:$0xff]
    %v82 = vld [vmem:[%s67 + $0x70] sm:$0xff]
    %v83 = vld [vmem:[%s67 + $0x78] sm:$0xff]
    %v84 = vld [vmem:[%s67 + $0x80] sm:$0xff]
    %v85 = vld [vmem:[%s67 + $0x88] sm:$0xff]
    %v86 = vld [vmem:[%s67 + $0x90] sm:$0xff]
    %v87 = vld [vmem:[%s67 + $0x98] sm:$0xff]
    %v88 = vld [vmem:[%s67 + $0xa0] sm:$0xff]
    %v89 = vld [vmem:[%s67 + $0xa8] sm:$0xff]
    %v90 = vld [vmem:[%s67 + $0xb0] sm:$0xff]
    %v91 = vld [vmem:[%s67 + $0xb8] sm:$0xff]
    %vm96 = vcmask 1046528
    %v97 = vrot.slane %v39, 1
    %v98 = vrot.slane %v40, 1
    %v99 = vsel %vm96, %v97, %v98
    %v100 = vrot.slane %v41, 1
    %v101 = vsel %vm96, %v98, %v100
    %v102 = vrot.slane %v42, 1
    %v103 = vsel %vm96, %v100, %v102
    %vm104 = vcmask 785408
    %v105 = vsel %vm104, %v99, 0
    %v107 = vsel %vm104, %v101, 0
    %v109 = vsel %vm104, %v103, 0
    %v111 = vsel %vm104, %v102, 0
    %113 = vmatprep.subr.mxu0 %v69
    %114 = vmatpush1.msra.mxu0 %v68
    %115 = vmatprep.subr.mxu0 %v71
    %116 = vmatpush1.msra.mxu0 %v70
    %117 = vmatprep.subr.mxu0 %v73
    %118 = vmatpush1.msra.mxu0 %v72
    %119 = vmatprep.subr.mxu0 %v75
    %120 = vmatpush1.msra.mxu0 %v74
    %121 = vmatprep.subr.mxu0 %v77
    %122 = vmatpush1.msra.mxu0 %v76
    %123 = vmatprep.subr.mxu0 %v79
    %124 = vmatpush1.msra.mxu0 %v78
    %125 = vmatprep.subr.mxu0 %v81
    %126 = vmatpush1.msra.mxu0 %v80
    %127 = vmatprep.subr.mxu0 %v83
    %128 = vmatpush1.msra.mxu0 %v82
    %129 = vmatprep.subr.mxu0 %v85
    %130 = vmatpush1.msra.mxu0 %v84
    %131 = vmatprep.subr.mxu0 %v87
    %132 = vmatpush1.msra.mxu0 %v86
    %133 = vmatprep.subr.mxu0 %v89
    %134 = vmatpush1.msra.mxu0 %v88
    %135 = vmatprep.subr.mxu0 %v91
    %136 = vmatpush1.msra.mxu0 %v90
    %137 = vmatprep.subr.mxu0 0.0
    %138 = vmatpush1.msra.mxu0 0.0
    %139 = vmatprep.subr.mxu0 0.0
    %140 = vmatpush1.msra.mxu0 0.0
    %141 = vmatprep.subr.mxu0 0.0
    %142 = vmatpush1.msra.mxu0 0.0
    %143 = vmatprep.subr.mxu0 0.0
    %144 = vmatpush1.msra.mxu0 0.0
    %145 = vmatprep.subr.mxu0 0.0
    %146 = vmatpush1.msra.mxu0 0.0
    %147 = vmatprep.subr.mxu0 0.0
    %148 = vmatpush1.msra.mxu0 0.0
    %149 = vmatprep.subr.mxu0 0.0
    %150 = vmatpush1.msra.mxu0 0.0
    %151 = vmatprep.subr.mxu0 0.0
    %152 = vmatpush1.msra.mxu0 0.0
    %153 = vmatprep.subr.mxu0 0.0
    %154 = vmatpush1.msra.mxu0 0.0
    %155 = vmatprep.subr.mxu0 0.0
    %156 = vmatpush1.msra.mxu0 0.0
    %157 = vmatprep.subr.mxu0 0.0
    %158 = vmatpush1.msra.mxu0 0.0
    %159 = vmatprep.subr.mxu0 0.0
    %160 = vmatpush1.msra.mxu0 0.0
    %161 = vmatprep.subr.mxu0 0.0
    %162 = vmatpush1.msra.mxu0 0.0
    %163 = vmatprep.subr.mxu0 0.0
    %164 = vmatpush1.msra.mxu0 0.0
    %165 = vmatprep.subr.mxu0 0.0
    %166 = vmatpush1.msra.mxu0 0.0
    %167 = vmatprep.subr.mxu0 0.0
    %168 = vmatpush1.msra.mxu0 0.0
    %169 = vmatprep.subr.mxu0 0.0
    %170 = vmatpush1.msra.mxu0 0.0
    %171 = vmatprep.subr.mxu0 0.0
    %172 = vmatpush1.msra.mxu0 0.0
    %173 = vmatprep.subr.mxu0 0.0
    %174 = vmatpush1.msra.mxu0 0.0
    %175 = vmatprep.subr.mxu0 0.0
    %176 = vmatpush1.msra.mxu0 0.0
    %177 = vmatprep.mubr.f32.mxu0 0.0
    %178 = vmatmul.mubr.f32.gmra.mrb[0].mxu0 %v105
    %v179 = vpop.f32.mrb[0].mxu0
    %v180 = vadd.f32 0.0, %v179
    %v181 = vpop.f32.mrb[0].mxu0
    %v182 = vadd.f32 0.0, %v181
    %183 = vmatprep.mubr.f32.mxu0 0.0
    %184 = vmatmul.mubr.f32.gmra.mrb[0].mxu0 %v107
    %v185 = vpop.f32.mrb[0].mxu0
    %v186 = vadd.f32 0.0, %v185
    %v187 = vpop.f32.mrb[0].mxu0
    %v188 = vadd.f32 0.0, %v187
    %189 = vmatprep.mubr.f32.mxu0 0.0
    %190 = vmatmul.mubr.f32.gmra.mrb[0].mxu0 %v109
    %v191 = vpop.f32.mrb[0].mxu0
    %v192 = vadd.f32 0.0, %v191
    %v193 = vpop.f32.mrb[0].mxu0
    %v194 = vadd.f32 0.0, %v193
    %195 = vmatprep.mubr.f32.mxu0 0.0
    %196 = vmatmul.mubr.f32.gmra.mrb[0].mxu0 %v111
    %v197 = vpop.f32.mrb[0].mxu0
    %v198 = vadd.f32 0.0, %v197
    %v199 = vpop.f32.mrb[0].mxu0
    %v200 = vadd.f32 0.0, %v199
    %201 = vdwg.mxu0
    %v202 = vsel %vm104, %v39, 0
    %v204 = vsel %vm104, %v40, 0
    %v206 = vsel %vm104, %v41, 0
    %v208 = vsel %vm104, %v42, 0
    %210 = vmatprep.subr.mxu0 %v44
    %211 = vmatpush1.msra.mxu0 %v43
    %212 = vmatprep.subr.mxu0 %v46
    %213 = vmatpush1.msra.mxu0 %v45
    %214 = vmatprep.subr.mxu0 %v48
    %215 = vmatpush1.msra.mxu0 %v47
    %216 = vmatprep.subr.mxu0 %v50
    %217 = vmatpush1.msra.mxu0 %v49
    %218 = vmatprep.subr.mxu0 %v52
    %219 = vmatpush1.msra.mxu0 %v51
    %220 = vmatprep.subr.mxu0 %v54
    %221 = vmatpush1.msra.mxu0 %v53
    %222 = vmatprep.subr.mxu0 %v56
    %223 = vmatpush1.msra.mxu0 %v55
    %224 = vmatprep.subr.mxu0 %v58
    %225 = vmatpush1.msra.mxu0 %v57
    %226 = vmatprep.subr.mxu0 %v60
    %227 = vmatpush1.msra.mxu0 %v59
    %228 = vmatprep.subr.mxu0 %v62
    %229 = vmatpush1.msra.mxu0 %v61
    %230 = vmatprep.subr.mxu0 %v64
    %231 = vmatpush1.msra.mxu0 %v63
    %232 = vmatprep.subr.mxu0 %v66
    %233 = vmatpush1.msra.mxu0 %v65
    %234 = vmatprep.subr.mxu0 0.0
    %235 = vmatpush1.msra.mxu0 0.0
    %236 = vmatprep.subr.mxu0 0.0
    %237 = vmatpush1.msra.mxu0 0.0
    %238 = vmatprep.subr.mxu0 0.0
    %239 = vmatpush1.msra.mxu0 0.0
    %240 = vmatprep.subr.mxu0 0.0
    %241 = vmatpush1.msra.mxu0 0.0
    %242 = vmatprep.subr.mxu0 0.0
    %243 = vmatpush1.msra.mxu0 0.0
    %244 = vmatprep.subr.mxu0 0.0
    %245 = vmatpush1.msra.mxu0 0.0
    %246 = vmatprep.subr.mxu0 0.0
    %247 = vmatpush1.msra.mxu0 0.0
    %248 = vmatprep.subr.mxu0 0.0
    %249 = vmatpush1.msra.mxu0 0.0
    %250 = vmatprep.subr.mxu0 0.0
    %251 = vmatpush1.msra.mxu0 0.0
    %252 = vmatprep.subr.mxu0 0.0
    %253 = vmatpush1.msra.mxu0 0.0
    %254 = vmatprep.subr.mxu0 0.0
    %255 = vmatpush1.msra.mxu0 0.0
    %256 = vmatprep.subr.mxu0 0.0
    %257 = vmatpush1.msra.mxu0 0.0
    %258 = vmatprep.subr.mxu0 0.0
    %259 = vmatpush1.msra.mxu0 0.0
    %260 = vmatprep.subr.mxu0 0.0
    %261 = vmatpush1.msra.mxu0 0.0
    %262 = vmatprep.subr.mxu0 0.0
    %263 = vmatpush1.msra.mxu0 0.0
    %264 = vmatprep.subr.mxu0 0.0
    %265 = vmatpush1.msra.mxu0 0.0
    %266 = vmatprep.subr.mxu0 0.0
    %267 = vmatpush1.msra.mxu0 0.0
    %268 = vmatprep.subr.mxu0 0.0
    %269 = vmatpush1.msra.mxu0 0.0
    %270 = vmatprep.subr.mxu0 0.0
    %271 = vmatpush1.msra.mxu0 0.0
    %272 = vmatprep.subr.mxu0 0.0
    %273 = vmatpush1.msra.mxu0 0.0
    %274 = vmatprep.mubr.f32.mxu0 0.0
    %275 = vmatmul.mubr.f32.gmra.mrb[0].mxu0 %v202
    %v276 = vpop.f32.mrb[0].mxu0
    %v277 = vadd.f32 %v180, %v276
    %v278 = vpop.f32.mrb[0].mxu0
    %v279 = vadd.f32 %v182, %v278
    %280 = vmatprep.mubr.f32.mxu0 0.0
    %281 = vmatmul.mubr.f32.gmra.mrb[0].mxu0 %v204
    %v282 = vpop.f32.mrb[0].mxu0
    %v283 = vadd.f32 %v186, %v282
    %v284 = vpop.f32.mrb[0].mxu0
    %v285 = vadd.f32 %v188, %v284
    %286 = vmatprep.mubr.f32.mxu0 0.0
    %287 = vmatmul.mubr.f32.gmra.mrb[0].mxu0 %v206
    %v288 = vpop.f32.mrb[0].mxu0
    %v289 = vadd.f32 %v192, %v288
    %v290 = vpop.f32.mrb[0].mxu0
    %v291 = vadd.f32 %v194, %v290
    %292 = vmatprep.mubr.f32.mxu0 0.0
    %293 = vmatmul.mubr.f32.gmra.mrb[0].mxu0 %v208
    %v294 = vpop.f32.mrb[0].mxu0
    %v295 = vadd.f32 %v198, %v294
    %v296 = vpop.f32.mrb[0].mxu0
    %v297 = vadd.f32 %v200, %v296
    %298 = vdwg.mxu0
    %s299 = scalar_lea.vmem %s1, 384
    %v300 = vld [vmem:[%s299] sm:$0xff]
    %v301 = vld [vmem:[%s299 + $0x8] sm:$0xff]
    %v302 = vld [vmem:[%s299 + $0x10] sm:$0xff]
    %v303 = vld [vmem:[%s299 + $0x18] sm:$0xff]
    %v304 = vld [vmem:[%s299 + $0x20] sm:$0xff]
    %v305 = vld [vmem:[%s299 + $0x28] sm:$0xff]
    %v306 = vld [vmem:[%s299 + $0x30] sm:$0xff]
    %v307 = vld [vmem:[%s299 + $0x38] sm:$0xff]
    %v308 = vld [vmem:[%s299 + $0x40] sm:$0xff]
    %v309 = vld [vmem:[%s299 + $0x48] sm:$0xff]
    %v310 = vld [vmem:[%s299 + $0x50] sm:$0xff]
    %v311 = vld [vmem:[%s299 + $0x58] sm:$0xff]
    %v312 = vld [vmem:[%s299 + $0x60] sm:$0xff]
    %v313 = vld [vmem:[%s299 + $0x68] sm:$0xff]
    %v314 = vld [vmem:[%s299 + $0x70] sm:$0xff]
    %v315 = vld [vmem:[%s299 + $0x78] sm:$0xff]
    %v316 = vld [vmem:[%s299 + $0x80] sm:$0xff]
    %v317 = vld [vmem:[%s299 + $0x88] sm:$0xff]
    %v318 = vld [vmem:[%s299 + $0x90] sm:$0xff]
    %v319 = vld [vmem:[%s299 + $0x98] sm:$0xff]
    %v320 = vld [vmem:[%s299 + $0xa0] sm:$0xff]
    %v321 = vld [vmem:[%s299 + $0xa8] sm:$0xff]
    %v322 = vld [vmem:[%s299 + $0xb0] sm:$0xff]
    %v323 = vld [vmem:[%s299 + $0xb8] sm:$0xff]
    %vm324 = vcmask 1045504
    %v325 = vrot.slane %v39, 2
    %v326 = vrot.slane %v40, 2
    %v327 = vsel %vm324, %v325, %v326
    %v328 = vrot.slane %v41, 2
    %v329 = vsel %vm324, %v326, %v328
    %v330 = vrot.slane %v42, 2
    %v331 = vsel %vm324, %v328, %v330
    %v332 = vsel %vm104, %v327, 0
    %v334 = vsel %vm104, %v329, 0
    %v336 = vsel %vm104, %v331, 0
    %v338 = vsel %vm104, %v330, 0
    %340 = vmatprep.subr.mxu0 %v301
    %341 = vmatpush1.msra.mxu0 %v300
    %342 = vmatprep.subr.mxu0 %v303
    %343 = vmatpush1.msra.mxu0 %v302
    %344 = vmatprep.subr.mxu0 %v305
    %345 = vmatpush1.msra.mxu0 %v304
    %346 = vmatprep.subr.mxu0 %v307
    %347 = vmatpush1.msra.mxu0 %v306
    %348 = vmatprep.subr.mxu0 %v309
    %349 = vmatpush1.msra.mxu0 %v308
    %350 = vmatprep.subr.mxu0 %v311
    %351 = vmatpush1.msra.mxu0 %v310
    %352 = vmatprep.subr.mxu0 %v313
    %353 = vmatpush1.msra.mxu0 %v312
    %354 = vmatprep.subr.mxu0 %v315
    %355 = vmatpush1.msra.mxu0 %v314
    %356 = vmatprep.subr.mxu0 %v317
    %357 = vmatpush1.msra.mxu0 %v316
    %358 = vmatprep.subr.mxu0 %v319
    %359 = vmatpush1.msra.mxu0 %v318
    %360 = vmatprep.subr.mxu0 %v321
    %361 = vmatpush1.msra.mxu0 %v320
    %362 = vmatprep.subr.mxu0 %v323
    %363 = vmatpush1.msra.mxu0 %v322
    %364 = vmatprep.subr.mxu0 0.0
    %365 = vmatpush1.msra.mxu0 0.0
    %366 = vmatprep.subr.mxu0 0.0
    %367 = vmatpush1.msra.mxu0 0.0
    %368 = vmatprep.subr.mxu0 0.0
    %369 = vmatpush1.msra.mxu0 0.0
    %370 = vmatprep.subr.mxu0 0.0
    %371 = vmatpush1.msra.mxu0 0.0
    %372 = vmatprep.subr.mxu0 0.0
    %373 = vmatpush1.msra.mxu0 0.0
    %374 = vmatprep.subr.mxu0 0.0
    %375 = vmatpush1.msra.mxu0 0.0
    %376 = vmatprep.subr.mxu0 0.0
    %377 = vmatpush1.msra.mxu0 0.0
    %378 = vmatprep.subr.mxu0 0.0
    %379 = vmatpush1.msra.mxu0 0.0
    %380 = vmatprep.subr.mxu0 0.0
    %381 = vmatpush1.msra.mxu0 0.0
    %382 = vmatprep.subr.mxu0 0.0
    %383 = vmatpush1.msra.mxu0 0.0
    %384 = vmatprep.subr.mxu0 0.0
    %385 = vmatpush1.msra.mxu0 0.0
    %386 = vmatprep.subr.mxu0 0.0
    %387 = vmatpush1.msra.mxu0 0.0
    %388 = vmatprep.subr.mxu0 0.0
    %389 = vmatpush1.msra.mxu0 0.0
    %390 = vmatprep.subr.mxu0 0.0
    %391 = vmatpush1.msra.mxu0 0.0
    %392 = vmatprep.subr.mxu0 0.0
    %393 = vmatpush1.msra.mxu0 0.0
    %394 = vmatprep.subr.mxu0 0.0
    %395 = vmatpush1.msra.mxu0 0.0
    %396 = vmatprep.subr.mxu0 0.0
    %397 = vmatpush1.msra.mxu0 0.0
    %398 = vmatprep.subr.mxu0 0.0
    %399 = vmatpush1.msra.mxu0 0.0
    %400 = vmatprep.subr.mxu0 0.0
    %401 = vmatpush1.msra.mxu0 0.0
    %402 = vmatprep.subr.mxu0 0.0
    %403 = vmatpush1.msra.mxu0 0.0
    %404 = vmatprep.mubr.f32.mxu0 0.0
    %405 = vmatmul.mubr.f32.gmra.mrb[0].mxu0 %v332
    %v406 = vpop.f32.mrb[0].mxu0
    %v407 = vadd.f32 0.0, %v406
    %v408 = vpop.f32.mrb[0].mxu0
    %v409 = vadd.f32 0.0, %v408
    %410 = vmatprep.mubr.f32.mxu0 0.0
    %411 = vmatmul.mubr.f32.gmra.mrb[0].mxu0 %v334
    %v412 = vpop.f32.mrb[0].mxu0
    %v413 = vadd.f32 0.0, %v412
    %v414 = vpop.f32.mrb[0].mxu0
    %v415 = vadd.f32 0.0, %v414
    %416 = vmatprep.mubr.f32.mxu0 0.0
    %417 = vmatmul.mubr.f32.gmra.mrb[0].mxu0 %v336
    %v418 = vpop.f32.mrb[0].mxu0
    %v419 = vadd.f32 0.0, %v418
    %v420 = vpop.f32.mrb[0].mxu0
    %v421 = vadd.f32 0.0, %v420
    %422 = vmatprep.mubr.f32.mxu0 0.0
    %423 = vmatmul.mubr.f32.gmra.mrb[0].mxu0 %v338
    %v424 = vpop.f32.mrb[0].mxu0
    %v425 = vadd.f32 0.0, %v424
    %v426 = vpop.f32.mrb[0].mxu0
    %v427 = vadd.f32 0.0, %v426
    %428 = vdwg.mxu0
    %v429 = vadd.f32 %v277, %v407
    %v430 = vadd.f32 %v279, %v409
    %v431 = vadd.f32 %v283, %v413
    %v432 = vadd.f32 %v285, %v415
    %v433 = vadd.f32 %v289, %v419
    %v434 = vadd.f32 %v291, %v421
    %v435 = vadd.f32 %v295, %v425
    %v436 = vadd.f32 %v297, %v427
    %s437 = scalar_lea.vmem %s1, 576
    %v438 = vld [vmem:[%s437] sm:$0xff]
    %v439 = vld [vmem:[%s437 + $0x8] sm:$0xff]
    %v440 = vld [vmem:[%s437 + $0x10] sm:$0xff]
    %v441 = vld [vmem:[%s437 + $0x18] sm:$0xff]
    %v442 = vld [vmem:[%s437 + $0x20] sm:$0xff]
    %v443 = vld [vmem:[%s437 + $0x28] sm:$0xff]
    %v444 = vld [vmem:[%s437 + $0x30] sm:$0xff]
    %v445 = vld [vmem:[%s437 + $0x38] sm:$0xff]
    %v446 = vld [vmem:[%s437 + $0x40] sm:$0xff]
    %v447 = vld [vmem:[%s437 + $0x48] sm:$0xff]
    %v448 = vld [vmem:[%s437 + $0x50] sm:$0xff]
    %v449 = vld [vmem:[%s437 + $0x58] sm:$0xff]
    %v450 = vld [vmem:[%s437 + $0x60] sm:$0xff]
    %v451 = vld [vmem:[%s437 + $0x68] sm:$0xff]
    %v452 = vld [vmem:[%s437 + $0x70] sm:$0xff]
    %v453 = vld [vmem:[%s437 + $0x78] sm:$0xff]
    %v454 = vld [vmem:[%s437 + $0x80] sm:$0xff]
    %v455 = vld [vmem:[%s437 + $0x88] sm:$0xff]
    %v456 = vld [vmem:[%s437 + $0x90] sm:$0xff]
    %v457 = vld [vmem:[%s437 + $0x98] sm:$0xff]
    %v458 = vld [vmem:[%s437 + $0xa0] sm:$0xff]
    %v459 = vld [vmem:[%s437 + $0xa8] sm:$0xff]
    %v460 = vld [vmem:[%s437 + $0xb0] sm:$0xff]
    %v461 = vld [vmem:[%s437 + $0xb8] sm:$0xff]
    %vm462 = vcmask 1044480
    %v463 = vrot.slane %v39, 3
    %v464 = vrot.slane %v40, 3
    %v465 = vsel %vm462, %v463, %v464
    %v466 = vrot.slane %v41, 3
    %v467 = vsel %vm462, %v464, %v466
    %v468 = vrot.slane %v42, 3
    %v469 = vsel %vm462, %v466, %v468
    %v470 = vsel %vm104, %v465, 0
    %v472 = vsel %vm104, %v467, 0
    %v474 = vsel %vm104, %v469, 0
    %v476 = vsel %vm104, %v468, 0
    %478 = vmatprep.subr.mxu0 %v439
    %479 = vmatpush1.msra.mxu0 %v438
    %480 = vmatprep.subr.mxu0 %v441
    %481 = vmatpush1.msra.mxu0 %v440
    %482 = vmatprep.subr.mxu0 %v443
    %483 = vmatpush1.msra.mxu0 %v442
    %484 = vmatprep.subr.mxu0 %v445
    %485 = vmatpush1.msra.mxu0 %v444
    %486 = vmatprep.subr.mxu0 %v447
    %487 = vmatpush1.msra.mxu0 %v446
    %488 = vmatprep.subr.mxu0 %v449
    %489 = vmatpush1.msra.mxu0 %v448
    %490 = vmatprep.subr.mxu0 %v451
    %491 = vmatpush1.msra.mxu0 %v450
    %492 = vmatprep.subr.mxu0 %v453
    %493 = vmatpush1.msra.mxu0 %v452
    %494 = vmatprep.subr.mxu0 %v455
    %495 = vmatpush1.msra.mxu0 %v454
    %496 = vmatprep.subr.mxu0 %v457
    %497 = vmatpush1.msra.mxu0 %v456
    %498 = vmatprep.subr.mxu0 %v459
    %499 = vmatpush1.msra.mxu0 %v458
    %500 = vmatprep.subr.mxu0 %v461
    %501 = vmatpush1.msra.mxu0 %v460
    %502 = vmatprep.subr.mxu0 0.0
    %503 = vmatpush1.msra.mxu0 0.0
    %504 = vmatprep.subr.mxu0 0.0
    %505 = vmatpush1.msra.mxu0 0.0
    %506 = vmatprep.subr.mxu0 0.0
    %507 = vmatpush1.msra.mxu0 0.0
    %508 = vmatprep.subr.mxu0 0.0
    %509 = vmatpush1.msra.mxu0 0.0
    %510 = vmatprep.subr.mxu0 0.0
    %511 = vmatpush1.msra.mxu0 0.0
    %512 = vmatprep.subr.mxu0 0.0
    %513 = vmatpush1.msra.mxu0 0.0
    %514 = vmatprep.subr.mxu0 0.0
    %515 = vmatpush1.msra.mxu0 0.0
    %516 = vmatprep.subr.mxu0 0.0
    %517 = vmatpush1.msra.mxu0 0.0
    %518 = vmatprep.subr.mxu0 0.0
    %519 = vmatpush1.msra.mxu0 0.0
    %520 = vmatprep.subr.mxu0 0.0
    %521 = vmatpush1.msra.mxu0 0.0
    %522 = vmatprep.subr.mxu0 0.0
    %523 = vmatpush1.msra.mxu0 0.0
    %524 = vmatprep.subr.mxu0 0.0
    %525 = vmatpush1.msra.mxu0 0.0
    %526 = vmatprep.subr.mxu0 0.0
    %527 = vmatpush1.msra.mxu0 0.0
    %528 = vmatprep.subr.mxu0 0.0
    %529 = vmatpush1.msra.mxu0 0.0
    %530 = vmatprep.subr.mxu0 0.0
    %531 = vmatpush1.msra.mxu0 0.0
    %532 = vmatprep.subr.mxu0 0.0
    %533 = vmatpush1.msra.mxu0 0.0
    %534 = vmatprep.subr.mxu0 0.0
    %535 = vmatpush1.msra.mxu0 0.0
    %536 = vmatprep.subr.mxu0 0.0
    %537 = vmatpush1.msra.mxu0 0.0
    %538 = vmatprep.subr.mxu0 0.0
    %539 = vmatpush1.msra.mxu0 0.0
    %540 = vmatprep.subr.mxu0 0.0
    %541 = vmatpush1.msra.mxu0 0.0
    %542 = vmatprep.mubr.f32.mxu0 0.0
    %543 = vmatmul.mubr.f32.gmra.mrb[0].mxu0 %v470
    %v544 = vpop.f32.mrb[0].mxu0
    %v545 = vadd.f32 0.0, %v544
    %v546 = vpop.f32.mrb[0].mxu0
    %v547 = vadd.f32 0.0, %v546
    %548 = vmatprep.mubr.f32.mxu0 0.0
    %549 = vmatmul.mubr.f32.gmra.mrb[0].mxu0 %v472
    %v550 = vpop.f32.mrb[0].mxu0
    %v551 = vadd.f32 0.0, %v550
    %v552 = vpop.f32.mrb[0].mxu0
    %v553 = vadd.f32 0.0, %v552
    %554 = vmatprep.mubr.f32.mxu0 0.0
    %555 = vmatmul.mubr.f32.gmra.mrb[0].mxu0 %v474
    %v556 = vpop.f32.mrb[0].mxu0
    %v557 = vadd.f32 0.0, %v556
    %v558 = vpop.f32.mrb[0].mxu0
    %v559 = vadd.f32 0.0, %v558
    %560 = vmatprep.mubr.f32.mxu0 0.0
    %561 = vmatmul.mubr.f32.gmra.mrb[0].mxu0 %v476
    %v562 = vpop.f32.mrb[0].mxu0
    %v563 = vadd.f32 0.0, %v562
    %v564 = vpop.f32.mrb[0].mxu0
    %v565 = vadd.f32 0.0, %v564
    %566 = vdwg.mxu0
    %v567 = vadd.f32 %v429, %v545
    %v568 = vadd.f32 %v430, %v547
    %v569 = vadd.f32 %v431, %v551
    %v570 = vadd.f32 %v432, %v553
    %v571 = vadd.f32 %v433, %v557
    %v572 = vadd.f32 %v434, %v559
    %v573 = vadd.f32 %v435, %v563
    %v574 = vadd.f32 %v436, %v565
    %s575 = scalar_lea.vmem %s1, 768
    %v576 = vld [vmem:[%s575] sm:$0xff]
    %v577 = vld [vmem:[%s575 + $0x8] sm:$0xff]
    %v578 = vld [vmem:[%s575 + $0x10] sm:$0xff]
    %v579 = vld [vmem:[%s575 + $0x18] sm:$0xff]
    %v580 = vld [vmem:[%s575 + $0x20] sm:$0xff]
    %v581 = vld [vmem:[%s575 + $0x28] sm:$0xff]
    %v582 = vld [vmem:[%s575 + $0x30] sm:$0xff]
    %v583 = vld [vmem:[%s575 + $0x38] sm:$0xff]
    %v584 = vld [vmem:[%s575 + $0x40] sm:$0xff]
    %v585 = vld [vmem:[%s575 + $0x48] sm:$0xff]
    %v586 = vld [vmem:[%s575 + $0x50] sm:$0xff]
    %v587 = vld [vmem:[%s575 + $0x58] sm:$0xff]
    %v588 = vld [vmem:[%s575 + $0x60] sm:$0xff]
    %v589 = vld [vmem:[%s575 + $0x68] sm:$0xff]
    %v590 = vld [vmem:[%s575 + $0x70] sm:$0xff]
    %v591 = vld [vmem:[%s575 + $0x78] sm:$0xff]
    %v592 = vld [vmem:[%s575 + $0x80] sm:$0xff]
    %v593 = vld [vmem:[%s575 + $0x88] sm:$0xff]
    %v594 = vld [vmem:[%s575 + $0x90] sm:$0xff]
    %v595 = vld [vmem:[%s575 + $0x98] sm:$0xff]
    %v596 = vld [vmem:[%s575 + $0xa0] sm:$0xff]
    %v597 = vld [vmem:[%s575 + $0xa8] sm:$0xff]
    %v598 = vld [vmem:[%s575 + $0xb0] sm:$0xff]
    %v599 = vld [vmem:[%s575 + $0xb8] sm:$0xff]
    %vm600 = vcmask 1043456
    %v601 = vrot.slane %v39, 4
    %v602 = vrot.slane %v40, 4
    %v603 = vsel %vm600, %v601, %v602
    %v604 = vrot.slane %v41, 4
    %v605 = vsel %vm600, %v602, %v604
    %v606 = vrot.slane %v42, 4
    %v607 = vsel %vm600, %v604, %v606
    %v608 = vsel %vm104, %v603, 0
    %v610 = vsel %vm104, %v605, 0
    %v612 = vsel %vm104, %v607, 0
    %v614 = vsel %vm104, %v606, 0
    %616 = vmatprep.subr.mxu0 %v577
    %617 = vmatpush1.msra.mxu0 %v576
    %618 = vmatprep.subr.mxu0 %v579
    %619 = vmatpush1.msra.mxu0 %v578
    %620 = vmatprep.subr.mxu0 %v581
    %621 = vmatpush1.msra.mxu0 %v580
    %622 = vmatprep.subr.mxu0 %v583
    %623 = vmatpush1.msra.mxu0 %v582
    %624 = vmatprep.subr.mxu0 %v585
    %625 = vmatpush1.msra.mxu0 %v584
    %626 = vmatprep.subr.mxu0 %v587
    %627 = vmatpush1.msra.mxu0 %v586
    %628 = vmatprep.subr.mxu0 %v589
    %629 = vmatpush1.msra.mxu0 %v588
    %630 = vmatprep.subr.mxu0 %v591
    %631 = vmatpush1.msra.mxu0 %v590
    %632 = vmatprep.subr.mxu0 %v593
    %633 = vmatpush1.msra.mxu0 %v592
    %634 = vmatprep.subr.mxu0 %v595
    %635 = vmatpush1.msra.mxu0 %v594
    %636 = vmatprep.subr.mxu0 %v597
    %637 = vmatpush1.msra.mxu0 %v596
    %638 = vmatprep.subr.mxu0 %v599
    %639 = vmatpush1.msra.mxu0 %v598
    %640 = vmatprep.subr.mxu0 0.0
    %641 = vmatpush1.msra.mxu0 0.0
    %642 = vmatprep.subr.mxu0 0.0
    %643 = vmatpush1.msra.mxu0 0.0
    %644 = vmatprep.subr.mxu0 0.0
    %645 = vmatpush1.msra.mxu0 0.0
    %646 = vmatprep.subr.mxu0 0.0
    %647 = vmatpush1.msra.mxu0 0.0
    %648 = vmatprep.subr.mxu0 0.0
    %649 = vmatpush1.msra.mxu0 0.0
    %650 = vmatprep.subr.mxu0 0.0
    %651 = vmatpush1.msra.mxu0 0.0
    %652 = vmatprep.subr.mxu0 0.0
    %653 = vmatpush1.msra.mxu0 0.0
    %654 = vmatprep.subr.mxu0 0.0
    %655 = vmatpush1.msra.mxu0 0.0
    %656 = vmatprep.subr.mxu0 0.0
    %657 = vmatpush1.msra.mxu0 0.0
    %658 = vmatprep.subr.mxu0 0.0
    %659 = vmatpush1.msra.mxu0 0.0
    %660 = vmatprep.subr.mxu0 0.0
    %661 = vmatpush1.msra.mxu0 0.0
    %662 = vmatprep.subr.mxu0 0.0
    %663 = vmatpush1.msra.mxu0 0.0
    %664 = vmatprep.subr.mxu0 0.0
    %665 = vmatpush1.msra.mxu0 0.0
    %666 = vmatprep.subr.mxu0 0.0
    %667 = vmatpush1.msra.mxu0 0.0
    %668 = vmatprep.subr.mxu0 0.0
    %669 = vmatpush1.msra.mxu0 0.0
    %670 = vmatprep.subr.mxu0 0.0
    %671 = vmatpush1.msra.mxu0 0.0
    %672 = vmatprep.subr.mxu0 0.0
    %673 = vmatpush1.msra.mxu0 0.0
    %674 = vmatprep.subr.mxu0 0.0
    %675 = vmatpush1.msra.mxu0 0.0
    %676 = vmatprep.subr.mxu0 0.0
    %677 = vmatpush1.msra.mxu0 0.0
    %678 = vmatprep.subr.mxu0 0.0
    %679 = vmatpush1.msra.mxu0 0.0
    %680 = vmatprep.mubr.f32.mxu0 0.0
    %681 = vmatmul.mubr.f32.gmra.mrb[0].mxu0 %v608
    %v682 = vpop.f32.mrb[0].mxu0
    %v683 = vadd.f32 0.0, %v682
    %v684 = vpop.f32.mrb[0].mxu0
    %v685 = vadd.f32 0.0, %v684
    %686 = vmatprep.mubr.f32.mxu0 0.0
    %687 = vmatmul.mubr.f32.gmra.mrb[0].mxu0 %v610
    %v688 = vpop.f32.mrb[0].mxu0
    %v689 = vadd.f32 0.0, %v688
    %v690 = vpop.f32.mrb[0].mxu0
    %v691 = vadd.f32 0.0, %v690
    %692 = vmatprep.mubr.f32.mxu0 0.0
    %693 = vmatmul.mubr.f32.gmra.mrb[0].mxu0 %v612
    %v694 = vpop.f32.mrb[0].mxu0
    %v695 = vadd.f32 0.0, %v694
    %v696 = vpop.f32.mrb[0].mxu0
    %v697 = vadd.f32 0.0, %v696
    %698 = vmatprep.mubr.f32.mxu0 0.0
    %699 = vmatmul.mubr.f32.gmra.mrb[0].mxu0 %v614
    %v700 = vpop.f32.mrb[0].mxu0
    %v701 = vadd.f32 0.0, %v700
    %v702 = vpop.f32.mrb[0].mxu0
    %v703 = vadd.f32 0.0, %v702
    %704 = vdwg.mxu0
    %v705 = vadd.f32 %v567, %v683
    %v706 = vadd.f32 %v568, %v685
    %v707 = vadd.f32 %v569, %v689
    %v708 = vadd.f32 %v570, %v691
    %v709 = vadd.f32 %v571, %v695
    %v710 = vadd.f32 %v572, %v697
    %v711 = vadd.f32 %v573, %v701
    %v712 = vadd.f32 %v574, %v703
    %v713 = vld [vmem:[%s2] sm:$0x3]
    %v715 = vlaneseq
    %v716 = vshrl.u32 %v715, 7
    %v717 = vsub.s32 0, %v716
    %v718 = vrot.slane %v713, %v717
    %v719 = vlaneseq
    %v720 = vshrl.u32 %v719, 7
    %v721 = vsub.s32 1, %v720
    %v722 = vrot.slane %v713, %v721
    %v725 = vadd.f32 %v705, %v718
    %v726 = vadd.f32 %v706, %v722
    %v727 = vadd.f32 %v707, %v718
    %v728 = vadd.f32 %v708, %v722
    %v729 = vadd.f32 %v709, %v718
    %v730 = vadd.f32 %v710, %v722
    %v731 = vadd.f32 %v711, %v718
    %v732 = vadd.f32 %v712, %v722
    %v733 = vtanh.pop %v725
    %v734 = vtanh.pop %v726
    %v735 = vtanh.pop %v727
    %v736 = vtanh.pop %v728
    %v737 = vtanh.pop %v729
    %v738 = vtanh.pop %v730
    %v739 = vtanh.pop %v731
    %v740 = vtanh.pop %v732
    %v749 = vrot.slane %v733, 1
    %v750 = vrot.slane %v735, 1
    %v751 = vsel %vm96, %v749, %v750
    %v752 = vrot.slane %v734, 1
    %v753 = vrot.slane %v736, 1
    %v754 = vsel %vm96, %v752, %v753
    %v755 = vrot.slane %v737, 1
    %v756 = vsel %vm96, %v750, %v755
    %v757 = vrot.slane %v738, 1
    %v758 = vsel %vm96, %v753, %v757
    %v759 = vrot.slane %v739, 1
    %v760 = vsel %vm96, %v755, %v759
    %v761 = vrot.slane %v740, 1
    %v762 = vsel %vm96, %v757, %v761
    %v771 = vmax.f32 %v733, %v751
    %v772 = vmax.f32 %v734, %v754
    %v773 = vmax.f32 %v735, %v756
    %v774 = vmax.f32 %v736, %v758
    %v775 = vmax.f32 %v737, %v760
    %v776 = vmax.f32 %v738, %v762
    %v777 = vmax.f32 %v739, %v759
    %v778 = vmax.f32 %v740, %v761
    %v781 = vcombine.low %v771, %v772
    %v783 = vunpack.c.l.s4 1966171168
    %v784 = vunpack.c.0.s8 %v783
    %v785 = vlaneseq
    %v786 = vshrl.u32 %v785, 7
    %v787 = vsub.s32 %v784, %v786
    %v788 = vrot.slane %v781, %v787
    %v790 = vunpack.c.l.s4 1966171168
    %v791 = vunpack.c.0.s8 %v790
    %v792 = vlaneseq
    %v793 = vshrl.u32 %v792, 7
    %v794 = vsub.s32 %v791, %v793
    %v795 = vrot.slane %v788, %v794
    %v797 = vlaneseq
    %vm798 = vcmp.ge.s32.totalorder %v797, 0
    %vm799 = vcmp.lt.s32.totalorder %v797, 168
    %vm800 = vmand %vm798, %vm799
    %801 = vst.msk [vmem:[#allocation2] ss:$8 sm:$0x3] %vm800, %v795
    %802 = vst.msk [vmem:[#allocation2] ss:$8 sm:$0x0] %vm800, %v795
    %v803 = vcombine.high %v795, %v795
    %s805 = scalar_lea.vmem [#allocation2], 1
    %806 = vst.msk [vmem:[%s805] ss:$8 sm:$0x3] %vm800, %v803
    %807 = vst.msk [vmem:[%s805] ss:$8 sm:$0x0] %vm800, %v803
    %v808 = vcombine.high %v771, %v772
    %v810 = vunpack.c.l.s4 1966171168
    %v811 = vunpack.c.0.s8 %v810
    %v812 = vlaneseq
    %v813 = vshrl.u32 %v812, 7
    %v814 = vsub.s32 %v811, %v813
    %v815 = vrot.slane %v808, %v814
    %v817 = vunpack.c.l.s4 1966171168
    %v818 = vunpack.c.0.s8 %v817
    %v819 = vlaneseq
    %v820 = vshrl.u32 %v819, 7
    %v821 = vsub.s32 %v818, %v820
    %v822 = vrot.slane %v815, %v821
    %s824 = scalar_lea.vmem [#allocation2], 2
    %825 = vst.msk [vmem:[%s824] ss:$8 sm:$0x3] %vm800, %v822
    %826 = vst.msk [vmem:[%s824] ss:$8 sm:$0x0] %vm800, %v822
    %v827 = vcombine.high %v822, %v822
    %s829 = scalar_lea.vmem [#allocation2], 3
    %830 = vst.msk [vmem:[%s829] ss:$8 sm:$0x3] %vm800, %v827
    %831 = vst.msk [vmem:[%s829] ss:$8 sm:$0x0] %vm800, %v827
    %v834 = vcombine.low %v773, %v774
    %v836 = vunpack.c.l.s4 1966171168
    %v837 = vunpack.c.0.s8 %v836
    %v838 = vlaneseq
    %v839 = vshrl.u32 %v838, 7
    %v840 = vsub.s32 %v837, %v839
    %v841 = vrot.slane %v834, %v840
    %v843 = vunpack.c.l.s4 1966171168
    %v844 = vunpack.c.0.s8 %v843
    %v845 = vlaneseq
    %v846 = vshrl.u32 %v845, 7
    %v847 = vsub.s32 %v844, %v846
    %v848 = vrot.slane %v841, %v847
    %s850 = scalar_lea.vmem [#allocation2], 4
    %851 = vst.msk [vmem:[%s850] ss:$8 sm:$0x3] %vm800, %v848
    %852 = vst.msk [vmem:[%s850] ss:$8 sm:$0x0] %vm800, %v848
    %v853 = vcombine.high %v848, %v848
    %s855 = scalar_lea.vmem [#allocation2], 5
    %856 = vst.msk [vmem:[%s855] ss:$8 sm:$0x3] %vm800, %v853
    %857 = vst.msk [vmem:[%s855] ss:$8 sm:$0x0] %vm800, %v853
    %v858 = vcombine.high %v773, %v774
    %v860 = vunpack.c.l.s4 1966171168
    %v861 = vunpack.c.0.s8 %v860
    %v862 = vlaneseq
    %v863 = vshrl.u32 %v862, 7
    %v864 = vsub.s32 %v861, %v863
    %v865 = vrot.slane %v858, %v864
    %v867 = vunpack.c.l.s4 1966171168
    %v868 = vunpack.c.0.s8 %v867
    %v869 = vlaneseq
    %v870 = vshrl.u32 %v869, 7
    %v871 = vsub.s32 %v868, %v870
    %v872 = vrot.slane %v865, %v871
    %s874 = scalar_lea.vmem [#allocation2], 6
    %875 = vst.msk [vmem:[%s874] ss:$8 sm:$0x3] %vm800, %v872
    %876 = vst.msk [vmem:[%s874] ss:$8 sm:$0x0] %vm800, %v872
    %v877 = vcombine.high %v872, %v872
    %s879 = scalar_lea.vmem [#allocation2], 7
    %880 = vst.msk [vmem:[%s879] ss:$8 sm:$0x3] %vm800, %v877
    %881 = vst.msk [vmem:[%s879] ss:$8 sm:$0x0] %vm800, %v877
    %v884 = vcombine.low %v775, %v776
    %v886 = vunpack.c.l.s4 1966171168
    %v887 = vunpack.c.0.s8 %v886
    %v888 = vlaneseq
    %v889 = vshrl.u32 %v888, 7
    %v890 = vsub.s32 %v887, %v889
    %v891 = vrot.slane %v884, %v890
    %v893 = vunpack.c.l.s4 1966171168
    %v894 = vunpack.c.0.s8 %v893
    %v895 = vlaneseq
    %v896 = vshrl.u32 %v895, 7
    %v897 = vsub.s32 %v894, %v896
    %v898 = vrot.slane %v891, %v897
    %s900 = scalar_lea.vmem [#allocation2], 16
    %901 = vst.msk [vmem:[%s900] ss:$8 sm:$0x3] %vm800, %v898
    %902 = vst.msk [vmem:[%s900] ss:$8 sm:$0x0] %vm800, %v898
    %v903 = vcombine.high %v898, %v898
    %s905 = scalar_lea.vmem [#allocation2], 17
    %906 = vst.msk [vmem:[%s905] ss:$8 sm:$0x3] %vm800, %v903
    %907 = vst.msk [vmem:[%s905] ss:$8 sm:$0x0] %vm800, %v903
    %v908 = vcombine.high %v775, %v776
    %v910 = vunpack.c.l.s4 1966171168
    %v911 = vunpack.c.0.s8 %v910
    %v912 = vlaneseq
    %v913 = vshrl.u32 %v912, 7
    %v914 = vsub.s32 %v911, %v913
    %v915 = vrot.slane %v908, %v914
    %v917 = vunpack.c.l.s4 1966171168
    %v918 = vunpack.c.0.s8 %v917
    %v919 = vlaneseq
    %v920 = vshrl.u32 %v919, 7
    %v921 = vsub.s32 %v918, %v920
    %v922 = vrot.slane %v915, %v921
    %s924 = scalar_lea.vmem [#allocation2], 18
    %925 = vst.msk [vmem:[%s924] ss:$8 sm:$0x3] %vm800, %v922
    %926 = vst.msk [vmem:[%s924] ss:$8 sm:$0x0] %vm800, %v922
    %v927 = vcombine.high %v922, %v922
    %s929 = scalar_lea.vmem [#allocation2], 19
    %930 = vst.msk [vmem:[%s929] ss:$8 sm:$0x3] %vm800, %v927
    %931 = vst.msk [vmem:[%s929] ss:$8 sm:$0x0] %vm800, %v927
    %v934 = vcombine.low %v777, %v778
    %v936 = vunpack.c.l.s4 1966171168
    %v937 = vunpack.c.0.s8 %v936
    %v938 = vlaneseq
    %v939 = vshrl.u32 %v938, 7
    %v940 = vsub.s32 %v937, %v939
    %v941 = vrot.slane %v934, %v940
    %v943 = vunpack.c.l.s4 1966171168
    %v944 = vunpack.c.0.s8 %v943
    %v945 = vlaneseq
    %v946 = vshrl.u32 %v945, 7
    %v947 = vsub.s32 %v944, %v946
    %v948 = vrot.slane %v941, %v947
    %s950 = scalar_lea.vmem [#allocation2], 20
    %951 = vst.msk [vmem:[%s950] ss:$8 sm:$0x3] %vm800, %v948
    %952 = vst.msk [vmem:[%s950] ss:$8 sm:$0x0] %vm800, %v948
    %v953 = vcombine.high %v948, %v948
    %s955 = scalar_lea.vmem [#allocation2], 21
    %956 = vst.msk [vmem:[%s955] ss:$8 sm:$0x3] %vm800, %v953
    %957 = vst.msk [vmem:[%s955] ss:$8 sm:$0x0] %vm800, %v953
    %v958 = vld [vmem:[#allocation2] sm:$0xff]
    %v959 = vld [vmem:[#allocation2 + $0x8] sm:$0xff]
    %v960 = vld [vmem:[#allocation2 + $0x10] sm:$0x3f]
    %v961 = vld [vmem:[#allocation2 + $0x18] sm:$0x3f]
    %966 = vrot.lane.b32.xlu0 %v958, 122
    %v967 = vpop.permute.xlu0 %966
    %968 = vrot.lane.b32.xlu0 %v959, 122
    %v969 = vpop.permute.xlu0 %968
    %970 = vrot.lane.b32.xlu0 %v960, 122
    %v971 = vpop.permute.xlu0 %970
    %972 = vrot.lane.b32.xlu0 %v961, 122
    %v973 = vpop.permute.xlu0 %972
    %vm974 = vcmask 998400
    %v975 = vsel %vm974, %v967, %v969
    %v976 = vsel %vm974, %v971, %v973
    %v981 = vmax.f32 %v958, %v975
    %v982 = vmax.f32 %v959, %v969
    %v983 = vmax.f32 %v960, %v976
    %v984 = vmax.f32 %v961, %v973
    %vm985 = vcmask 48128
    %986 = vst.msk [vmem:[#allocation3] sm:$0xff] %vm985, %v981
    %vm987 = vcmask 46080
    %988 = vst.msk [vmem:[#allocation3 + $0x8] sm:$0x3f] %vm987, %v983
    %991 = vrot.lane.b32.xlu0 %v981, 122
    %v992 = vpop.permute.xlu0 %991
    %993 = vrot.lane.b32.xlu0 %v983, 122
    %v994 = vpop.permute.xlu0 %993
    %vm997 = vcmask 97328
    %998 = vst.msk [vmem:[#allocation3] sm:$0xff] %vm997, %v992
    %vm999 = vcmask 95280
    %1000 = vst.msk [vmem:[#allocation3 + $0x8] sm:$0x3f] %vm999, %v994
    %1001 = vrot.lane.b32.xlu0 %v981, 116
    %v1002 = vpop.permute.xlu0 %1001
    %1003 = vrot.lane.b32.xlu0 %v983, 116
    %v1004 = vpop.permute.xlu0 %1003
    %vm1007 = vcmask 146528
    %1008 = vst.msk [vmem:[#allocation3] sm:$0xff] %vm1007, %v1002
    %vm1009 = vcmask 144480
    %1010 = vst.msk [vmem:[#allocation3 + $0x8] sm:$0x3f] %vm1009, %v1004
    %1011 = vrot.lane.b32.xlu0 %v981, 110
    %v1012 = vpop.permute.xlu0 %1011
    %1013 = vrot.lane.b32.xlu0 %v983, 110
    %v1014 = vpop.permute.xlu0 %1013
    %vm1017 = vcmask 195728
    %1018 = vst.msk [vmem:[#allocation3] sm:$0xff] %vm1017, %v1012
    %vm1019 = vcmask 193680
    %1020 = vst.msk [vmem:[#allocation3 + $0x8] sm:$0x3f] %vm1019, %v1014
    %1021 = vrot.lane.b32.xlu0 %v981, 104
    %v1022 = vpop.permute.xlu0 %1021
    %1023 = vrot.lane.b32.xlu0 %v983, 104
    %v1024 = vpop.permute.xlu0 %1023
    %vm1027 = vcmask 244928
    %1028 = vst.msk [vmem:[#allocation3] sm:$0xff] %vm1027, %v1022
    %vm1029 = vcmask 242880
    %1030 = vst.msk [vmem:[#allocation3 + $0x8] sm:$0x3f] %vm1029, %v1024
    %1031 = vrot.lane.b32.xlu0 %v981, 98
    %v1032 = vpop.permute.xlu0 %1031
    %1033 = vrot.lane.b32.xlu0 %v983, 98
    %v1034 = vpop.permute.xlu0 %1033
    %vm1037 = vcmask 294128
    %1038 = vst.msk [vmem:[#allocation3] sm:$0xff] %vm1037, %v1032
    %vm1039 = vcmask 292080
    %1040 = vst.msk [vmem:[#allocation3 + $0x8] sm:$0x3f] %vm1039, %v1034
    %1041 = vrot.lane.b32.xlu0 %v981, 92
    %v1042 = vpop.permute.xlu0 %1041
    %1043 = vrot.lane.b32.xlu0 %v983, 92
    %v1044 = vpop.permute.xlu0 %1043
    %vm1047 = vcmask 343328
    %1048 = vst.msk [vmem:[#allocation3] sm:$0xff] %vm1047, %v1042
    %vm1049 = vcmask 341280
    %1050 = vst.msk [vmem:[#allocation3 + $0x8] sm:$0x3f] %vm1049, %v1044
    %1051 = vrot.lane.b32.xlu0 %v981, 86
    %v1052 = vpop.permute.xlu0 %1051
    %1053 = vrot.lane.b32.xlu0 %v983, 86
    %v1054 = vpop.permute.xlu0 %1053
    %vm1057 = vcmask 392528
    %1058 = vst.msk [vmem:[#allocation3] sm:$0xff] %vm1057, %v1052
    %vm1059 = vcmask 390480
    %1060 = vst.msk [vmem:[#allocation3 + $0x8] sm:$0x3f] %vm1059, %v1054
    %1061 = vrot.lane.b32.xlu0 %v981, 80
    %v1062 = vpop.permute.xlu0 %1061
    %1063 = vrot.lane.b32.xlu0 %v983, 80
    %v1064 = vpop.permute.xlu0 %1063
    %vm1067 = vcmask 441728
    %1068 = vst.msk [vmem:[#allocation3] sm:$0xff] %vm1067, %v1062
    %vm1069 = vcmask 439680
    %1070 = vst.msk [vmem:[#allocation3 + $0x8] sm:$0x3f] %vm1069, %v1064
    %1071 = vrot.lane.b32.xlu0 %v981, 74
    %v1072 = vpop.permute.xlu0 %1071
    %1073 = vrot.lane.b32.xlu0 %v983, 74
    %v1074 = vpop.permute.xlu0 %1073
    %vm1077 = vcmask 490928
    %1078 = vst.msk [vmem:[#allocation3] sm:$0xff] %vm1077, %v1072
    %vm1079 = vcmask 488880
    %1080 = vst.msk [vmem:[#allocation3 + $0x8] sm:$0x3f] %vm1079, %v1074
    %1081 = vrot.lane.b32.xlu0 %v981, 68
    %v1082 = vpop.permute.xlu0 %1081
    %1083 = vrot.lane.b32.xlu0 %v983, 68
    %v1084 = vpop.permute.xlu0 %1083
    %vm1087 = vcmask 540128
    %1088 = vst.msk [vmem:[#allocation3] sm:$0xff] %vm1087, %v1082
    %vm1089 = vcmask 538080
    %1090 = vst.msk [vmem:[#allocation3 + $0x8] sm:$0x3f] %vm1089, %v1084
    %1093 = vrot.lane.b32.xlu0 %v982, 62
    %v1094 = vpop.permute.xlu0 %1093
    %1095 = vrot.lane.b32.xlu0 %v984, 62
    %v1096 = vpop.permute.xlu0 %1095
    %vm1099 = vcmask 589328
    %1100 = vst.msk [vmem:[#allocation3] sm:$0xff] %vm1099, %v1094
    %vm1101 = vcmask 587280
    %1102 = vst.msk [vmem:[#allocation3 + $0x8] sm:$0x3f] %vm1101, %v1096
    %1103 = vrot.lane.b32.xlu0 %v982, 56
    %v1104 = vpop.permute.xlu0 %1103
    %1105 = vrot.lane.b32.xlu0 %v984, 56
    %v1106 = vpop.permute.xlu0 %1105
    %vm1109 = vcmask 638528
    %1110 = vst.msk [vmem:[#allocation3] sm:$0xff] %vm1109, %v1104
    %vm1111 = vcmask 636480
    %1112 = vst.msk [vmem:[#allocation3 + $0x8] sm:$0x3f] %vm1111, %v1106
    %1113 = vrot.lane.b32.xlu0 %v982, 50
    %v1114 = vpop.permute.xlu0 %1113
    %1115 = vrot.lane.b32.xlu0 %v984, 50
    %v1116 = vpop.permute.xlu0 %1115
    %vm1119 = vcmask 687728
    %1120 = vst.msk [vmem:[#allocation3] sm:$0xff] %vm1119, %v1114
    %vm1121 = vcmask 685680
    %1122 = vst.msk [vmem:[#allocation3 + $0x8] sm:$0x3f] %vm1121, %v1116
    %v1123 = vld [vmem:[#allocation3] sm:$0xff]
    %v1124 = vld [vmem:[#allocation3 + $0x8] sm:$0x3f]
    %v1125 = vld [vmem:[%s3] sm:$0xff]
    %v1126 = vld [vmem:[%s3 + $0x8] sm:$0xff]
    %v1127 = vld [vmem:[%s3 + $0x10] sm:$0xff]
    %v1128 = vld [vmem:[%s3 + $0x18] sm:$0xff]
    %v1129 = vld [vmem:[%s3 + $0x20] sm:$0xff]
    %v1130 = vld [vmem:[%s3 + $0x28] sm:$0xff]
    %v1131 = vld [vmem:[%s3 + $0x30] sm:$0xff]
    %v1132 = vld [vmem:[%s3 + $0x38] sm:$0xff]
    %v1133 = vld [vmem:[%s3 + $0x40] sm:$0xff]
    %v1134 = vld [vmem:[%s3 + $0x48] sm:$0xff]
    %v1135 = vld [vmem:[%s3 + $0x50] sm:$0xff]
    %v1136 = vld [vmem:[%s3 + $0x58] sm:$0xff]
    %v1137 = vld [vmem:[%s3 + $0x60] sm:$0xff]
    %v1138 = vld [vmem:[%s3 + $0x68] sm:$0xff]
    %v1139 = vld [vmem:[%s3 + $0x70] sm:$0xff]
    %v1140 = vld [vmem:[%s3 + $0x78] sm:$0xff]
    %v1141 = vld [vmem:[%s3 + $0x80] sm:$0xff]
    %v1142 = vld [vmem:[%s3 + $0x88] sm:$0xff]
    %v1143 = vld [vmem:[%s3 + $0x90] sm:$0xff]
    %v1144 = vld [vmem:[%s3 + $0x98] sm:$0xff]
    %v1145 = vld [vmem:[%s3 + $0xa0] sm:$0xf]
    %v1146 = vld [vmem:[%s3 + $0xa8] sm:$0xf]
    %s1147 = scalar_lea.vmem %s3, 176
    %v1148 = vld [vmem:[%s1147] sm:$0xff]
    %v1149 = vld [vmem:[%s1147 + $0x8] sm:$0xff]
    %v1150 = vld [vmem:[%s1147 + $0x10] sm:$0xff]
    %v1151 = vld [vmem:[%s1147 + $0x18] sm:$0xff]
    %v1152 = vld [vmem:[%s1147 + $0x20] sm:$0xff]
    %v1153 = vld [vmem:[%s1147 + $0x28] sm:$0xff]
    %v1154 = vld [vmem:[%s1147 + $0x30] sm:$0xff]
    %v1155 = vld [vmem:[%s1147 + $0x38] sm:$0xff]
    %v1156 = vld [vmem:[%s1147 + $0x40] sm:$0xff]
    %v1157 = vld [vmem:[%s1147 + $0x48] sm:$0xff]
    %v1158 = vld [vmem:[%s1147 + $0x50] sm:$0xff]
    %v1159 = vld [vmem:[%s1147 + $0x58] sm:$0xff]
    %v1160 = vld [vmem:[%s1147 + $0x60] sm:$0xff]
    %v1161 = vld [vmem:[%s1147 + $0x68] sm:$0xff]
    %v1162 = vld [vmem:[%s1147 + $0x70] sm:$0xff]
    %v1163 = vld [vmem:[%s1147 + $0x78] sm:$0xff]
    %v1164 = vld [vmem:[%s1147 + $0x80] sm:$0xff]
    %v1165 = vld [vmem:[%s1147 + $0x88] sm:$0xff]
    %v1166 = vld [vmem:[%s1147 + $0x90] sm:$0xff]
    %v1167 = vld [vmem:[%s1147 + $0x98] sm:$0xff]
    %v1168 = vld [vmem:[%s1147 + $0xa0] sm:$0xf]
    %v1169 = vld [vmem:[%s1147 + $0xa8] sm:$0xf]
    %v1172 = vrot.slane %v1123, 1
    %v1173 = vrot.slane %v1124, 1
    %v1174 = vsel %vm96, %v1172, %v1173
    %vm1175 = vcmask 687104
    %v1176 = vsel %vm1175, %v1174, 0
    %v1178 = vsel %vm1175, %v1173, 0
    %v1181 = vsel %vm600, %v1168, 0
    %v1184 = vsel %vm600, %v1169, 0
    %1186 = vmatprep.subr.mxu0 %v1149
    %1187 = vmatpush1.msra.mxu0 %v1148
    %1188 = vmatprep.subr.mxu0 %v1151
    %1189 = vmatpush1.msra.mxu0 %v1150
    %1190 = vmatprep.subr.mxu0 %v1153
    %1191 = vmatpush1.msra.mxu0 %v1152
    %1192 = vmatprep.subr.mxu0 %v1155
    %1193 = vmatpush1.msra.mxu0 %v1154
    %1194 = vmatprep.subr.mxu0 %v1157
    %1195 = vmatpush1.msra.mxu0 %v1156
    %1196 = vmatprep.subr.mxu0 %v1159
    %1197 = vmatpush1.msra.mxu0 %v1158
    %1198 = vmatprep.subr.mxu0 %v1161
    %1199 = vmatpush1.msra.mxu0 %v1160
    %1200 = vmatprep.subr.mxu0 %v1163
    %1201 = vmatpush1.msra.mxu0 %v1162
    %1202 = vmatprep.subr.mxu0 %v1165
    %1203 = vmatpush1.msra.mxu0 %v1164
    %1204 = vmatprep.subr.mxu0 %v1167
    %1205 = vmatpush1.msra.mxu0 %v1166
    %1206 = vmatprep.subr.mxu0 %v1184
    %1207 = vmatpush1.msra.mxu0 %v1181
    %1208 = vmatprep.subr.mxu0 0.0
    %1209 = vmatpush1.msra.mxu0 0.0
    %1210 = vmatprep.subr.mxu0 0.0
    %1211 = vmatpush1.msra.mxu0 0.0
    %1212 = vmatprep.subr.mxu0 0.0
    %1213 = vmatpush1.msra.mxu0 0.0
    %1214 = vmatprep.subr.mxu0 0.0
    %1215 = vmatpush1.msra.mxu0 0.0
    %1216 = vmatprep.subr.mxu0 0.0
    %1217 = vmatpush1.msra.mxu0 0.0
    %1218 = vmatprep.subr.mxu0 0.0
    %1219 = vmatpush1.msra.mxu0 0.0
    %1220 = vmatprep.subr.mxu0 0.0
    %1221 = vmatpush1.msra.mxu0 0.0
    %1222 = vmatprep.subr.mxu0 0.0
    %1223 = vmatpush1.msra.mxu0 0.0
    %1224 = vmatprep.subr.mxu0 0.0
    %1225 = vmatpush1.msra.mxu0 0.0
    %1226 = vmatprep.subr.mxu0 0.0
    %1227 = vmatpush1.msra.mxu0 0.0
    %1228 = vmatprep.subr.mxu0 0.0
    %1229 = vmatpush1.msra.mxu0 0.0
    %1230 = vmatprep.subr.mxu0 0.0
    %1231 = vmatpush1.msra.mxu0 0.0
    %1232 = vmatprep.subr.mxu0 0.0
    %1233 = vmatpush1.msra.mxu0 0.0
    %1234 = vmatprep.subr.mxu0 0.0
    %1235 = vmatpush1.msra.mxu0 0.0
    %1236 = vmatprep.subr.mxu0 0.0
    %1237 = vmatpush1.msra.mxu0 0.0
    %1238 = vmatprep.subr.mxu0 0.0
    %1239 = vmatpush1.msra.mxu0 0.0
    %1240 = vmatprep.subr.mxu0 0.0
    %1241 = vmatpush1.msra.mxu0 0.0
    %1242 = vmatprep.subr.mxu0 0.0
    %1243 = vmatpush1.msra.mxu0 0.0
    %1244 = vmatprep.subr.mxu0 0.0
    %1245 = vmatpush1.msra.mxu0 0.0
    %1246 = vmatprep.subr.mxu0 0.0
    %1247 = vmatpush1.msra.mxu0 0.0
    %1248 = vmatprep.subr.mxu0 0.0
    %1249 = vmatpush1.msra.mxu0 0.0
    %1250 = vmatprep.mubr.f32.mxu0 0.0
    %1251 = vmatmul.mubr.f32.gmra.mrb[0].mxu0 %v1176
    %v1252 = vpop.f32.mrb[0].mxu0
    %v1253 = vadd.f32 0.0, %v1252
    %v1254 = vpop.f32.mrb[0].mxu0
    %v1255 = vadd.f32 0.0, %v1254
    %1256 = vmatprep.mubr.f32.mxu0 0.0
    %1257 = vmatmul.mubr.f32.gmra.mrb[0].mxu0 %v1178
    %v1258 = vpop.f32.mrb[0].mxu0
    %v1259 = vadd.f32 0.0, %v1258
    %v1260 = vpop.f32.mrb[0].mxu0
    %v1261 = vadd.f32 0.0, %v1260
    %1262 = vdwg.mxu0
    %v1263 = vsel %vm1175, %v1123, 0
    %v1265 = vsel %vm1175, %v1124, 0
    %v1268 = vsel %vm600, %v1145, 0
    %v1271 = vsel %vm600, %v1146, 0
    %1273 = vmatprep.subr.mxu0 %v1126
    %1274 = vmatpush1.msra.mxu0 %v1125
    %1275 = vmatprep.subr.mxu0 %v1128
    %1276 = vmatpush1.msra.mxu0 %v1127
    %1277 = vmatprep.subr.mxu0 %v1130
    %1278 = vmatpush1.msra.mxu0 %v1129
    %1279 = vmatprep.subr.mxu0 %v1132
    %1280 = vmatpush1.msra.mxu0 %v1131
    %1281 = vmatprep.subr.mxu0 %v1134
    %1282 = vmatpush1.msra.mxu0 %v1133
    %1283 = vmatprep.subr.mxu0 %v1136
    %1284 = vmatpush1.msra.mxu0 %v1135
    %1285 = vmatprep.subr.mxu0 %v1138
    %1286 = vmatpush1.msra.mxu0 %v1137
    %1287 = vmatprep.subr.mxu0 %v1140
    %1288 = vmatpush1.msra.mxu0 %v1139
    %1289 = vmatprep.subr.mxu0 %v1142
    %1290 = vmatpush1.msra.mxu0 %v1141
    %1291 = vmatprep.subr.mxu0 %v1144
    %1292 = vmatpush1.msra.mxu0 %v1143
    %1293 = vmatprep.subr.mxu0 %v1271
    %1294 = vmatpush1.msra.mxu0 %v1268
    %1295 = vmatprep.subr.mxu0 0.0
    %1296 = vmatpush1.msra.mxu0 0.0
    %1297 = vmatprep.subr.mxu0 0.0
    %1298 = vmatpush1.msra.mxu0 0.0
    %1299 = vmatprep.subr.mxu0 0.0
    %1300 = vmatpush1.msra.mxu0 0.0
    %1301 = vmatprep.subr.mxu0 0.0
    %1302 = vmatpush1.msra.mxu0 0.0
    %1303 = vmatprep.subr.mxu0 0.0
    %1304 = vmatpush1.msra.mxu0 0.0
    %1305 = vmatprep.subr.mxu0 0.0
    %1306 = vmatpush1.msra.mxu0 0.0
    %1307 = vmatprep.subr.mxu0 0.0
    %1308 = vmatpush1.msra.mxu0 0.0
    %1309 = vmatprep.subr.mxu0 0.0
    %1310 = vmatpush1.msra.mxu0 0.0
    %1311 = vmatprep.subr.mxu0 0.0
    %1312 = vmatpush1.msra.mxu0 0.0
    %1313 = vmatprep.subr.mxu0 0.0
    %1314 = vmatpush1.msra.mxu0 0.0
    %1315 = vmatprep.subr.mxu0 0.0
    %1316 = vmatpush1.msra.mxu0 0.0
    %1317 = vmatprep.subr.mxu0 0.0
    %1318 = vmatpush1.msra.mxu0 0.0
    %1319 = vmatprep.subr.mxu0 0.0
    %1320 = vmatpush1.msra.mxu0 0.0
    %1321 = vmatprep.subr.mxu0 0.0
    %1322 = vmatpush1.msra.mxu0 0.0
    %1323 = vmatprep.subr.mxu0 0.0
    %1324 = vmatpush1.msra.mxu0 0.0
    %1325 = vmatprep.subr.mxu0 0.0
    %1326 = vmatpush1.msra.mxu0 0.0
    %1327 = vmatprep.subr.mxu0 0.0
    %1328 = vmatpush1.msra.mxu0 0.0
    %1329 = vmatprep.subr.mxu0 0.0
    %1330 = vmatpush1.msra.mxu0 0.0
    %1331 = vmatprep.subr.mxu0 0.0
    %1332 = vmatpush1.msra.mxu0 0.0
    %1333 = vmatprep.subr.mxu0 0.0
    %1334 = vmatpush1.msra.mxu0 0.0
    %1335 = vmatprep.subr.mxu0 0.0
    %1336 = vmatpush1.msra.mxu0 0.0
    %1337 = vmatprep.mubr.f32.mxu0 0.0
    %1338 = vmatmul.mubr.f32.gmra.mrb[0].mxu0 %v1263
    %v1339 = vpop.f32.mrb[0].mxu0
    %v1340 = vadd.f32 %v1253, %v1339
    %v1341 = vpop.f32.mrb[0].mxu0
    %v1342 = vadd.f32 %v1255, %v1341
    %1343 = vmatprep.mubr.f32.mxu0 0.0
    %1344 = vmatmul.mubr.f32.gmra.mrb[0].mxu0 %v1265
    %v1345 = vpop.f32.mrb[0].mxu0
    %v1346 = vadd.f32 %v1259, %v1345
    %v1347 = vpop.f32.mrb[0].mxu0
    %v1348 = vadd.f32 %v1261, %v1347
    %1349 = vdwg.mxu0
    %s1350 = scalar_lea.vmem %s3, 352
    %v1351 = vld [vmem:[%s1350] sm:$0xff]
    %v1352 = vld [vmem:[%s1350 + $0x8] sm:$0xff]
    %v1353 = vld [vmem:[%s1350 + $0x10] sm:$0xff]
    %v1354 = vld [vmem:[%s1350 + $0x18] sm:$0xff]
    %v1355 = vld [vmem:[%s1350 + $0x20] sm:$0xff]
    %v1356 = vld [vmem:[%s1350 + $0x28] sm:$0xff]
    %v1357 = vld [vmem:[%s1350 + $0x30] sm:$0xff]
    %v1358 = vld [vmem:[%s1350 + $0x38] sm:$0xff]
    %v1359 = vld [vmem:[%s1350 + $0x40] sm:$0xff]
    %v1360 = vld [vmem:[%s1350 + $0x48] sm:$0xff]
    %v1361 = vld [vmem:[%s1350 + $0x50] sm:$0xff]
    %v1362 = vld [vmem:[%s1350 + $0x58] sm:$0xff]
    %v1363 = vld [vmem:[%s1350 + $0x60] sm:$0xff]
    %v1364 = vld [vmem:[%s1350 + $0x68] sm:$0xff]
    %v1365 = vld [vmem:[%s1350 + $0x70] sm:$0xff]
    %v1366 = vld [vmem:[%s1350 + $0x78] sm:$0xff]
    %v1367 = vld [vmem:[%s1350 + $0x80] sm:$0xff]
    %v1368 = vld [vmem:[%s1350 + $0x88] sm:$0xff]
    %v1369 = vld [vmem:[%s1350 + $0x90] sm:$0xff]
    %v1370 = vld [vmem:[%s1350 + $0x98] sm:$0xff]
    %v1371 = vld [vmem:[%s1350 + $0xa0] sm:$0xf]
    %v1372 = vld [vmem:[%s1350 + $0xa8] sm:$0xf]
    %v1373 = vrot.slane %v1123, 2
    %v1374 = vrot.slane %v1124, 2
    %v1375 = vsel %vm324, %v1373, %v1374
    %v1376 = vsel %vm1175, %v1375, 0
    %v1378 = vsel %vm1175, %v1374, 0
    %v1381 = vsel %vm600, %v1371, 0
    %v1384 = vsel %vm600, %v1372, 0
    %1386 = vmatprep.subr.mxu0 %v1352
    %1387 = vmatpush1.msra.mxu0 %v1351
    %1388 = vmatprep.subr.mxu0 %v1354
    %1389 = vmatpush1.msra.mxu0 %v1353
    %1390 = vmatprep.subr.mxu0 %v1356
    %1391 = vmatpush1.msra.mxu0 %v1355
    %1392 = vmatprep.subr.mxu0 %v1358
    %1393 = vmatpush1.msra.mxu0 %v1357
    %1394 = vmatprep.subr.mxu0 %v1360
    %1395 = vmatpush1.msra.mxu0 %v1359
    %1396 = vmatprep.subr.mxu0 %v1362
    %1397 = vmatpush1.msra.mxu0 %v1361
    %1398 = vmatprep.subr.mxu0 %v1364
    %1399 = vmatpush1.msra.mxu0 %v1363
    %1400 = vmatprep.subr.mxu0 %v1366
    %1401 = vmatpush1.msra.mxu0 %v1365
    %1402 = vmatprep.subr.mxu0 %v1368
    %1403 = vmatpush1.msra.mxu0 %v1367
    %1404 = vmatprep.subr.mxu0 %v1370
    %1405 = vmatpush1.msra.mxu0 %v1369
    %1406 = vmatprep.subr.mxu0 %v1384
    %1407 = vmatpush1.msra.mxu0 %v1381
    %1408 = vmatprep.subr.mxu0 0.0
    %1409 = vmatpush1.msra.mxu0 0.0
    %1410 = vmatprep.subr.mxu0 0.0
    %1411 = vmatpush1.msra.mxu0 0.0
    %1412 = vmatprep.subr.mxu0 0.0
    %1413 = vmatpush1.msra.mxu0 0.0
    %1414 = vmatprep.subr.mxu0 0.0
    %1415 = vmatpush1.msra.mxu0 0.0
    %1416 = vmatprep.subr.mxu0 0.0
    %1417 = vmatpush1.msra.mxu0 0.0
    %1418 = vmatprep.subr.mxu0 0.0
    %1419 = vmatpush1.msra.mxu0 0.0
    %1420 = vmatprep.subr.mxu0 0.0
    %1421 = vmatpush1.msra.mxu0 0.0
    %1422 = vmatprep.subr.mxu0 0.0
    %1423 = vmatpush1.msra.mxu0 0.0
    %1424 = vmatprep.subr.mxu0 0.0
    %1425 = vmatpush1.msra.mxu0 0.0
    %1426 = vmatprep.subr.mxu0 0.0
    %1427 = vmatpush1.msra.mxu0 0.0
    %1428 = vmatprep.subr.mxu0 0.0
    %1429 = vmatpush1.msra.mxu0 0.0
    %1430 = vmatprep.subr.mxu0 0.0
    %1431 = vmatpush1.msra.mxu0 0.0
    %1432 = vmatprep.subr.mxu0 0.0
    %1433 = vmatpush1.msra.mxu0 0.0
    %1434 = vmatprep.subr.mxu0 0.0
    %1435 = vmatpush1.msra.mxu0 0.0
    %1436 = vmatprep.subr.mxu0 0.0
    %1437 = vmatpush1.msra.mxu0 0.0
    %1438 = vmatprep.subr.mxu0 0.0
    %1439 = vmatpush1.msra.mxu0 0.0
    %1440 = vmatprep.subr.mxu0 0.0
    %1441 = vmatpush1.msra.mxu0 0.0
    %1442 = vmatprep.subr.mxu0 0.0
    %1443 = vmatpush1.msra.mxu0 0.0
    %1444 = vmatprep.subr.mxu0 0.0
    %1445 = vmatpush1.msra.mxu0 0.0
    %1446 = vmatprep.subr.mxu0 0.0
    %1447 = vmatpush1.msra.mxu0 0.0
    %1448 = vmatprep.subr.mxu0 0.0
    %1449 = vmatpush1.msra.mxu0 0.0
    %1450 = vmatprep.mubr.f32.mxu0 0.0
    %1451 = vmatmul.mubr.f32.gmra.mrb[0].mxu0 %v1376
    %v1452 = vpop.f32.mrb[0].mxu0
    %v1453 = vadd.f32 0.0, %v1452
    %v1454 = vpop.f32.mrb[0].mxu0
    %v1455 = vadd.f32 0.0, %v1454
    %1456 = vmatprep.mubr.f32.mxu0 0.0
    %1457 = vmatmul.mubr.f32.gmra.mrb[0].mxu0 %v1378
    %v1458 = vpop.f32.mrb[0].mxu0
    %v1459 = vadd.f32 0.0, %v1458
    %v1460 = vpop.f32.mrb[0].mxu0
    %v1461 = vadd.f32 0.0, %v1460
    %1462 = vdwg.mxu0
    %v1463 = vadd.f32 %v1340, %v1453
    %v1464 = vadd.f32 %v1342, %v1455
    %v1465 = vadd.f32 %v1346, %v1459
    %v1466 = vadd.f32 %v1348, %v1461
    %s1467 = scalar_lea.vmem %s3, 528
    %v1468 = vld [vmem:[%s1467] sm:$0xff]
    %v1469 = vld [vmem:[%s1467 + $0x8] sm:$0xff]
    %v1470 = vld [vmem:[%s1467 + $0x10] sm:$0xff]
    %v1471 = vld [vmem:[%s1467 + $0x18] sm:$0xff]
    %v1472 = vld [vmem:[%s1467 + $0x20] sm:$0xff]
    %v1473 = vld [vmem:[%s1467 + $0x28] sm:$0xff]
    %v1474 = vld [vmem:[%s1467 + $0x30] sm:$0xff]
    %v1475 = vld [vmem:[%s1467 + $0x38] sm:$0xff]
    %v1476 = vld [vmem:[%s1467 + $0x40] sm:$0xff]
    %v1477 = vld [vmem:[%s1467 + $0x48] sm:$0xff]
    %v1478 = vld [vmem:[%s1467 + $0x50] sm:$0xff]
    %v1479 = vld [vmem:[%s1467 + $0x58] sm:$0xff]
    %v1480 = vld [vmem:[%s1467 + $0x60] sm:$0xff]
    %v1481 = vld [vmem:[%s1467 + $0x68] sm:$0xff]
    %v1482 = vld [vmem:[%s1467 + $0x70] sm:$0xff]
    %v1483 = vld [vmem:[%s1467 + $0x78] sm:$0xff]
    %v1484 = vld [vmem:[%s1467 + $0x80] sm:$0xff]
    %v1485 = vld [vmem:[%s1467 + $0x88] sm:$0xff]
    %v1486 = vld [vmem:[%s1467 + $0x90] sm:$0xff]
    %v1487 = vld [vmem:[%s1467 + $0x98] sm:$0xff]
    %v1488 = vld [vmem:[%s1467 + $0xa0] sm:$0xf]
    %v1489 = vld [vmem:[%s1467 + $0xa8] sm:$0xf]
    %v1490 = vrot.slane %v1123, 3
    %v1491 = vrot.slane %v1124, 3
    %v1492 = vsel %vm462, %v1490, %v1491
    %v1493 = vsel %vm1175, %v1492, 0
    %v1495 = vsel %vm1175, %v1491, 0
    %v1498 = vsel %vm600, %v1488, 0
    %v1501 = vsel %vm600, %v1489, 0
    %1503 = vmatprep.subr.mxu0 %v1469
    %1504 = vmatpush1.msra.mxu0 %v1468
    %1505 = vmatprep.subr.mxu0 %v1471
    %1506 = vmatpush1.msra.mxu0 %v1470
    %1507 = vmatprep.subr.mxu0 %v1473
    %1508 = vmatpush1.msra.mxu0 %v1472
    %1509 = vmatprep.subr.mxu0 %v1475
    %1510 = vmatpush1.msra.mxu0 %v1474
    %1511 = vmatprep.subr.mxu0 %v1477
    %1512 = vmatpush1.msra.mxu0 %v1476
    %1513 = vmatprep.subr.mxu0 %v1479
    %1514 = vmatpush1.msra.mxu0 %v1478
    %1515 = vmatprep.subr.mxu0 %v1481
    %1516 = vmatpush1.msra.mxu0 %v1480
    %1517 = vmatprep.subr.mxu0 %v1483
    %1518 = vmatpush1.msra.mxu0 %v1482
    %1519 = vmatprep.subr.mxu0 %v1485
    %1520 = vmatpush1.msra.mxu0 %v1484
    %1521 = vmatprep.subr.mxu0 %v1487
    %1522 = vmatpush1.msra.mxu0 %v1486
    %1523 = vmatprep.subr.mxu0 %v1501
    %1524 = vmatpush1.msra.mxu0 %v1498
    %1525 = vmatprep.subr.mxu0 0.0
    %1526 = vmatpush1.msra.mxu0 0.0
    %1527 = vmatprep.subr.mxu0 0.0
    %1528 = vmatpush1.msra.mxu0 0.0
    %1529 = vmatprep.subr.mxu0 0.0
    %1530 = vmatpush1.msra.mxu0 0.0
    %1531 = vmatprep.subr.mxu0 0.0
    %1532 = vmatpush1.msra.mxu0 0.0
    %1533 = vmatprep.subr.mxu0 0.0
    %1534 = vmatpush1.msra.mxu0 0.0
    %1535 = vmatprep.subr.mxu0 0.0
    %1536 = vmatpush1.msra.mxu0 0.0
    %1537 = vmatprep.subr.mxu0 0.0
    %1538 = vmatpush1.msra.mxu0 0.0
    %1539 = vmatprep.subr.mxu0 0.0
    %1540 = vmatpush1.msra.mxu0 0.0
    %1541 = vmatprep.subr.mxu0 0.0
    %1542 = vmatpush1.msra.mxu0 0.0
    %1543 = vmatprep.subr.mxu0 0.0
    %1544 = vmatpush1.msra.mxu0 0.0
    %1545 = vmatprep.subr.mxu0 0.0
    %1546 = vmatpush1.msra.mxu0 0.0
    %1547 = vmatprep.subr.mxu0 0.0
    %1548 = vmatpush1.msra.mxu0 0.0
    %1549 = vmatprep.subr.mxu0 0.0
    %1550 = vmatpush1.msra.mxu0 0.0
    %1551 = vmatprep.subr.mxu0 0.0
    %1552 = vmatpush1.msra.mxu0 0.0
    %1553 = vmatprep.subr.mxu0 0.0
    %1554 = vmatpush1.msra.mxu0 0.0
    %1555 = vmatprep.subr.mxu0 0.0
    %1556 = vmatpush1.msra.mxu0 0.0
    %1557 = vmatprep.subr.mxu0 0.0
    %1558 = vmatpush1.msra.mxu0 0.0
    %1559 = vmatprep.subr.mxu0 0.0
    %1560 = vmatpush1.msra.mxu0 0.0
    %1561 = vmatprep.subr.mxu0 0.0
    %1562 = vmatpush1.msra.mxu0 0.0
    %1563 = vmatprep.subr.mxu0 0.0
    %1564 = vmatpush1.msra.mxu0 0.0
    %1565 = vmatprep.subr.mxu0 0.0
    %1566 = vmatpush1.msra.mxu0 0.0
    %1567 = vmatprep.mubr.f32.mxu0 0.0
    %1568 = vmatmul.mubr.f32.gmra.mrb[0].mxu0 %v1493
    %v1569 = vpop.f32.mrb[0].mxu0
    %v1570 = vadd.f32 0.0, %v1569
    %v1571 = vpop.f32.mrb[0].mxu0
    %v1572 = vadd.f32 0.0, %v1571
    %1573 = vmatprep.mubr.f32.mxu0 0.0
    %1574 = vmatmul.mubr.f32.gmra.mrb[0].mxu0 %v1495
    %v1575 = vpop.f32.mrb[0].mxu0
    %v1576 = vadd.f32 0.0, %v1575
    %v1577 = vpop.f32.mrb[0].mxu0
    %v1578 = vadd.f32 0.0, %v1577
    %1579 = vdwg.mxu0
    %v1580 = vadd.f32 %v1463, %v1570
    %v1581 = vadd.f32 %v1464, %v1572
    %v1582 = vadd.f32 %v1465, %v1576
    %v1583 = vadd.f32 %v1466, %v1578
    %s1584 = scalar_lea.vmem %s3, 704
    %v1585 = vld [vmem:[%s1584] sm:$0xff]
    %v1586 = vld [vmem:[%s1584 + $0x8] sm:$0xff]
    %v1587 = vld [vmem:[%s1584 + $0x10] sm:$0xff]
    %v1588 = vld [vmem:[%s1584 + $0x18] sm:$0xff]
    %v1589 = vld [vmem:[%s1584 + $0x20] sm:$0xff]
    %v1590 = vld [vmem:[%s1584 + $0x28] sm:$0xff]
    %v1591 = vld [vmem:[%s1584 + $0x30] sm:$0xff]
    %v1592 = vld [vmem:[%s1584 + $0x38] sm:$0xff]
    %v1593 = vld [vmem:[%s1584 + $0x40] sm:$0xff]
    %v1594 = vld [vmem:[%s1584 + $0x48] sm:$0xff]
    %v1595 = vld [vmem:[%s1584 + $0x50] sm:$0xff]
    %v1596 = vld [vmem:[%s1584 + $0x58] sm:$0xff]
    %v1597 = vld [vmem:[%s1584 + $0x60] sm:$0xff]
    %v1598 = vld [vmem:[%s1584 + $0x68] sm:$0xff]
    %v1599 = vld [vmem:[%s1584 + $0x70] sm:$0xff]
    %v1600 = vld [vmem:[%s1584 + $0x78] sm:$0xff]
    %v1601 = vld [vmem:[%s1584 + $0x80] sm:$0xff]
    %v1602 = vld [vmem:[%s1584 + $0x88] sm:$0xff]
    %v1603 = vld [vmem:[%s1584 + $0x90] sm:$0xff]
    %v1604 = vld [vmem:[%s1584 + $0x98] sm:$0xff]
    %v1605 = vld [vmem:[%s1584 + $0xa0] sm:$0xf]
    %v1606 = vld [vmem:[%s1584 + $0xa8] sm:$0xf]
    %v1607 = vrot.slane %v1123, 4
    %v1608 = vrot.slane %v1124, 4
    %v1609 = vsel %vm600, %v1607, %v1608
    %v1610 = vsel %vm1175, %v1609, 0
    %v1612 = vsel %vm1175, %v1608, 0
    %v1615 = vsel %vm600, %v1605, 0
    %v1618 = vsel %vm600, %v1606, 0
    %1620 = vmatprep.subr.mxu0 %v1586
    %1621 = vmatpush1.msra.mxu0 %v1585
    %1622 = vmatprep.subr.mxu0 %v1588
    %1623 = vmatpush1.msra.mxu0 %v1587
    %1624 = vmatprep.subr.mxu0 %v1590
    %1625 = vmatpush1.msra.mxu0 %v1589
    %1626 = vmatprep.subr.mxu0 %v1592
    %1627 = vmatpush1.msra.mxu0 %v1591
    %1628 = vmatprep.subr.mxu0 %v1594
    %1629 = vmatpush1.msra.mxu0 %v1593
    %1630 = vmatprep.subr.mxu0 %v1596
    %1631 = vmatpush1.msra.mxu0 %v1595
    %1632 = vmatprep.subr.mxu0 %v1598
    %1633 = vmatpush1.msra.mxu0 %v1597
    %1634 = vmatprep.subr.mxu0 %v1600
    %1635 = vmatpush1.msra.mxu0 %v1599
    %1636 = vmatprep.subr.mxu0 %v1602
    %1637 = vmatpush1.msra.mxu0 %v1601
    %1638 = vmatprep.subr.mxu0 %v1604
    %1639 = vmatpush1.msra.mxu0 %v1603
    %1640 = vmatprep.subr.mxu0 %v1618
    %1641 = vmatpush1.msra.mxu0 %v1615
    %1642 = vmatprep.subr.mxu0 0.0
    %1643 = vmatpush1.msra.mxu0 0.0
    %1644 = vmatprep.subr.mxu0 0.0
    %1645 = vmatpush1.msra.mxu0 0.0
    %1646 = vmatprep.subr.mxu0 0.0
    %1647 = vmatpush1.msra.mxu0 0.0
    %1648 = vmatprep.subr.mxu0 0.0
    %1649 = vmatpush1.msra.mxu0 0.0
    %1650 = vmatprep.subr.mxu0 0.0
    %1651 = vmatpush1.msra.mxu0 0.0
    %1652 = vmatprep.subr.mxu0 0.0
    %1653 = vmatpush1.msra.mxu0 0.0
    %1654 = vmatprep.subr.mxu0 0.0
    %1655 = vmatpush1.msra.mxu0 0.0
    %1656 = vmatprep.subr.mxu0 0.0
    %1657 = vmatpush1.msra.mxu0 0.0
    %1658 = vmatprep.subr.mxu0 0.0
    %1659 = vmatpush1.msra.mxu0 0.0
    %1660 = vmatprep.subr.mxu0 0.0
    %1661 = vmatpush1.msra.mxu0 0.0
    %1662 = vmatprep.subr.mxu0 0.0
    %1663 = vmatpush1.msra.mxu0 0.0
    %1664 = vmatprep.subr.mxu0 0.0
    %1665 = vmatpush1.msra.mxu0 0.0
    %1666 = vmatprep.subr.mxu0 0.0
    %1667 = vmatpush1.msra.mxu0 0.0
    %1668 = vmatprep.subr.mxu0 0.0
    %1669 = vmatpush1.msra.mxu0 0.0
    %1670 = vmatprep.subr.mxu0 0.0
    %1671 = vmatpush1.msra.mxu0 0.0
    %1672 = vmatprep.subr.mxu0 0.0
    %1673 = vmatpush1.msra.mxu0 0.0
    %1674 = vmatprep.subr.mxu0 0.0
    %1675 = vmatpush1.msra.mxu0 0.0
    %1676 = vmatprep.subr.mxu0 0.0
    %1677 = vmatpush1.msra.mxu0 0.0
    %1678 = vmatprep.subr.mxu0 0.0
    %1679 = vmatpush1.msra.mxu0 0.0
    %1680 = vmatprep.subr.mxu0 0.0
    %1681 = vmatpush1.msra.mxu0 0.0
    %1682 = vmatprep.subr.mxu0 0.0
    %1683 = vmatpush1.msra.mxu0 0.0
    %1684 = vmatprep.mubr.f32.mxu0 0.0
    %1685 = vmatmul.mubr.f32.gmra.mrb[0].mxu0 %v1610
    %v1686 = vpop.f32.mrb[0].mxu0
    %v1687 = vadd.f32 0.0, %v1686
    %v1688 = vpop.f32.mrb[0].mxu0
    %v1689 = vadd.f32 0.0, %v1688
    %1690 = vmatprep.mubr.f32.mxu0 0.0
    %1691 = vmatmul.mubr.f32.gmra.mrb[0].mxu0 %v1612
    %v1692 = vpop.f32.mrb[0].mxu0
    %v1693 = vadd.f32 0.0, %v1692
    %v1694 = vpop.f32.mrb[0].mxu0
    %v1695 = vadd.f32 0.0, %v1694
    %1696 = vdwg.mxu0
    %v1697 = vadd.f32 %v1580, %v1687
    %v1698 = vadd.f32 %v1581, %v1689
    %v1699 = vadd.f32 %v1582, %v1693
    %v1700 = vadd.f32 %v1583, %v1695
    %v1701 = vld [vmem:[%s4] sm:$0x3]
    %v1703 = vlaneseq
    %v1704 = vshrl.u32 %v1703, 7
    %v1705 = vsub.s32 0, %v1704
    %v1706 = vrot.slane %v1701, %v1705
    %v1707 = vlaneseq
    %v1708 = vshrl.u32 %v1707, 7
    %v1709 = vsub.s32 1, %v1708
    %v1710 = vrot.slane %v1701, %v1709
    %v1713 = vadd.f32 %v1697, %v1706
    %v1714 = vadd.f32 %v1698, %v1710
    %v1715 = vadd.f32 %v1699, %v1706
    %v1716 = vadd.f32 %v1700, %v1710
    %v1717 = vtanh.pop %v1713
    %v1718 = vtanh.pop %v1714
    %v1719 = vtanh.pop %v1715
    %v1720 = vtanh.pop %v1716
    %v1725 = vrot.slane %v1717, 1
    %v1726 = vrot.slane %v1719, 1
    %v1727 = vsel %vm96, %v1725, %v1726
    %v1728 = vrot.slane %v1718, 1
    %v1729 = vrot.slane %v1720, 1
    %v1730 = vsel %vm96, %v1728, %v1729
    %v1735 = vmax.f32 %v1717, %v1727
    %v1736 = vmax.f32 %v1718, %v1730
    %v1737 = vmax.f32 %v1719, %v1726
    %v1738 = vmax.f32 %v1720, %v1729
    %v1741 = vcombine.low %v1735, %v1736
    %v1743 = vunpack.c.l.s4 1966171168
    %v1744 = vunpack.c.0.s8 %v1743
    %v1745 = vlaneseq
    %v1746 = vshrl.u32 %v1745, 7
    %v1747 = vsub.s32 %v1744, %v1746
    %v1748 = vrot.slane %v1741, %v1747
    %v1750 = vunpack.c.l.s4 1966171168
    %v1751 = vunpack.c.0.s8 %v1750
    %v1752 = vlaneseq
    %v1753 = vshrl.u32 %v1752, 7
    %v1754 = vsub.s32 %v1751, %v1753
    %v1755 = vrot.slane %v1748, %v1754
    %vm1757 = vcmp.lt.s32.totalorder %v797, 160
    %vm1758 = vmand %vm798, %vm1757
    %1759 = vst.msk [vmem:[#allocation4] ss:$8 sm:$0x3] %vm1758, %v1755
    %1760 = vst.msk [vmem:[#allocation4] ss:$8 sm:$0x0] %vm1758, %v1755
    %v1761 = vcombine.high %v1755, %v1755
    %s1763 = scalar_lea.vmem [#allocation4], 1
    %1764 = vst.msk [vmem:[%s1763] ss:$8 sm:$0x3] %vm1758, %v1761
    %1765 = vst.msk [vmem:[%s1763] ss:$8 sm:$0x0] %vm1758, %v1761
    %v1766 = vcombine.high %v1735, %v1736
    %v1768 = vunpack.c.l.s4 1966171168
    %v1769 = vunpack.c.0.s8 %v1768
    %v1770 = vlaneseq
    %v1771 = vshrl.u32 %v1770, 7
    %v1772 = vsub.s32 %v1769, %v1771
    %v1773 = vrot.slane %v1766, %v1772
    %v1775 = vunpack.c.l.s4 1966171168
    %v1776 = vunpack.c.0.s8 %v1775
    %v1777 = vlaneseq
    %v1778 = vshrl.u32 %v1777, 7
    %v1779 = vsub.s32 %v1776, %v1778
    %v1780 = vrot.slane %v1773, %v1779
    %s1782 = scalar_lea.vmem [#allocation4], 2
    %1783 = vst.msk [vmem:[%s1782] ss:$8 sm:$0x3] %vm1758, %v1780
    %1784 = vst.msk [vmem:[%s1782] ss:$8 sm:$0x0] %vm1758, %v1780
    %v1785 = vcombine.high %v1780, %v1780
    %s1787 = scalar_lea.vmem [#allocation4], 3
    %1788 = vst.msk [vmem:[%s1787] ss:$8 sm:$0x3] %vm1758, %v1785
    %1789 = vst.msk [vmem:[%s1787] ss:$8 sm:$0x0] %vm1758, %v1785
    %v1792 = vcombine.low %v1737, %v1738
    %v1794 = vunpack.c.l.s4 1966171168
    %v1795 = vunpack.c.0.s8 %v1794
    %v1796 = vlaneseq
    %v1797 = vshrl.u32 %v1796, 7
    %v1798 = vsub.s32 %v1795, %v1797
    %v1799 = vrot.slane %v1792, %v1798
    %v1801 = vunpack.c.l.s4 1966171168
    %v1802 = vunpack.c.0.s8 %v1801
    %v1803 = vlaneseq
    %v1804 = vshrl.u32 %v1803, 7
    %v1805 = vsub.s32 %v1802, %v1804
    %v1806 = vrot.slane %v1799, %v1805
    %s1808 = scalar_lea.vmem [#allocation4], 4
    %1809 = vst.msk [vmem:[%s1808] ss:$8 sm:$0x3] %vm1758, %v1806
    %1810 = vst.msk [vmem:[%s1808] ss:$8 sm:$0x0] %vm1758, %v1806
    %v1811 = vld [vmem:[#allocation4] sm:$0x1f]
    %v1812 = vld [vmem:[#allocation4 + $0x8] sm:$0x1f]
    %1815 = vrot.lane.b32.xlu0 %v1811, 112
    %v1816 = vpop.permute.xlu0 %1815
    %1817 = vrot.lane.b32.xlu0 %v1812, 112
    %v1818 = vpop.permute.xlu0 %1817
    %vm1819 = vcmask 916480
    %v1820 = vsel %vm1819, %v1816, %v1818
    %v1823 = vmax.f32 %v1811, %v1820
    %v1824 = vmax.f32 %v1812, %v1818
    %vm1825 = vcmask 126976
    %1826 = vst.msk [vmem:[#allocation5] sm:$0x1f] %vm1825, %v1823
    %1828 = vrot.lane.b32.xlu0 %v1823, 112
    %v1829 = vpop.permute.xlu0 %1828
    %vm1831 = vcmask 258176
    %1832 = vst.msk [vmem:[#allocation5] sm:$0x1f] %vm1831, %v1829
    %1833 = vrot.lane.b32.xlu0 %v1823, 96
    %v1834 = vpop.permute.xlu0 %1833
    %vm1836 = vcmask 389376
    %1837 = vst.msk [vmem:[#allocation5] sm:$0x1f] %vm1836, %v1834
    %1838 = vrot.lane.b32.xlu0 %v1823, 80
    %v1839 = vpop.permute.xlu0 %1838
    %vm1841 = vcmask 520576
    %1842 = vst.msk [vmem:[#allocation5] sm:$0x1f] %vm1841, %v1839
    %1844 = vrot.lane.b32.xlu0 %v1824, 64
    %v1845 = vpop.permute.xlu0 %1844
    %vm1847 = vcmask 651776
    %1848 = vst.msk [vmem:[#allocation5] sm:$0x1f] %vm1847, %v1845
    %v1849 = vld [vmem:[#allocation5] sm:$0x1f]
    %v1850 = vld [vmem:[%s5] sm:$0xff]
    %v1851 = vld [vmem:[%s5 + $0x8] sm:$0xff]
    %v1852 = vld [vmem:[%s5 + $0x10] sm:$0xff]
    %v1853 = vld [vmem:[%s5 + $0x18] sm:$0xff]
    %v1854 = vld [vmem:[%s5 + $0x20] sm:$0xff]
    %v1855 = vld [vmem:[%s5 + $0x28] sm:$0xff]
    %v1856 = vld [vmem:[%s5 + $0x30] sm:$0xff]
    %v1857 = vld [vmem:[%s5 + $0x38] sm:$0xff]
    %v1858 = vld [vmem:[%s5 + $0x40] sm:$0xff]
    %v1859 = vld [vmem:[%s5 + $0x48] sm:$0xff]
    %s1860 = scalar_lea.vmem %s5, 80
    %v1861 = vld [vmem:[%s1860] sm:$0xff]
    %v1862 = vld [vmem:[%s1860 + $0x8] sm:$0xff]
    %v1863 = vld [vmem:[%s1860 + $0x10] sm:$0xff]
    %v1864 = vld [vmem:[%s1860 + $0x18] sm:$0xff]
    %v1865 = vld [vmem:[%s1860 + $0x20] sm:$0xff]
    %v1866 = vld [vmem:[%s1860 + $0x28] sm:$0xff]
    %v1867 = vld [vmem:[%s1860 + $0x30] sm:$0xff]
    %v1868 = vld [vmem:[%s1860 + $0x38] sm:$0xff]
    %v1869 = vld [vmem:[%s1860 + $0x40] sm:$0xff]
    %v1870 = vld [vmem:[%s1860 + $0x48] sm:$0xff]
    %v1872 = vrot.slane %v1849, 1
    %vm1873 = vcmask 654336
    %v1874 = vsel %vm1873, %v1872, 0
    %1876 = vmatprep.subr.mxu0 0.0
    %1877 = vmatpush1.msra.mxu0 %v1861
    %1878 = vmatprep.subr.mxu0 0.0
    %1879 = vmatpush1.msra.mxu0 %v1862
    %1880 = vmatprep.subr.mxu0 0.0
    %1881 = vmatpush1.msra.mxu0 %v1863
    %1882 = vmatprep.subr.mxu0 0.0
    %1883 = vmatpush1.msra.mxu0 %v1864
    %1884 = vmatprep.subr.mxu0 0.0
    %1885 = vmatpush1.msra.mxu0 %v1865
    %1886 = vmatprep.subr.mxu0 0.0
    %1887 = vmatpush1.msra.mxu0 %v1866
    %1888 = vmatprep.subr.mxu0 0.0
    %1889 = vmatpush1.msra.mxu0 %v1867
    %1890 = vmatprep.subr.mxu0 0.0
    %1891 = vmatpush1.msra.mxu0 %v1868
    %1892 = vmatprep.subr.mxu0 0.0
    %1893 = vmatpush1.msra.mxu0 %v1869
    %1894 = vmatprep.subr.mxu0 0.0
    %1895 = vmatpush1.msra.mxu0 %v1870
    %1896 = vmatprep.subr.mxu0 0.0
    %1897 = vmatpush1.msra.mxu0 0.0
    %1898 = vmatprep.subr.mxu0 0.0
    %1899 = vmatpush1.msra.mxu0 0.0
    %1900 = vmatprep.subr.mxu0 0.0
    %1901 = vmatpush1.msra.mxu0 0.0
    %1902 = vmatprep.subr.mxu0 0.0
    %1903 = vmatpush1.msra.mxu0 0.0
    %1904 = vmatprep.subr.mxu0 0.0
    %1905 = vmatpush1.msra.mxu0 0.0
    %1906 = vmatprep.subr.mxu0 0.0
    %1907 = vmatpush1.msra.mxu0 0.0
    %1908 = vmatprep.subr.mxu0 0.0
    %1909 = vmatpush1.msra.mxu0 0.0
    %1910 = vmatprep.subr.mxu0 0.0
    %1911 = vmatpush1.msra.mxu0 0.0
    %1912 = vmatprep.subr.mxu0 0.0
    %1913 = vmatpush1.msra.mxu0 0.0
    %1914 = vmatprep.subr.mxu0 0.0
    %1915 = vmatpush1.msra.mxu0 0.0
    %1916 = vmatprep.subr.mxu0 0.0
    %1917 = vmatpush1.msra.mxu0 0.0
    %1918 = vmatprep.subr.mxu0 0.0
    %1919 = vmatpush1.msra.mxu0 0.0
    %1920 = vmatprep.subr.mxu0 0.0
    %1921 = vmatpush1.msra.mxu0 0.0
    %1922 = vmatprep.subr.mxu0 0.0
    %1923 = vmatpush1.msra.mxu0 0.0
    %1924 = vmatprep.subr.mxu0 0.0
    %1925 = vmatpush1.msra.mxu0 0.0
    %1926 = vmatprep.subr.mxu0 0.0
    %1927 = vmatpush1.msra.mxu0 0.0
    %1928 = vmatprep.subr.mxu0 0.0
    %1929 = vmatpush1.msra.mxu0 0.0
    %1930 = vmatprep.subr.mxu0 0.0
    %1931 = vmatpush1.msra.mxu0 0.0
    %1932 = vmatprep.subr.mxu0 0.0
    %1933 = vmatpush1.msra.mxu0 0.0
    %1934 = vmatprep.subr.mxu0 0.0
    %1935 = vmatpush1.msra.mxu0 0.0
    %1936 = vmatprep.subr.mxu0 0.0
    %1937 = vmatpush1.msra.mxu0 0.0
    %1938 = vmatprep.subr.mxu0 0.0
    %1939 = vmatpush1.msra.mxu0 0.0
    %1940 = vmatprep.mubr.f32.mxu0 0.0
    %1941 = vmatmul.mubr.f32.gmra.mrb[0].mxu0 %v1874
    %v1942 = vpop.f32.mrb[0].mxu0
    %v1943 = vadd.f32 0.0, %v1942
    %v1944 = vpop.f32.mrb[0].mxu0
    %1945 = vdwg.mxu0
    %v1946 = vsel %vm1873, %v1849, 0
    %1948 = vmatprep.subr.mxu0 0.0
    %1949 = vmatpush1.msra.mxu0 %v1850
    %1950 = vmatprep.subr.mxu0 0.0
    %1951 = vmatpush1.msra.mxu0 %v1851
    %1952 = vmatprep.subr.mxu0 0.0
    %1953 = vmatpush1.msra.mxu0 %v1852
    %1954 = vmatprep.subr.mxu0 0.0
    %1955 = vmatpush1.msra.mxu0 %v1853
    %1956 = vmatprep.subr.mxu0 0.0
    %1957 = vmatpush1.msra.mxu0 %v1854
    %1958 = vmatprep.subr.mxu0 0.0
    %1959 = vmatpush1.msra.mxu0 %v1855
    %1960 = vmatprep.subr.mxu0 0.0
    %1961 = vmatpush1.msra.mxu0 %v1856
    %1962 = vmatprep.subr.mxu0 0.0
    %1963 = vmatpush1.msra.mxu0 %v1857
    %1964 = vmatprep.subr.mxu0 0.0
    %1965 = vmatpush1.msra.mxu0 %v1858
    %1966 = vmatprep.subr.mxu0 0.0
    %1967 = vmatpush1.msra.mxu0 %v1859
    %1968 = vmatprep.subr.mxu0 0.0
    %1969 = vmatpush1.msra.mxu0 0.0
    %1970 = vmatprep.subr.mxu0 0.0
    %1971 = vmatpush1.msra.mxu0 0.0
    %1972 = vmatprep.subr.mxu0 0.0
    %1973 = vmatpush1.msra.mxu0 0.0
    %1974 = vmatprep.subr.mxu0 0.0
    %1975 = vmatpush1.msra.mxu0 0.0
    %1976 = vmatprep.subr.mxu0 0.0
    %1977 = vmatpush1.msra.mxu0 0.0
    %1978 = vmatprep.subr.mxu0 0.0
    %1979 = vmatpush1.msra.mxu0 0.0
    %1980 = vmatprep.subr.mxu0 0.0
    %1981 = vmatpush1.msra.mxu0 0.0
    %1982 = vmatprep.subr.mxu0 0.0
    %1983 = vmatpush1.msra.mxu0 0.0
    %1984 = vmatprep.subr.mxu0 0.0
    %1985 = vmatpush1.msra.mxu0 0.0
    %1986 = vmatprep.subr.mxu0 0.0
    %1987 = vmatpush1.msra.mxu0 0.0
    %1988 = vmatprep.subr.mxu0 0.0
    %1989 = vmatpush1.msra.mxu0 0.0
    %1990 = vmatprep.subr.mxu0 0.0
    %1991 = vmatpush1.msra.mxu0 0.0
    %1992 = vmatprep.subr.mxu0 0.0
    %1993 = vmatpush1.msra.mxu0 0.0
    %1994 = vmatprep.subr.mxu0 0.0
    %1995 = vmatpush1.msra.mxu0 0.0
    %1996 = vmatprep.subr.mxu0 0.0
    %1997 = vmatpush1.msra.mxu0 0.0
    %1998 = vmatprep.subr.mxu0 0.0
    %1999 = vmatpush1.msra.mxu0 0.0
    %2000 = vmatprep.subr.mxu0 0.0
    %2001 = vmatpush1.msra.mxu0 0.0
    %2002 = vmatprep.subr.mxu0 0.0
    %2003 = vmatpush1.msra.mxu0 0.0
    %2004 = vmatprep.subr.mxu0 0.0
    %2005 = vmatpush1.msra.mxu0 0.0
    %2006 = vmatprep.subr.mxu0 0.0
    %2007 = vmatpush1.msra.mxu0 0.0
    %2008 = vmatprep.subr.mxu0 0.0
    %2009 = vmatpush1.msra.mxu0 0.0
    %2010 = vmatprep.subr.mxu0 0.0
    %2011 = vmatpush1.msra.mxu0 0.0
    %2012 = vmatprep.mubr.f32.mxu0 0.0
    %2013 = vmatmul.mubr.f32.gmra.mrb[0].mxu0 %v1946
    %v2014 = vpop.f32.mrb[0].mxu0
    %v2015 = vadd.f32 %v1943, %v2014
    %v2016 = vpop.f32.mrb[0].mxu0
    %2017 = vdwg.mxu0
    %s2018 = scalar_lea.vmem %s5, 160
    %v2019 = vld [vmem:[%s2018] sm:$0xff]
    %v2020 = vld [vmem:[%s2018 + $0x8] sm:$0xff]
    %v2021 = vld [vmem:[%s2018 + $0x10] sm:$0xff]
    %v2022 = vld [vmem:[%s2018 + $0x18] sm:$0xff]
    %v2023 = vld [vmem:[%s2018 + $0x20] sm:$0xff]
    %v2024 = vld [vmem:[%s2018 + $0x28] sm:$0xff]
    %v2025 = vld [vmem:[%s2018 + $0x30] sm:$0xff]
    %v2026 = vld [vmem:[%s2018 + $0x38] sm:$0xff]
    %v2027 = vld [vmem:[%s2018 + $0x40] sm:$0xff]
    %v2028 = vld [vmem:[%s2018 + $0x48] sm:$0xff]
    %v2029 = vrot.slane %v1849, 2
    %v2030 = vsel %vm1873, %v2029, 0
    %2032 = vmatprep.subr.mxu0 0.0
    %2033 = vmatpush1.msra.mxu0 %v2019
    %2034 = vmatprep.subr.mxu0 0.0
    %2035 = vmatpush1.msra.mxu0 %v2020
    %2036 = vmatprep.subr.mxu0 0.0
    %2037 = vmatpush1.msra.mxu0 %v2021
    %2038 = vmatprep.subr.mxu0 0.0
    %2039 = vmatpush1.msra.mxu0 %v2022
    %2040 = vmatprep.subr.mxu0 0.0
    %2041 = vmatpush1.msra.mxu0 %v2023
    %2042 = vmatprep.subr.mxu0 0.0
    %2043 = vmatpush1.msra.mxu0 %v2024
    %2044 = vmatprep.subr.mxu0 0.0
    %2045 = vmatpush1.msra.mxu0 %v2025
    %2046 = vmatprep.subr.mxu0 0.0
    %2047 = vmatpush1.msra.mxu0 %v2026
    %2048 = vmatprep.subr.mxu0 0.0
    %2049 = vmatpush1.msra.mxu0 %v2027
    %2050 = vmatprep.subr.mxu0 0.0
    %2051 = vmatpush1.msra.mxu0 %v2028
    %2052 = vmatprep.subr.mxu0 0.0
    %2053 = vmatpush1.msra.mxu0 0.0
    %2054 = vmatprep.subr.mxu0 0.0
    %2055 = vmatpush1.msra.mxu0 0.0
    %2056 = vmatprep.subr.mxu0 0.0
    %2057 = vmatpush1.msra.mxu0 0.0
    %2058 = vmatprep.subr.mxu0 0.0
    %2059 = vmatpush1.msra.mxu0 0.0
    %2060 = vmatprep.subr.mxu0 0.0
    %2061 = vmatpush1.msra.mxu0 0.0
    %2062 = vmatprep.subr.mxu0 0.0
    %2063 = vmatpush1.msra.mxu0 0.0
    %2064 = vmatprep.subr.mxu0 0.0
    %2065 = vmatpush1.msra.mxu0 0.0
    %2066 = vmatprep.subr.mxu0 0.0
    %2067 = vmatpush1.msra.mxu0 0.0
    %2068 = vmatprep.subr.mxu0 0.0
    %2069 = vmatpush1.msra.mxu0 0.0
    %2070 = vmatprep.subr.mxu0 0.0
    %2071 = vmatpush1.msra.mxu0 0.0
    %2072 = vmatprep.subr.mxu0 0.0
    %2073 = vmatpush1.msra.mxu0 0.0
    %2074 = vmatprep.subr.mxu0 0.0
    %2075 = vmatpush1.msra.mxu0 0.0
    %2076 = vmatprep.subr.mxu0 0.0
    %2077 = vmatpush1.msra.mxu0 0.0
    %2078 = vmatprep.subr.mxu0 0.0
    %2079 = vmatpush1.msra.mxu0 0.0
    %2080 = vmatprep.subr.mxu0 0.0
    %2081 = vmatpush1.msra.mxu0 0.0
    %2082 = vmatprep.subr.mxu0 0.0
    %2083 = vmatpush1.msra.mxu0 0.0
    %2084 = vmatprep.subr.mxu0 0.0
    %2085 = vmatpush1.msra.mxu0 0.0
    %2086 = vmatprep.subr.mxu0 0.0
    %2087 = vmatpush1.msra.mxu0 0.0
    %2088 = vmatprep.subr.mxu0 0.0
    %2089 = vmatpush1.msra.mxu0 0.0
    %2090 = vmatprep.subr.mxu0 0.0
    %2091 = vmatpush1.msra.mxu0 0.0
    %2092 = vmatprep.subr.mxu0 0.0
    %2093 = vmatpush1.msra.mxu0 0.0
    %2094 = vmatprep.subr.mxu0 0.0
    %2095 = vmatpush1.msra.mxu0 0.0
    %2096 = vmatprep.mubr.f32.mxu0 0.0
    %2097 = vmatmul.mubr.f32.gmra.mrb[0].mxu0 %v2030
    %v2098 = vpop.f32.mrb[0].mxu0
    %v2099 = vadd.f32 0.0, %v2098
    %v2100 = vpop.f32.mrb[0].mxu0
    %2101 = vdwg.mxu0
    %v2102 = vadd.f32 %v2015, %v2099
    %s2103 = scalar_lea.vmem %s5, 240
    %v2104 = vld [vmem:[%s2103] sm:$0xff]
    %v2105 = vld [vmem:[%s2103 + $0x8] sm:$0xff]
    %v2106 = vld [vmem:[%s2103 + $0x10] sm:$0xff]
    %v2107 = vld [vmem:[%s2103 + $0x18] sm:$0xff]
    %v2108 = vld [vmem:[%s2103 + $0x20] sm:$0xff]
    %v2109 = vld [vmem:[%s2103 + $0x28] sm:$0xff]
    %v2110 = vld [vmem:[%s2103 + $0x30] sm:$0xff]
    %v2111 = vld [vmem:[%s2103 + $0x38] sm:$0xff]
    %v2112 = vld [vmem:[%s2103 + $0x40] sm:$0xff]
    %v2113 = vld [vmem:[%s2103 + $0x48] sm:$0xff]
    %v2114 = vrot.slane %v1849, 3
    %v2115 = vsel %vm1873, %v2114, 0
    %2117 = vmatprep.subr.mxu0 0.0
    %2118 = vmatpush1.msra.mxu0 %v2104
    %2119 = vmatprep.subr.mxu0 0.0
    %2120 = vmatpush1.msra.mxu0 %v2105
    %2121 = vmatprep.subr.mxu0 0.0
    %2122 = vmatpush1.msra.mxu0 %v2106
    %2123 = vmatprep.subr.mxu0 0.0
    %2124 = vmatpush1.msra.mxu0 %v2107
    %2125 = vmatprep.subr.mxu0 0.0
    %2126 = vmatpush1.msra.mxu0 %v2108
    %2127 = vmatprep.subr.mxu0 0.0
    %2128 = vmatpush1.msra.mxu0 %v2109
    %2129 = vmatprep.subr.mxu0 0.0
    %2130 = vmatpush1.msra.mxu0 %v2110
    %2131 = vmatprep.subr.mxu0 0.0
    %2132 = vmatpush1.msra.mxu0 %v2111
    %2133 = vmatprep.subr.mxu0 0.0
    %2134 = vmatpush1.msra.mxu0 %v2112
    %2135 = vmatprep.subr.mxu0 0.0
    %2136 = vmatpush1.msra.mxu0 %v2113
    %2137 = vmatprep.subr.mxu0 0.0
    %2138 = vmatpush1.msra.mxu0 0.0
    %2139 = vmatprep.subr.mxu0 0.0
    %2140 = vmatpush1.msra.mxu0 0.0
    %2141 = vmatprep.subr.mxu0 0.0
    %2142 = vmatpush1.msra.mxu0 0.0
    %2143 = vmatprep.subr.mxu0 0.0
    %2144 = vmatpush1.msra.mxu0 0.0
    %2145 = vmatprep.subr.mxu0 0.0
    %2146 = vmatpush1.msra.mxu0 0.0
    %2147 = vmatprep.subr.mxu0 0.0
    %2148 = vmatpush1.msra.mxu0 0.0
    %2149 = vmatprep.subr.mxu0 0.0
    %2150 = vmatpush1.msra.mxu0 0.0
    %2151 = vmatprep.subr.mxu0 0.0
    %2152 = vmatpush1.msra.mxu0 0.0
    %2153 = vmatprep.subr.mxu0 0.0
    %2154 = vmatpush1.msra.mxu0 0.0
    %2155 = vmatprep.subr.mxu0 0.0
    %2156 = vmatpush1.msra.mxu0 0.0
    %2157 = vmatprep.subr.mxu0 0.0
    %2158 = vmatpush1.msra.mxu0 0.0
    %2159 = vmatprep.subr.mxu0 0.0
    %2160 = vmatpush1.msra.mxu0 0.0
    %2161 = vmatprep.subr.mxu0 0.0
    %2162 = vmatpush1.msra.mxu0 0.0
    %2163 = vmatprep.subr.mxu0 0.0
    %2164 = vmatpush1.msra.mxu0 0.0
    %2165 = vmatprep.subr.mxu0 0.0
    %2166 = vmatpush1.msra.mxu0 0.0
    %2167 = vmatprep.subr.mxu0 0.0
    %2168 = vmatpush1.msra.mxu0 0.0
    %2169 = vmatprep.subr.mxu0 0.0
    %2170 = vmatpush1.msra.mxu0 0.0
    %2171 = vmatprep.subr.mxu0 0.0
    %2172 = vmatpush1.msra.mxu0 0.0
    %2173 = vmatprep.subr.mxu0 0.0
    %2174 = vmatpush1.msra.mxu0 0.0
    %2175 = vmatprep.subr.mxu0 0.0
    %2176 = vmatpush1.msra.mxu0 0.0
    %2177 = vmatprep.subr.mxu0 0.0
    %2178 = vmatpush1.msra.mxu0 0.0
    %2179 = vmatprep.subr.mxu0 0.0
    %2180 = vmatpush1.msra.mxu0 0.0
    %2181 = vmatprep.mubr.f32.mxu0 0.0
    %2182 = vmatmul.mubr.f32.gmra.mrb[0].mxu0 %v2115
    %v2183 = vpop.f32.mrb[0].mxu0
    %v2184 = vadd.f32 0.0, %v2183
    %v2185 = vpop.f32.mrb[0].mxu0
    %2186 = vdwg.mxu0
    %v2187 = vadd.f32 %v2102, %v2184
    %s2188 = scalar_lea.vmem %s5, 320
    %v2189 = vld [vmem:[%s2188] sm:$0xff]
    %v2190 = vld [vmem:[%s2188 + $0x8] sm:$0xff]
    %v2191 = vld [vmem:[%s2188 + $0x10] sm:$0xff]
    %v2192 = vld [vmem:[%s2188 + $0x18] sm:$0xff]
    %v2193 = vld [vmem:[%s2188 + $0x20] sm:$0xff]
    %v2194 = vld [vmem:[%s2188 + $0x28] sm:$0xff]
    %v2195 = vld [vmem:[%s2188 + $0x30] sm:$0xff]
    %v2196 = vld [vmem:[%s2188 + $0x38] sm:$0xff]
    %v2197 = vld [vmem:[%s2188 + $0x40] sm:$0xff]
    %v2198 = vld [vmem:[%s2188 + $0x48] sm:$0xff]
    %v2199 = vrot.slane %v1849, 4
    %v2200 = vsel %vm1873, %v2199, 0
    %2202 = vmatprep.subr.mxu0 0.0
    %2203 = vmatpush1.msra.mxu0 %v2189
    %2204 = vmatprep.subr.mxu0 0.0
    %2205 = vmatpush1.msra.mxu0 %v2190
    %2206 = vmatprep.subr.mxu0 0.0
    %2207 = vmatpush1.msra.mxu0 %v2191
    %2208 = vmatprep.subr.mxu0 0.0
    %2209 = vmatpush1.msra.mxu0 %v2192
    %2210 = vmatprep.subr.mxu0 0.0
    %2211 = vmatpush1.msra.mxu0 %v2193
    %2212 = vmatprep.subr.mxu0 0.0
    %2213 = vmatpush1.msra.mxu0 %v2194
    %2214 = vmatprep.subr.mxu0 0.0
    %2215 = vmatpush1.msra.mxu0 %v2195
    %2216 = vmatprep.subr.mxu0 0.0
    %2217 = vmatpush1.msra.mxu0 %v2196
    %2218 = vmatprep.subr.mxu0 0.0
    %2219 = vmatpush1.msra.mxu0 %v2197
    %2220 = vmatprep.subr.mxu0 0.0
    %2221 = vmatpush1.msra.mxu0 %v2198
    %2222 = vmatprep.subr.mxu0 0.0
    %2223 = vmatpush1.msra.mxu0 0.0
    %2224 = vmatprep.subr.mxu0 0.0
    %2225 = vmatpush1.msra.mxu0 0.0
    %2226 = vmatprep.subr.mxu0 0.0
    %2227 = vmatpush1.msra.mxu0 0.0
    %2228 = vmatprep.subr.mxu0 0.0
    %2229 = vmatpush1.msra.mxu0 0.0
    %2230 = vmatprep.subr.mxu0 0.0
    %2231 = vmatpush1.msra.mxu0 0.0
    %2232 = vmatprep.subr.mxu0 0.0
    %2233 = vmatpush1.msra.mxu0 0.0
    %2234 = vmatprep.subr.mxu0 0.0
    %2235 = vmatpush1.msra.mxu0 0.0
    %2236 = vmatprep.subr.mxu0 0.0
    %2237 = vmatpush1.msra.mxu0 0.0
    %2238 = vmatprep.subr.mxu0 0.0
    %2239 = vmatpush1.msra.mxu0 0.0
    %2240 = vmatprep.subr.mxu0 0.0
    %2241 = vmatpush1.msra.mxu0 0.0
    %2242 = vmatprep.subr.mxu0 0.0
    %2243 = vmatpush1.msra.mxu0 0.0
    %2244 = vmatprep.subr.mxu0 0.0
    %2245 = vmatpush1.msra.mxu0 0.0
    %2246 = vmatprep.subr.mxu0 0.0
    %2247 = vmatpush1.msra.mxu0 0.0
    %2248 = vmatprep.subr.mxu0 0.0
    %2249 = vmatpush1.msra.mxu0 0.0
    %2250 = vmatprep.subr.mxu0 0.0
    %2251 = vmatpush1.msra.mxu0 0.0
    %2252 = vmatprep.subr.mxu0 0.0
    %2253 = vmatpush1.msra.mxu0 0.0
    %2254 = vmatprep.subr.mxu0 0.0
    %2255 = vmatpush1.msra.mxu0 0.0
    %2256 = vmatprep.subr.mxu0 0.0
    %2257 = vmatpush1.msra.mxu0 0.0
    %2258 = vmatprep.subr.mxu0 0.0
    %2259 = vmatpush1.msra.mxu0 0.0
    %2260 = vmatprep.subr.mxu0 0.0
    %2261 = vmatpush1.msra.mxu0 0.0
    %2262 = vmatprep.subr.mxu0 0.0
    %2263 = vmatpush1.msra.mxu0 0.0
    %2264 = vmatprep.subr.mxu0 0.0
    %2265 = vmatpush1.msra.mxu0 0.0
    %2266 = vmatprep.mubr.f32.mxu0 0.0
    %2267 = vmatmul.mubr.f32.gmra.mrb[0].mxu0 %v2200
    %v2268 = vpop.f32.mrb[0].mxu0
    %v2269 = vadd.f32 0.0, %v2268
    %v2270 = vpop.f32.mrb[0].mxu0
    %2271 = vdwg.mxu0
    %v2272 = vadd.f32 %v2187, %v2269
    %v2273 = vld [vmem:[%s6] sm:$0x1]
    %v2274 = vadd.f32 %v2272, %v2273
    %v2275 = vtanh.pop %v2274
    %v2276 = vld [vmem:[%s7] sm:$0xff]
    %v2277 = vld [vmem:[%s7 + $0x8] sm:$0xff]
    %v2278 = vld [vmem:[%s7 + $0x10] sm:$0xff]
    %v2279 = vld [vmem:[%s7 + $0x18] sm:$0xff]
    %v2280 = vld [vmem:[%s7 + $0x20] sm:$0xff]
    %v2281 = vld [vmem:[%s7 + $0x28] sm:$0xff]
    %v2282 = vld [vmem:[%s7 + $0x30] sm:$0xff]
    %v2283 = vld [vmem:[%s7 + $0x38] sm:$0xff]
    %v2284 = vld [vmem:[%s7 + $0x40] sm:$0xff]
    %v2285 = vld [vmem:[%s7 + $0x48] sm:$0xff]
    %v2286 = vld [vmem:[%s7 + $0x50] sm:$0xff]
    %v2287 = vld [vmem:[%s7 + $0x58] sm:$0xff]
    %v2288 = vld [vmem:[%s7 + $0x60] sm:$0xff]
    %v2289 = vld [vmem:[%s7 + $0x68] sm:$0xff]
    %v2290 = vld [vmem:[%s7 + $0x70] sm:$0xff]
    %v2291 = vld [vmem:[%s8] sm:$0x1]
    %vm2292 = vcmask 982016
    %v2294 = vsel %vm2292, %v2275, 0
    %2296 = vmatprep.subr.mxu0 0.0
    %2297 = vmatpush1.msra.mxu0 %v2276
    %2298 = vmatprep.subr.mxu0 0.0
    %2299 = vmatpush1.msra.mxu0 %v2277
    %2300 = vmatprep.subr.mxu0 0.0
    %2301 = vmatpush1.msra.mxu0 %v2278
    %2302 = vmatprep.subr.mxu0 0.0
    %2303 = vmatpush1.msra.mxu0 %v2279
    %2304 = vmatprep.subr.mxu0 0.0
    %2305 = vmatpush1.msra.mxu0 %v2280
    %2306 = vmatprep.subr.mxu0 0.0
    %2307 = vmatpush1.msra.mxu0 %v2281
    %2308 = vmatprep.subr.mxu0 0.0
    %2309 = vmatpush1.msra.mxu0 %v2282
    %2310 = vmatprep.subr.mxu0 0.0
    %2311 = vmatpush1.msra.mxu0 %v2283
    %2312 = vmatprep.subr.mxu0 0.0
    %2313 = vmatpush1.msra.mxu0 %v2284
    %2314 = vmatprep.subr.mxu0 0.0
    %2315 = vmatpush1.msra.mxu0 %v2285
    %2316 = vmatprep.subr.mxu0 0.0
    %2317 = vmatpush1.msra.mxu0 %v2286
    %2318 = vmatprep.subr.mxu0 0.0
    %2319 = vmatpush1.msra.mxu0 %v2287
    %2320 = vmatprep.subr.mxu0 0.0
    %2321 = vmatpush1.msra.mxu0 %v2288
    %2322 = vmatprep.subr.mxu0 0.0
    %2323 = vmatpush1.msra.mxu0 %v2289
    %2324 = vmatprep.subr.mxu0 0.0
    %2325 = vmatpush1.msra.mxu0 %v2290
    %2326 = vmatprep.subr.mxu0 0.0
    %2327 = vmatpush1.msra.mxu0 0.0
    %2328 = vmatprep.subr.mxu0 0.0
    %2329 = vmatpush1.msra.mxu0 0.0
    %2330 = vmatprep.subr.mxu0 0.0
    %2331 = vmatpush1.msra.mxu0 0.0
    %2332 = vmatprep.subr.mxu0 0.0
    %2333 = vmatpush1.msra.mxu0 0.0
    %2334 = vmatprep.subr.mxu0 0.0
    %2335 = vmatpush1.msra.mxu0 0.0
    %2336 = vmatprep.subr.mxu0 0.0
    %2337 = vmatpush1.msra.mxu0 0.0
    %2338 = vmatprep.subr.mxu0 0.0
    %2339 = vmatpush1.msra.mxu0 0.0
    %2340 = vmatprep.subr.mxu0 0.0
    %2341 = vmatpush1.msra.mxu0 0.0
    %2342 = vmatprep.subr.mxu0 0.0
    %2343 = vmatpush1.msra.mxu0 0.0
    %2344 = vmatprep.subr.mxu0 0.0
    %2345 = vmatpush1.msra.mxu0 0.0
    %2346 = vmatprep.subr.mxu0 0.0
    %2347 = vmatpush1.msra.mxu0 0.0
    %2348 = vmatprep.subr.mxu0 0.0
    %2349 = vmatpush1.msra.mxu0 0.0
    %2350 = vmatprep.subr.mxu0 0.0
    %2351 = vmatpush1.msra.mxu0 0.0
    %2352 = vmatprep.subr.mxu0 0.0
    %2353 = vmatpush1.msra.mxu0 0.0
    %2354 = vmatprep.subr.mxu0 0.0
    %2355 = vmatpush1.msra.mxu0 0.0
    %2356 = vmatprep.subr.mxu0 0.0
    %2357 = vmatpush1.msra.mxu0 0.0
    %2358 = vmatprep.subr.mxu0 0.0
    %2359 = vmatpush1.msra.mxu0 0.0
    %2360 = vmatprep.mubr.f32.mxu0 0.0
    %2361 = vmatmul.mubr.f32.gmra.mrb[0].mxu0 %v2294
    %v2362 = vpop.f32.mrb[0].mxu0
    %v2363 = vadd.f32 %v2291, %v2362
    %v2364 = vpop.f32.mrb[0].mxu0
    %2365 = vdwg.mxu0
    %v2366 = vtanh.pop %v2363
    %v2367 = vld [vmem:[%s9] sm:$0xff]
    %v2368 = vld [vmem:[%s9 + $0x8] sm:$0xff]
    %v2369 = vld [vmem:[%s9 + $0x10] sm:$0xff]
    %v2370 = vld [vmem:[%s9 + $0x18] sm:$0xff]
    %v2371 = vld [vmem:[%s9 + $0x20] sm:$0xff]
    %v2372 = vld [vmem:[%s9 + $0x28] sm:$0xff]
    %v2373 = vld [vmem:[%s9 + $0x30] sm:$0xff]
    %v2374 = vld [vmem:[%s9 + $0x38] sm:$0xff]
    %v2375 = vld [vmem:[%s9 + $0x40] sm:$0xff]
    %v2376 = vld [vmem:[%s9 + $0x48] sm:$0xff]
    %v2377 = vld [vmem:[%s9 + $0x50] sm:$0xf]
    %v2378 = vld [vmem:[%s10] sm:$0x1]
    %v2380 = vsel %vm1175, %v2366, 0
    %v2383 = vsel %vm600, %v2377, 0
    %2385 = vmatprep.subr.mxu0 0.0
    %2386 = vmatpush1.msra.mxu0 %v2367
    %2387 = vmatprep.subr.mxu0 0.0
    %2388 = vmatpush1.msra.mxu0 %v2368
    %2389 = vmatprep.subr.mxu0 0.0
    %2390 = vmatpush1.msra.mxu0 %v2369
    %2391 = vmatprep.subr.mxu0 0.0
    %2392 = vmatpush1.msra.mxu0 %v2370
    %2393 = vmatprep.subr.mxu0 0.0
    %2394 = vmatpush1.msra.mxu0 %v2371
    %2395 = vmatprep.subr.mxu0 0.0
    %2396 = vmatpush1.msra.mxu0 %v2372
    %2397 = vmatprep.subr.mxu0 0.0
    %2398 = vmatpush1.msra.mxu0 %v2373
    %2399 = vmatprep.subr.mxu0 0.0
    %2400 = vmatpush1.msra.mxu0 %v2374
    %2401 = vmatprep.subr.mxu0 0.0
    %2402 = vmatpush1.msra.mxu0 %v2375
    %2403 = vmatprep.subr.mxu0 0.0
    %2404 = vmatpush1.msra.mxu0 %v2376
    %2405 = vmatprep.subr.mxu0 0.0
    %2406 = vmatpush1.msra.mxu0 %v2383
    %2407 = vmatprep.subr.mxu0 0.0
    %2408 = vmatpush1.msra.mxu0 0.0
    %2409 = vmatprep.subr.mxu0 0.0
    %2410 = vmatpush1.msra.mxu0 0.0
    %2411 = vmatprep.subr.mxu0 0.0
    %2412 = vmatpush1.msra.mxu0 0.0
    %2413 = vmatprep.subr.mxu0 0.0
    %2414 = vmatpush1.msra.mxu0 0.0
    %2415 = vmatprep.subr.mxu0 0.0
    %2416 = vmatpush1.msra.mxu0 0.0
    %2417 = vmatprep.subr.mxu0 0.0
    %2418 = vmatpush1.msra.mxu0 0.0
    %2419 = vmatprep.subr.mxu0 0.0
    %2420 = vmatpush1.msra.mxu0 0.0
    %2421 = vmatprep.subr.mxu0 0.0
    %2422 = vmatpush1.msra.mxu0 0.0
    %2423 = vmatprep.subr.mxu0 0.0
    %2424 = vmatpush1.msra.mxu0 0.0
    %2425 = vmatprep.subr.mxu0 0.0
    %2426 = vmatpush1.msra.mxu0 0.0
    %2427 = vmatprep.subr.mxu0 0.0
    %2428 = vmatpush1.msra.mxu0 0.0
    %2429 = vmatprep.subr.mxu0 0.0
    %2430 = vmatpush1.msra.mxu0 0.0
    %2431 = vmatprep.subr.mxu0 0.0
    %2432 = vmatpush1.msra.mxu0 0.0
    %2433 = vmatprep.subr.mxu0 0.0
    %2434 = vmatpush1.msra.mxu0 0.0
    %2435 = vmatprep.subr.mxu0 0.0
    %2436 = vmatpush1.msra.mxu0 0.0
    %2437 = vmatprep.subr.mxu0 0.0
    %2438 = vmatpush1.msra.mxu0 0.0
    %2439 = vmatprep.subr.mxu0 0.0
    %2440 = vmatpush1.msra.mxu0 0.0
    %2441 = vmatprep.subr.mxu0 0.0
    %2442 = vmatpush1.msra.mxu0 0.0
    %2443 = vmatprep.subr.mxu0 0.0
    %2444 = vmatpush1.msra.mxu0 0.0
    %2445 = vmatprep.subr.mxu0 0.0
    %2446 = vmatpush1.msra.mxu0 0.0
    %2447 = vmatprep.subr.mxu0 0.0
    %2448 = vmatpush1.msra.mxu0 0.0
    %2449 = vmatprep.mubr.f32.mxu0 0.0
    %2450 = vmatmul.mubr.f32.gmra.mrb[0].mxu0 %v2380
    %v2451 = vpop.f32.mrb[0].mxu0
    %v2452 = vadd.f32 %v2378, %v2451
    %v2453 = vpop.f32.mrb[0].mxu0
    %2454 = vdwg.mxu0
    %vm2455 = vcmask 73728
    %2456 = vst.msk [vmem:[#allocation6] sm:$0x1] %vm2455, %v2452
    %s2457 = scalar_lea.vmem %s0, 32
    %v2458 = vld [vmem:[%s2457] sm:$0xff]
    %v2459 = vld [vmem:[%s2457 + $0x8] sm:$0xff]
    %v2460 = vld [vmem:[%s2457 + $0x10] sm:$0xff]
    %v2461 = vld [vmem:[%s2457 + $0x18] sm:$0xff]
    %v2462 = vld [vmem:[%s1] sm:$0xff]
    %v2463 = vld [vmem:[%s1 + $0x8] sm:$0xff]
    %v2464 = vld [vmem:[%s1 + $0x10] sm:$0xff]
    %v2465 = vld [vmem:[%s1 + $0x18] sm:$0xff]
    %v2466 = vld [vmem:[%s1 + $0x20] sm:$0xff]
    %v2467 = vld [vmem:[%s1 + $0x28] sm:$0xff]
    %v2468 = vld [vmem:[%s1 + $0x30] sm:$0xff]
    %v2469 = vld [vmem:[%s1 + $0x38] sm:$0xff]
    %v2470 = vld [vmem:[%s1 + $0x40] sm:$0xff]
    %v2471 = vld [vmem:[%s1 + $0x48] sm:$0xff]
    %v2472 = vld [vmem:[%s1 + $0x50] sm:$0xff]
    %v2473 = vld [vmem:[%s1 + $0x58] sm:$0xff]
    %v2474 = vld [vmem:[%s1 + $0x60] sm:$0xff]
    %v2475 = vld [vmem:[%s1 + $0x68] sm:$0xff]
    %v2476 = vld [vmem:[%s1 + $0x70] sm:$0xff]
    %v2477 = vld [vmem:[%s1 + $0x78] sm:$0xff]
    %v2478 = vld [vmem:[%s1 + $0x80] sm:$0xff]
    %v2479 = vld [vmem:[%s1 + $0x88] sm:$0xff]
    %v2480 = vld [vmem:[%s1 + $0x90] sm:$0xff]
    %v2481 = vld [vmem:[%s1 + $0x98] sm:$0xff]
    %v2482 = vld [vmem:[%s1 + $0xa0] sm:$0xff]
    %v2483 = vld [vmem:[%s1 + $0xa8] sm:$0xff]
    %v2484 = vld [vmem:[%s1 + $0xb0] sm:$0xff]
    %v2485 = vld [vmem:[%s1 + $0xb8] sm:$0xff]
    %v2486 = vld [vmem:[%s67] sm:$0xff]
    %v2487 = vld [vmem:[%s67 + $0x8] sm:$0xff]
    %v2488 = vld [vmem:[%s67 + $0x10] sm:$0xff]
    %v2489 = vld [vmem:[%s67 + $0x18] sm:$0xff]
    %v2490 = vld [vmem:[%s67 + $0x20] sm:$0xff]
    %v2491 = vld [vmem:[%s67 + $0x28] sm:$0xff]
    %v2492 = vld [vmem:[%s67 + $0x30] sm:$0xff]
    %v2493 = vld [vmem:[%s67 + $0x38] sm:$0xff]
    %v2494 = vld [vmem:[%s67 + $0x40] sm:$0xff]
    %v2495 = vld [vmem:[%s67 + $0x48] sm:$0xff]
    %v2496 = vld [vmem:[%s67 + $0x50] sm:$0xff]
    %v2497 = vld [vmem:[%s67 + $0x58] sm:$0xff]
    %v2498 = vld [vmem:[%s67 + $0x60] sm:$0xff]
    %v2499 = vld [vmem:[%s67 + $0x68] sm:$0xff]
    %v2500 = vld [vmem:[%s67 + $0x70] sm:$0xff]
    %v2501 = vld [vmem:[%s67 + $0x78] sm:$0xff]
    %v2502 = vld [vmem:[%s67 + $0x80] sm:$0xff]
    %v2503 = vld [vmem:[%s67 + $0x88] sm:$0xff]
    %v2504 = vld [vmem:[%s67 + $0x90] sm:$0xff]
    %v2505 = vld [vmem:[%s67 + $0x98] sm:$0xff]
    %v2506 = vld [vmem:[%s67 + $0xa0] sm:$0xff]
    %v2507 = vld [vmem:[%s67 + $0xa8] sm:$0xff]
    %v2508 = vld [vmem:[%s67 + $0xb0] sm:$0xff]
    %v2509 = vld [vmem:[%s67 + $0xb8] sm:$0xff]
    %v2514 = vrot.slane %v2458, 1
    %v2515 = vrot.slane %v2459, 1
    %v2516 = vsel %vm96, %v2514, %v2515
    %v2517 = vrot.slane %v2460, 1
    %v2518 = vsel %vm96, %v2515, %v2517
    %v2519 = vrot.slane %v2461, 1
    %v2520 = vsel %vm96, %v2517, %v2519
    %v2521 = vsel %vm104, %v2516, 0
    %v2523 = vsel %vm104, %v2518, 0
    %v2525 = vsel %vm104, %v2520, 0
    %v2527 = vsel %vm104, %v2519, 0
    %2529 = vmatprep.subr.mxu0 %v2487
    %2530 = vmatpush1.msra.mxu0 %v2486
    %2531 = vmatprep.subr.mxu0 %v2489
    %2532 = vmatpush1.msra.mxu0 %v2488
    %2533 = vmatprep.subr.mxu0 %v2491
    %2534 = vmatpush1.msra.mxu0 %v2490
    %2535 = vmatprep.subr.mxu0 %v2493
    %2536 = vmatpush1.msra.mxu0 %v2492
    %2537 = vmatprep.subr.mxu0 %v2495
    %2538 = vmatpush1.msra.mxu0 %v2494
    %2539 = vmatprep.subr.mxu0 %v2497
    %2540 = vmatpush1.msra.mxu0 %v2496
    %2541 = vmatprep.subr.mxu0 %v2499
    %2542 = vmatpush1.msra.mxu0 %v2498
    %2543 = vmatprep.subr.mxu0 %v2501
    %2544 = vmatpush1.msra.mxu0 %v2500
    %2545 = vmatprep.subr.mxu0 %v2503
    %2546 = vmatpush1.msra.mxu0 %v2502
    %2547 = vmatprep.subr.mxu0 %v2505
    %2548 = vmatpush1.msra.mxu0 %v2504
    %2549 = vmatprep.subr.mxu0 %v2507
    %2550 = vmatpush1.msra.mxu0 %v2506
    %2551 = vmatprep.subr.mxu0 %v2509
    %2552 = vmatpush1.msra.mxu0 %v2508
    %2553 = vmatprep.subr.mxu0 0.0
    %2554 = vmatpush1.msra.mxu0 0.0
    %2555 = vmatprep.subr.mxu0 0.0
    %2556 = vmatpush1.msra.mxu0 0.0
    %2557 = vmatprep.subr.mxu0 0.0
    %2558 = vmatpush1.msra.mxu0 0.0
    %2559 = vmatprep.subr.mxu0 0.0
    %2560 = vmatpush1.msra.mxu0 0.0
    %2561 = vmatprep.subr.mxu0 0.0
    %2562 = vmatpush1.msra.mxu0 0.0
    %2563 = vmatprep.subr.mxu0 0.0
    %2564 = vmatpush1.msra.mxu0 0.0
    %2565 = vmatprep.subr.mxu0 0.0
    %2566 = vmatpush1.msra.mxu0 0.0
    %2567 = vmatprep.subr.mxu0 0.0
    %2568 = vmatpush1.msra.mxu0 0.0
    %2569 = vmatprep.subr.mxu0 0.0
    %2570 = vmatpush1.msra.mxu0 0.0
    %2571 = vmatprep.subr.mxu0 0.0
    %2572 = vmatpush1.msra.mxu0 0.0
    %2573 = vmatprep.subr.mxu0 0.0
    %2574 = vmatpush1.msra.mxu0 0.0
    %2575 = vmatprep.subr.mxu0 0.0
    %2576 = vmatpush1.msra.mxu0 0.0
    %2577 = vmatprep.subr.mxu0 0.0
    %2578 = vmatpush1.msra.mxu0 0.0
    %2579 = vmatprep.subr.mxu0 0.0
    %2580 = vmatpush1.msra.mxu0 0.0
    %2581 = vmatprep.subr.mxu0 0.0
    %2582 = vmatpush1.msra.mxu0 0.0
    %2583 = vmatprep.subr.mxu0 0.0
    %2584 = vmatpush1.msra.mxu0 0.0
    %2585 = vmatprep.subr.mxu0 0.0
    %2586 = vmatpush1.msra.mxu0 0.0
    %2587 = vmatprep.subr.mxu0 0.0
    %2588 = vmatpush1.msra.mxu0 0.0
    %2589 = vmatprep.subr.mxu0 0.0
    %2590 = vmatpush1.msra.mxu0 0.0
    %2591 = vmatprep.subr.mxu0 0.0
    %2592 = vmatpush1.msra.mxu0 0.0
    %2593 = vmatprep.mubr.f32.mxu0 0.0
    %2594 = vmatmul.mubr.f32.gmra.mrb[0].mxu0 %v2521
    %v2595 = vpop.f32.mrb[0].mxu0
    %v2596 = vadd.f32 0.0, %v2595
    %v2597 = vpop.f32.mrb[0].mxu0
    %v2598 = vadd.f32 0.0, %v2597
    %2599 = vmatprep.mubr.f32.mxu0 0.0
    %2600 = vmatmul.mubr.f32.gmra.mrb[0].mxu0 %v2523
    %v2601 = vpop.f32.mrb[0].mxu0
    %v2602 = vadd.f32 0.0, %v2601
    %v2603 = vpop.f32.mrb[0].mxu0
    %v2604 = vadd.f32 0.0, %v2603
    %2605 = vmatprep.mubr.f32.mxu0 0.0
    %2606 = vmatmul.mubr.f32.gmra.mrb[0].mxu0 %v2525
    %v2607 = vpop.f32.mrb[0].mxu0
    %v2608 = vadd.f32 0.0, %v2607
    %v2609 = vpop.f32.mrb[0].mxu0
    %v2610 = vadd.f32 0.0, %v2609
    %2611 = vmatprep.mubr.f32.mxu0 0.0
    %2612 = vmatmul.mubr.f32.gmra.mrb[0].mxu0 %v2527
    %v2613 = vpop.f32.mrb[0].mxu0
    %v2614 = vadd.f32 0.0, %v2613
    %v2615 = vpop.f32.mrb[0].mxu0
    %v2616 = vadd.f32 0.0, %v2615
    %2617 = vdwg.mxu0
    %v2618 = vsel %vm104, %v2458, 0
    %v2620 = vsel %vm104, %v2459, 0
    %v2622 = vsel %vm104, %v2460, 0
    %v2624 = vsel %vm104, %v2461, 0
    %2626 = vmatprep.subr.mxu0 %v2463
    %2627 = vmatpush1.msra.mxu0 %v2462
    %2628 = vmatprep.subr.mxu0 %v2465
    %2629 = vmatpush1.msra.mxu0 %v2464
    %2630 = vmatprep.subr.mxu0 %v2467
    %2631 = vmatpush1.msra.mxu0 %v2466
    %2632 = vmatprep.subr.mxu0 %v2469
    %2633 = vmatpush1.msra.mxu0 %v2468
    %2634 = vmatprep.subr.mxu0 %v2471
    %2635 = vmatpush1.msra.mxu0 %v2470
    %2636 = vmatprep.subr.mxu0 %v2473
    %2637 = vmatpush1.msra.mxu0 %v2472
    %2638 = vmatprep.subr.mxu0 %v2475
    %2639 = vmatpush1.msra.mxu0 %v2474
    %2640 = vmatprep.subr.mxu0 %v2477
    %2641 = vmatpush1.msra.mxu0 %v2476
    %2642 = vmatprep.subr.mxu0 %v2479
    %2643 = vmatpush1.msra.mxu0 %v2478
    %2644 = vmatprep.subr.mxu0 %v2481
    %2645 = vmatpush1.msra.mxu0 %v2480
    %2646 = vmatprep.subr.mxu0 %v2483
    %2647 = vmatpush1.msra.mxu0 %v2482
    %2648 = vmatprep.subr.mxu0 %v2485
    %2649 = vmatpush1.msra.mxu0 %v2484
    %2650 = vmatprep.subr.mxu0 0.0
    %2651 = vmatpush1.msra.mxu0 0.0
    %2652 = vmatprep.subr.mxu0 0.0
    %2653 = vmatpush1.msra.mxu0 0.0
    %2654 = vmatprep.subr.mxu0 0.0
    %2655 = vmatpush1.msra.mxu0 0.0
    %2656 = vmatprep.subr.mxu0 0.0
    %2657 = vmatpush1.msra.mxu0 0.0
    %2658 = vmatprep.subr.mxu0 0.0
    %2659 = vmatpush1.msra.mxu0 0.0
    %2660 = vmatprep.subr.mxu0 0.0
    %2661 = vmatpush1.msra.mxu0 0.0
    %2662 = vmatprep.subr.mxu0 0.0
    %2663 = vmatpush1.msra.mxu0 0.0
    %2664 = vmatprep.subr.mxu0 0.0
    %2665 = vmatpush1.msra.mxu0 0.0
    %2666 = vmatprep.subr.mxu0 0.0
    %2667 = vmatpush1.msra.mxu0 0.0
    %2668 = vmatprep.subr.mxu0 0.0
    %2669 = vmatpush1.msra.mxu0 0.0
    %2670 = vmatprep.subr.mxu0 0.0
    %2671 = vmatpush1.msra.mxu0 0.0
    %2672 = vmatprep.subr.mxu0 0.0
    %2673 = vmatpush1.msra.mxu0 0.0
    %2674 = vmatprep.subr.mxu0 0.0
    %2675 = vmatpush1.msra.mxu0 0.0
    %2676 = vmatprep.subr.mxu0 0.0
    %2677 = vmatpush1.msra.mxu0 0.0
    %2678 = vmatprep.subr.mxu0 0.0
    %2679 = vmatpush1.msra.mxu0 0.0
    %2680 = vmatprep.subr.mxu0 0.0
    %2681 = vmatpush1.msra.mxu0 0.0
    %2682 = vmatprep.subr.mxu0 0.0
    %2683 = vmatpush1.msra.mxu0 0.0
    %2684 = vmatprep.subr.mxu0 0.0
    %2685 = vmatpush1.msra.mxu0 0.0
    %2686 = vmatprep.subr.mxu0 0.0
    %2687 = vmatpush1.msra.mxu0 0.0
    %2688 = vmatprep.subr.mxu0 0.0
    %2689 = vmatpush1.msra.mxu0 0.0
    %2690 = vmatprep.mubr.f32.mxu0 0.0
    %2691 = vmatmul.mubr.f32.gmra.mrb[0].mxu0 %v2618
    %v2692 = vpop.f32.mrb[0].mxu0
    %v2693 = vadd.f32 %v2596, %v2692
    %v2694 = vpop.f32.mrb[0].mxu0
    %v2695 = vadd.f32 %v2598, %v2694
    %2696 = vmatprep.mubr.f32.mxu0 0.0
    %2697 = vmatmul.mubr.f32.gmra.mrb[0].mxu0 %v2620
    %v2698 = vpop.f32.mrb[0].mxu0
    %v2699 = vadd.f32 %v2602, %v2698
    %v2700 = vpop.f32.mrb[0].mxu0
    %v2701 = vadd.f32 %v2604, %v2700
    %2702 = vmatprep.mubr.f32.mxu0 0.0
    %2703 = vmatmul.mubr.f32.gmra.mrb[0].mxu0 %v2622
    %v2704 = vpop.f32.mrb[0].mxu0
    %v2705 = vadd.f32 %v2608, %v2704
    %v2706 = vpop.f32.mrb[0].mxu0
    %v2707 = vadd.f32 %v2610, %v2706
    %2708 = vmatprep.mubr.f32.mxu0 0.0
    %2709 = vmatmul.mubr.f32.gmra.mrb[0].mxu0 %v2624
    %v2710 = vpop.f32.mrb[0].mxu0
    %v2711 = vadd.f32 %v2614, %v2710
    %v2712 = vpop.f32.mrb[0].mxu0
    %v2713 = vadd.f32 %v2616, %v2712
    %2714 = vdwg.mxu0
    %v2715 = vld [vmem:[%s299] sm:$0xff]
    %v2716 = vld [vmem:[%s299 + $0x8] sm:$0xff]
    %v2717 = vld [vmem:[%s299 + $0x10] sm:$0xff]
    %v2718 = vld [vmem:[%s299 + $0x18] sm:$0xff]
    %v2719 = vld [vmem:[%s299 + $0x20] sm:$0xff]
    %v2720 = vld [vmem:[%s299 + $0x28] sm:$0xff]
    %v2721 = vld [vmem:[%s299 + $0x30] sm:$0xff]
    %v2722 = vld [vmem:[%s299 + $0x38] sm:$0xff]
    %v2723 = vld [vmem:[%s299 + $0x40] sm:$0xff]
    %v2724 = vld [vmem:[%s299 + $0x48] sm:$0xff]
    %v2725 = vld [vmem:[%s299 + $0x50] sm:$0xff]
    %v2726 = vld [vmem:[%s299 + $0x58] sm:$0xff]
    %v2727 = vld [vmem:[%s299 + $0x60] sm:$0xff]
    %v2728 = vld [vmem:[%s299 + $0x68] sm:$0xff]
    %v2729 = vld [vmem:[%s299 + $0x70] sm:$0xff]
    %v2730 = vld [vmem:[%s299 + $0x78] sm:$0xff]
    %v2731 = vld [vmem:[%s299 + $0x80] sm:$0xff]
    %v2732 = vld [vmem:[%s299 + $0x88] sm:$0xff]
    %v2733 = vld [vmem:[%s299 + $0x90] sm:$0xff]
    %v2734 = vld [vmem:[%s299 + $0x98] sm:$0xff]
    %v2735 = vld [vmem:[%s299 + $0xa0] sm:$0xff]
    %v2736 = vld [vmem:[%s299 + $0xa8] sm:$0xff]
    %v2737 = vld [vmem:[%s299 + $0xb0] sm:$0xff]
    %v2738 = vld [vmem:[%s299 + $0xb8] sm:$0xff]
    %v2739 = vrot.slane %v2458, 2
    %v2740 = vrot.slane %v2459, 2
    %v2741 = vsel %vm324, %v2739, %v2740
    %v2742 = vrot.slane %v2460, 2
    %v2743 = vsel %vm324, %v2740, %v2742
    %v2744 = vrot.slane %v2461, 2
    %v2745 = vsel %vm324, %v2742, %v2744
    %v2746 = vsel %vm104, %v2741, 0
    %v2748 = vsel %vm104, %v2743, 0
    %v2750 = vsel %vm104, %v2745, 0
    %v2752 = vsel %vm104, %v2744, 0
    %2754 = vmatprep.subr.mxu0 %v2716
    %2755 = vmatpush1.msra.mxu0 %v2715
    %2756 = vmatprep.subr.mxu0 %v2718
    %2757 = vmatpush1.msra.mxu0 %v2717
    %2758 = vmatprep.subr.mxu0 %v2720
    %2759 = vmatpush1.msra.mxu0 %v2719
    %2760 = vmatprep.subr.mxu0 %v2722
    %2761 = vmatpush1.msra.mxu0 %v2721
    %2762 = vmatprep.subr.mxu0 %v2724
    %2763 = vmatpush1.msra.mxu0 %v2723
    %2764 = vmatprep.subr.mxu0 %v2726
    %2765 = vmatpush1.msra.mxu0 %v2725
    %2766 = vmatprep.subr.mxu0 %v2728
    %2767 = vmatpush1.msra.mxu0 %v2727
    %2768 = vmatprep.subr.mxu0 %v2730
    %2769 = vmatpush1.msra.mxu0 %v2729
    %2770 = vmatprep.subr.mxu0 %v2732
    %2771 = vmatpush1.msra.mxu0 %v2731
    %2772 = vmatprep.subr.mxu0 %v2734
    %2773 = vmatpush1.msra.mxu0 %v2733
    %2774 = vmatprep.subr.mxu0 %v2736
    %2775 = vmatpush1.msra.mxu0 %v2735
    %2776 = vmatprep.subr.mxu0 %v2738
    %2777 = vmatpush1.msra.mxu0 %v2737
    %2778 = vmatprep.subr.mxu0 0.0
    %2779 = vmatpush1.msra.mxu0 0.0
    %2780 = vmatprep.subr.mxu0 0.0
    %2781 = vmatpush1.msra.mxu0 0.0
    %2782 = vmatprep.subr.mxu0 0.0
    %2783 = vmatpush1.msra.mxu0 0.0
    %2784 = vmatprep.subr.mxu0 0.0
    %2785 = vmatpush1.msra.mxu0 0.0
    %2786 = vmatprep.subr.mxu0 0.0
    %2787 = vmatpush1.msra.mxu0 0.0
    %2788 = vmatprep.subr.mxu0 0.0
    %2789 = vmatpush1.msra.mxu0 0.0
    %2790 = vmatprep.subr.mxu0 0.0
    %2791 = vmatpush1.msra.mxu0 0.0
    %2792 = vmatprep.subr.mxu0 0.0
    %2793 = vmatpush1.msra.mxu0 0.0
    %2794 = vmatprep.subr.mxu0 0.0
    %2795 = vmatpush1.msra.mxu0 0.0
    %2796 = vmatprep.subr.mxu0 0.0
    %2797 = vmatpush1.msra.mxu0 0.0
    %2798 = vmatprep.subr.mxu0 0.0
    %2799 = vmatpush1.msra.mxu0 0.0
    %2800 = vmatprep.subr.mxu0 0.0
    %2801 = vmatpush1.msra.mxu0 0.0
    %2802 = vmatprep.subr.mxu0 0.0
    %2803 = vmatpush1.msra.mxu0 0.0
    %2804 = vmatprep.subr.mxu0 0.0
    %2805 = vmatpush1.msra.mxu0 0.0
    %2806 = vmatprep.subr.mxu0 0.0
    %2807 = vmatpush1.msra.mxu0 0.0
    %2808 = vmatprep.subr.mxu0 0.0
    %2809 = vmatpush1.msra.mxu0 0.0
    %2810 = vmatprep.subr.mxu0 0.0
    %2811 = vmatpush1.msra.mxu0 0.0
    %2812 = vmatprep.subr.mxu0 0.0
    %2813 = vmatpush1.msra.mxu0 0.0
    %2814 = vmatprep.subr.mxu0 0.0
    %2815 = vmatpush1.msra.mxu0 0.0
    %2816 = vmatprep.subr.mxu0 0.0
    %2817 = vmatpush1.msra.mxu0 0.0
    %2818 = vmatprep.mubr.f32.mxu0 0.0
    %2819 = vmatmul.mubr.f32.gmra.mrb[0].mxu0 %v2746
    %v2820 = vpop.f32.mrb[0].mxu0
    %v2821 = vadd.f32 0.0, %v2820
    %v2822 = vpop.f32.mrb[0].mxu0
    %v2823 = vadd.f32 0.0, %v2822
    %2824 = vmatprep.mubr.f32.mxu0 0.0
    %2825 = vmatmul.mubr.f32.gmra.mrb[0].mxu0 %v2748
    %v2826 = vpop.f32.mrb[0].mxu0
    %v2827 = vadd.f32 0.0, %v2826
    %v2828 = vpop.f32.mrb[0].mxu0
    %v2829 = vadd.f32 0.0, %v2828
    %2830 = vmatprep.mubr.f32.mxu0 0.0
    %2831 = vmatmul.mubr.f32.gmra.mrb[0].mxu0 %v2750
    %v2832 = vpop.f32.mrb[0].mxu0
    %v2833 = vadd.f32 0.0, %v2832
    %v2834 = vpop.f32.mrb[0].mxu0
    %v2835 = vadd.f32 0.0, %v2834
    %2836 = vmatprep.mubr.f32.mxu0 0.0
    %2837 = vmatmul.mubr.f32.gmra.mrb[0].mxu0 %v2752
    %v2838 = vpop.f32.mrb[0].mxu0
    %v2839 = vadd.f32 0.0, %v2838
    %v2840 = vpop.f32.mrb[0].mxu0
    %v2841 = vadd.f32 0.0, %v2840
    %2842 = vdwg.mxu0
    %v2843 = vadd.f32 %v2693, %v2821
    %v2844 = vadd.f32 %v2695, %v2823
    %v2845 = vadd.f32 %v2699, %v2827
    %v2846 = vadd.f32 %v2701, %v2829
    %v2847 = vadd.f32 %v2705, %v2833
    %v2848 = vadd.f32 %v2707, %v2835
    %v2849 = vadd.f32 %v2711, %v2839
    %v2850 = vadd.f32 %v2713, %v2841
    %v2851 = vld [vmem:[%s437] sm:$0xff]
    %v2852 = vld [vmem:[%s437 + $0x8] sm:$0xff]
    %v2853 = vld [vmem:[%s437 + $0x10] sm:$0xff]
    %v2854 = vld [vmem:[%s437 + $0x18] sm:$0xff]
    %v2855 = vld [vmem:[%s437 + $0x20] sm:$0xff]
    %v2856 = vld [vmem:[%s437 + $0x28] sm:$0xff]
    %v2857 = vld [vmem:[%s437 + $0x30] sm:$0xff]
    %v2858 = vld [vmem:[%s437 + $0x38] sm:$0xff]
    %v2859 = vld [vmem:[%s437 + $0x40] sm:$0xff]
    %v2860 = vld [vmem:[%s437 + $0x48] sm:$0xff]
    %v2861 = vld [vmem:[%s437 + $0x50] sm:$0xff]
    %v2862 = vld [vmem:[%s437 + $0x58] sm:$0xff]
    %v2863 = vld [vmem:[%s437 + $0x60] sm:$0xff]
    %v2864 = vld [vmem:[%s437 + $0x68] sm:$0xff]
    %v2865 = vld [vmem:[%s437 + $0x70] sm:$0xff]
    %v2866 = vld [vmem:[%s437 + $0x78] sm:$0xff]
    %v2867 = vld [vmem:[%s437 + $0x80] sm:$0xff]
    %v2868 = vld [vmem:[%s437 + $0x88] sm:$0xff]
    %v2869 = vld [vmem:[%s437 + $0x90] sm:$0xff]
    %v2870 = vld [vmem:[%s437 + $0x98] sm:$0xff]
    %v2871 = vld [vmem:[%s437 + $0xa0] sm:$0xff]
    %v2872 = vld [vmem:[%s437 + $0xa8] sm:$0xff]
    %v2873 = vld [vmem:[%s437 + $0xb0] sm:$0xff]
    %v2874 = vld [vmem:[%s437 + $0xb8] sm:$0xff]
    %v2875 = vrot.slane %v2458, 3
    %v2876 = vrot.slane %v2459, 3
    %v2877 = vsel %vm462, %v2875, %v2876
    %v2878 = vrot.slane %v2460, 3
    %v2879 = vsel %vm462, %v2876, %v2878
    %v2880 = vrot.slane %v2461, 3
    %v2881 = vsel %vm462, %v2878, %v2880
    %v2882 = vsel %vm104, %v2877, 0
    %v2884 = vsel %vm104, %v2879, 0
    %v2886 = vsel %vm104, %v2881, 0
    %v2888 = vsel %vm104, %v2880, 0
    %2890 = vmatprep.subr.mxu0 %v2852
    %2891 = vmatpush1.msra.mxu0 %v2851
    %2892 = vmatprep.subr.mxu0 %v2854
    %2893 = vmatpush1.msra.mxu0 %v2853
    %2894 = vmatprep.subr.mxu0 %v2856
    %2895 = vmatpush1.msra.mxu0 %v2855
    %2896 = vmatprep.subr.mxu0 %v2858
    %2897 = vmatpush1.msra.mxu0 %v2857
    %2898 = vmatprep.subr.mxu0 %v2860
    %2899 = vmatpush1.msra.mxu0 %v2859
    %2900 = vmatprep.subr.mxu0 %v2862
    %2901 = vmatpush1.msra.mxu0 %v2861
    %2902 = vmatprep.subr.mxu0 %v2864
    %2903 = vmatpush1.msra.mxu0 %v2863
    %2904 = vmatprep.subr.mxu0 %v2866
    %2905 = vmatpush1.msra.mxu0 %v2865
    %2906 = vmatprep.subr.mxu0 %v2868
    %2907 = vmatpush1.msra.mxu0 %v2867
    %2908 = vmatprep.subr.mxu0 %v2870
    %2909 = vmatpush1.msra.mxu0 %v2869
    %2910 = vmatprep.subr.mxu0 %v2872
    %2911 = vmatpush1.msra.mxu0 %v2871
    %2912 = vmatprep.subr.mxu0 %v2874
    %2913 = vmatpush1.msra.mxu0 %v2873
    %2914 = vmatprep.subr.mxu0 0.0
    %2915 = vmatpush1.msra.mxu0 0.0
    %2916 = vmatprep.subr.mxu0 0.0
    %2917 = vmatpush1.msra.mxu0 0.0
    %2918 = vmatprep.subr.mxu0 0.0
    %2919 = vmatpush1.msra.mxu0 0.0
    %2920 = vmatprep.subr.mxu0 0.0
    %2921 = vmatpush1.msra.mxu0 0.0
    %2922 = vmatprep.subr.mxu0 0.0
    %2923 = vmatpush1.msra.mxu0 0.0
    %2924 = vmatprep.subr.mxu0 0.0
    %2925 = vmatpush1.msra.mxu0 0.0
    %2926 = vmatprep.subr.mxu0 0.0
    %2927 = vmatpush1.msra.mxu0 0.0
    %2928 = vmatprep.subr.mxu0 0.0
    %2929 = vmatpush1.msra.mxu0 0.0
    %2930 = vmatprep.subr.mxu0 0.0
    %2931 = vmatpush1.msra.mxu0 0.0
    %2932 = vmatprep.subr.mxu0 0.0
    %2933 = vmatpush1.msra.mxu0 0.0
    %2934 = vmatprep.subr.mxu0 0.0
    %2935 = vmatpush1.msra.mxu0 0.0
    %2936 = vmatprep.subr.mxu0 0.0
    %2937 = vmatpush1.msra.mxu0 0.0
    %2938 = vmatprep.subr.mxu0 0.0
    %2939 = vmatpush1.msra.mxu0 0.0
    %2940 = vmatprep.subr.mxu0 0.0
    %2941 = vmatpush1.msra.mxu0 0.0
    %2942 = vmatprep.subr.mxu0 0.0
    %2943 = vmatpush1.msra.mxu0 0.0
    %2944 = vmatprep.subr.mxu0 0.0
    %2945 = vmatpush1.msra.mxu0 0.0
    %2946 = vmatprep.subr.mxu0 0.0
    %2947 = vmatpush1.msra.mxu0 0.0
    %2948 = vmatprep.subr.mxu0 0.0
    %2949 = vmatpush1.msra.mxu0 0.0
    %2950 = vmatprep.subr.mxu0 0.0
    %2951 = vmatpush1.msra.mxu0 0.0
    %2952 = vmatprep.subr.mxu0 0.0
    %2953 = vmatpush1.msra.mxu0 0.0
    %2954 = vmatprep.mubr.f32.mxu0 0.0
    %2955 = vmatmul.mubr.f32.gmra.mrb[0].mxu0 %v2882
    %v2956 = vpop.f32.mrb[0].mxu0
    %v2957 = vadd.f32 0.0, %v2956
    %v2958 = vpop.f32.mrb[0].mxu0
    %v2959 = vadd.f32 0.0, %v2958
    %2960 = vmatprep.mubr.f32.mxu0 0.0
    %2961 = vmatmul.mubr.f32.gmra.mrb[0].mxu0 %v2884
    %v2962 = vpop.f32.mrb[0].mxu0
    %v2963 = vadd.f32 0.0, %v2962
    %v2964 = vpop.f32.mrb[0].mxu0
    %v2965 = vadd.f32 0.0, %v2964
    %2966 = vmatprep.mubr.f32.mxu0 0.0
    %2967 = vmatmul.mubr.f32.gmra.mrb[0].mxu0 %v2886
    %v2968 = vpop.f32.mrb[0].mxu0
    %v2969 = vadd.f32 0.0, %v2968
    %v2970 = vpop.f32.mrb[0].mxu0
    %v2971 = vadd.f32 0.0, %v2970
    %2972 = vmatprep.mubr.f32.mxu0 0.0
    %2973 = vmatmul.mubr.f32.gmra.mrb[0].mxu0 %v2888
    %v2974 = vpop.f32.mrb[0].mxu0
    %v2975 = vadd.f32 0.0, %v2974
    %v2976 = vpop.f32.mrb[0].mxu0
    %v2977 = vadd.f32 0.0, %v2976
    %2978 = vdwg.mxu0
    %v2979 = vadd.f32 %v2843, %v2957
    %v2980 = vadd.f32 %v2844, %v2959
    %v2981 = vadd.f32 %v2845, %v2963
    %v2982 = vadd.f32 %v2846, %v2965
    %v2983 = vadd.f32 %v2847, %v2969
    %v2984 = vadd.f32 %v2848, %v2971
    %v2985 = vadd.f32 %v2849, %v2975
    %v2986 = vadd.f32 %v2850, %v2977
    %v2987 = vld [vmem:[%s575] sm:$0xff]
    %v2988 = vld [vmem:[%s575 + $0x8] sm:$0xff]
    %v2989 = vld [vmem:[%s575 + $0x10] sm:$0xff]
    %v2990 = vld [vmem:[%s575 + $0x18] sm:$0xff]
    %v2991 = vld [vmem:[%s575 + $0x20] sm:$0xff]
    %v2992 = vld [vmem:[%s575 + $0x28] sm:$0xff]
    %v2993 = vld [vmem:[%s575 + $0x30] sm:$0xff]
    %v2994 = vld [vmem:[%s575 + $0x38] sm:$0xff]
    %v2995 = vld [vmem:[%s575 + $0x40] sm:$0xff]
    %v2996 = vld [vmem:[%s575 + $0x48] sm:$0xff]
    %v2997 = vld [vmem:[%s575 + $0x50] sm:$0xff]
    %v2998 = vld [vmem:[%s575 + $0x58] sm:$0xff]
    %v2999 = vld [vmem:[%s575 + $0x60] sm:$0xff]
    %v3000 = vld [vmem:[%s575 + $0x68] sm:$0xff]
    %v3001 = vld [vmem:[%s575 + $0x70] sm:$0xff]
    %v3002 = vld [vmem:[%s575 + $0x78] sm:$0xff]
    %v3003 = vld [vmem:[%s575 + $0x80] sm:$0xff]
    %v3004 = vld [vmem:[%s575 + $0x88] sm:$0xff]
    %v3005 = vld [vmem:[%s575 + $0x90] sm:$0xff]
    %v3006 = vld [vmem:[%s575 + $0x98] sm:$0xff]
    %v3007 = vld [vmem:[%s575 + $0xa0] sm:$0xff]
    %v3008 = vld [vmem:[%s575 + $0xa8] sm:$0xff]
    %v3009 = vld [vmem:[%s575 + $0xb0] sm:$0xff]
    %v3010 = vld [vmem:[%s575 + $0xb8] sm:$0xff]
    %v3011 = vrot.slane %v2458, 4
    %v3012 = vrot.slane %v2459, 4
    %v3013 = vsel %vm600, %v3011, %v3012
    %v3014 = vrot.slane %v2460, 4
    %v3015 = vsel %vm600, %v3012, %v3014
    %v3016 = vrot.slane %v2461, 4
    %v3017 = vsel %vm600, %v3014, %v3016
    %v3018 = vsel %vm104, %v3013, 0
    %v3020 = vsel %vm104, %v3015, 0
    %v3022 = vsel %vm104, %v3017, 0
    %v3024 = vsel %vm104, %v3016, 0
    %3026 = vmatprep.subr.mxu0 %v2988
    %3027 = vmatpush1.msra.mxu0 %v2987
    %3028 = vmatprep.subr.mxu0 %v2990
    %3029 = vmatpush1.msra.mxu0 %v2989
    %3030 = vmatprep.subr.mxu0 %v2992
    %3031 = vmatpush1.msra.mxu0 %v2991
    %3032 = vmatprep.subr.mxu0 %v2994
    %3033 = vmatpush1.msra.mxu0 %v2993
    %3034 = vmatprep.subr.mxu0 %v2996
    %3035 = vmatpush1.msra.mxu0 %v2995
    %3036 = vmatprep.subr.mxu0 %v2998
    %3037 = vmatpush1.msra.mxu0 %v2997
    %3038 = vmatprep.subr.mxu0 %v3000
    %3039 = vmatpush1.msra.mxu0 %v2999
    %3040 = vmatprep.subr.mxu0 %v3002
    %3041 = vmatpush1.msra.mxu0 %v3001
    %3042 = vmatprep.subr.mxu0 %v3004
    %3043 = vmatpush1.msra.mxu0 %v3003
    %3044 = vmatprep.subr.mxu0 %v3006
    %3045 = vmatpush1.msra.mxu0 %v3005
    %3046 = vmatprep.subr.mxu0 %v3008
    %3047 = vmatpush1.msra.mxu0 %v3007
    %3048 = vmatprep.subr.mxu0 %v3010
    %3049 = vmatpush1.msra.mxu0 %v3009
    %3050 = vmatprep.subr.mxu0 0.0
    %3051 = vmatpush1.msra.mxu0 0.0
    %3052 = vmatprep.subr.mxu0 0.0
    %3053 = vmatpush1.msra.mxu0 0.0
    %3054 = vmatprep.subr.mxu0 0.0
    %3055 = vmatpush1.msra.mxu0 0.0
    %3056 = vmatprep.subr.mxu0 0.0
    %3057 = vmatpush1.msra.mxu0 0.0
    %3058 = vmatprep.subr.mxu0 0.0
    %3059 = vmatpush1.msra.mxu0 0.0
    %3060 = vmatprep.subr.mxu0 0.0
    %3061 = vmatpush1.msra.mxu0 0.0
    %3062 = vmatprep.subr.mxu0 0.0
    %3063 = vmatpush1.msra.mxu0 0.0
    %3064 = vmatprep.subr.mxu0 0.0
    %3065 = vmatpush1.msra.mxu0 0.0
    %3066 = vmatprep.subr.mxu0 0.0
    %3067 = vmatpush1.msra.mxu0 0.0
    %3068 = vmatprep.subr.mxu0 0.0
    %3069 = vmatpush1.msra.mxu0 0.0
    %3070 = vmatprep.subr.mxu0 0.0
    %3071 = vmatpush1.msra.mxu0 0.0
    %3072 = vmatprep.subr.mxu0 0.0
    %3073 = vmatpush1.msra.mxu0 0.0
    %3074 = vmatprep.subr.mxu0 0.0
    %3075 = vmatpush1.msra.mxu0 0.0
    %3076 = vmatprep.subr.mxu0 0.0
    %3077 = vmatpush1.msra.mxu0 0.0
    %3078 = vmatprep.subr.mxu0 0.0
    %3079 = vmatpush1.msra.mxu0 0.0
    %3080 = vmatprep.subr.mxu0 0.0
    %3081 = vmatpush1.msra.mxu0 0.0
    %3082 = vmatprep.subr.mxu0 0.0
    %3083 = vmatpush1.msra.mxu0 0.0
    %3084 = vmatprep.subr.mxu0 0.0
    %3085 = vmatpush1.msra.mxu0 0.0
    %3086 = vmatprep.subr.mxu0 0.0
    %3087 = vmatpush1.msra.mxu0 0.0
    %3088 = vmatprep.subr.mxu0 0.0
    %3089 = vmatpush1.msra.mxu0 0.0
    %3090 = vmatprep.mubr.f32.mxu0 0.0
    %3091 = vmatmul.mubr.f32.gmra.mrb[0].mxu0 %v3018
    %v3092 = vpop.f32.mrb[0].mxu0
    %v3093 = vadd.f32 0.0, %v3092
    %v3094 = vpop.f32.mrb[0].mxu0
    %v3095 = vadd.f32 0.0, %v3094
    %3096 = vmatprep.mubr.f32.mxu0 0.0
    %3097 = vmatmul.mubr.f32.gmra.mrb[0].mxu0 %v3020
    %v3098 = vpop.f32.mrb[0].mxu0
    %v3099 = vadd.f32 0.0, %v3098
    %v3100 = vpop.f32.mrb[0].mxu0
    %v3101 = vadd.f32 0.0, %v3100
    %3102 = vmatprep.mubr.f32.mxu0 0.0
    %3103 = vmatmul.mubr.f32.gmra.mrb[0].mxu0 %v3022
    %v3104 = vpop.f32.mrb[0].mxu0
    %v3105 = vadd.f32 0.0, %v3104
    %v3106 = vpop.f32.mrb[0].mxu0
    %v3107 = vadd.f32 0.0, %v3106
    %3108 = vmatprep.mubr.f32.mxu0 0.0
    %3109 = vmatmul.mubr.f32.gmra.mrb[0].mxu0 %v3024
    %v3110 = vpop.f32.mrb[0].mxu0
    %v3111 = vadd.f32 0.0, %v3110
    %v3112 = vpop.f32.mrb[0].mxu0
    %v3113 = vadd.f32 0.0, %v3112
    %3114 = vdwg.mxu0
    %v3115 = vadd.f32 %v2979, %v3093
    %v3116 = vadd.f32 %v2980, %v3095
    %v3117 = vadd.f32 %v2981, %v3099
    %v3118 = vadd.f32 %v2982, %v3101
    %v3119 = vadd.f32 %v2983, %v3105
    %v3120 = vadd.f32 %v2984, %v3107
    %v3121 = vadd.f32 %v2985, %v3111
    %v3122 = vadd.f32 %v2986, %v3113
    %v3123 = vld [vmem:[%s2] sm:$0x3]
    %v3125 = vlaneseq
    %v3126 = vshrl.u32 %v3125, 7
    %v3127 = vsub.s32 0, %v3126
    %v3128 = vrot.slane %v3123, %v3127
    %v3129 = vlaneseq
    %v3130 = vshrl.u32 %v3129, 7
    %v3131 = vsub.s32 1, %v3130
    %v3132 = vrot.slane %v3123, %v3131
    %v3135 = vadd.f32 %v3115, %v3128
    %v3136 = vadd.f32 %v3116, %v3132
    %v3137 = vadd.f32 %v3117, %v3128
    %v3138 = vadd.f32 %v3118, %v3132
    %v3139 = vadd.f32 %v3119, %v3128
    %v3140 = vadd.f32 %v3120, %v3132
    %v3141 = vadd.f32 %v3121, %v3128
    %v3142 = vadd.f32 %v3122, %v3132
    %v3143 = vtanh.pop %v3135
    %v3144 = vtanh.pop %v3136
    %v3145 = vtanh.pop %v3137
    %v3146 = vtanh.pop %v3138
    %v3147 = vtanh.pop %v3139
    %v3148 = vtanh.pop %v3140
    %v3149 = vtanh.pop %v3141
    %v3150 = vtanh.pop %v3142
    %v3159 = vrot.slane %v3143, 1
    %v3160 = vrot.slane %v3145, 1
    %v3161 = vsel %vm96, %v3159, %v3160
    %v3162 = vrot.slane %v3144, 1
    %v3163 = vrot.slane %v3146, 1
    %v3164 = vsel %vm96, %v3162, %v3163
    %v3165 = vrot.slane %v3147, 1
    %v3166 = vsel %vm96, %v3160, %v3165
    %v3167 = vrot.slane %v3148, 1
    %v3168 = vsel %vm96, %v3163, %v3167
    %v3169 = vrot.slane %v3149, 1
    %v3170 = vsel %vm96, %v3165, %v3169
    %v3171 = vrot.slane %v3150, 1
    %v3172 = vsel %vm96, %v3167, %v3171
    %v3181 = vmax.f32 %v3143, %v3161
    %v3182 = vmax.f32 %v3144, %v3164
    %v3183 = vmax.f32 %v3145, %v3166
    %v3184 = vmax.f32 %v3146, %v3168
    %v3185 = vmax.f32 %v3147, %v3170
    %v3186 = vmax.f32 %v3148, %v3172
    %v3187 = vmax.f32 %v3149, %v3169
    %v3188 = vmax.f32 %v3150, %v3171
    %v3191 = vcombine.low %v3181, %v3182
    %v3193 = vunpack.c.l.s4 1966171168
    %v3194 = vunpack.c.0.s8 %v3193
    %v3195 = vlaneseq
    %v3196 = vshrl.u32 %v3195, 7
    %v3197 = vsub.s32 %v3194, %v3196
    %v3198 = vrot.slane %v3191, %v3197
    %v3200 = vunpack.c.l.s4 1966171168
    %v3201 = vunpack.c.0.s8 %v3200
    %v3202 = vlaneseq
    %v3203 = vshrl.u32 %v3202, 7
    %v3204 = vsub.s32 %v3201, %v3203
    %v3205 = vrot.slane %v3198, %v3204
    %3207 = vst.msk [vmem:[#allocation2] ss:$8 sm:$0x3] %vm800, %v3205
    %3208 = vst.msk [vmem:[#allocation2] ss:$8 sm:$0x0] %vm800, %v3205
    %v3209 = vcombine.high %v3205, %v3205
    %3211 = vst.msk [vmem:[%s805] ss:$8 sm:$0x3] %vm800, %v3209
    %3212 = vst.msk [vmem:[%s805] ss:$8 sm:$0x0] %vm800, %v3209
    %v3213 = vcombine.high %v3181, %v3182
    %v3215 = vunpack.c.l.s4 1966171168
    %v3216 = vunpack.c.0.s8 %v3215
    %v3217 = vlaneseq
    %v3218 = vshrl.u32 %v3217, 7
    %v3219 = vsub.s32 %v3216, %v3218
    %v3220 = vrot.slane %v3213, %v3219
    %v3222 = vunpack.c.l.s4 1966171168
    %v3223 = vunpack.c.0.s8 %v3222
    %v3224 = vlaneseq
    %v3225 = vshrl.u32 %v3224, 7
    %v3226 = vsub.s32 %v3223, %v3225
    %v3227 = vrot.slane %v3220, %v3226
    %3229 = vst.msk [vmem:[%s824] ss:$8 sm:$0x3] %vm800, %v3227
    %3230 = vst.msk [vmem:[%s824] ss:$8 sm:$0x0] %vm800, %v3227
    %v3231 = vcombine.high %v3227, %v3227
    %3233 = vst.msk [vmem:[%s829] ss:$8 sm:$0x3] %vm800, %v3231
    %3234 = vst.msk [vmem:[%s829] ss:$8 sm:$0x0] %vm800, %v3231
    %v3237 = vcombine.low %v3183, %v3184
    %v3239 = vunpack.c.l.s4 1966171168
    %v3240 = vunpack.c.0.s8 %v3239
    %v3241 = vlaneseq
    %v3242 = vshrl.u32 %v3241, 7
    %v3243 = vsub.s32 %v3240, %v3242
    %v3244 = vrot.slane %v3237, %v3243
    %v3246 = vunpack.c.l.s4 1966171168
    %v3247 = vunpack.c.0.s8 %v3246
    %v3248 = vlaneseq
    %v3249 = vshrl.u32 %v3248, 7
    %v3250 = vsub.s32 %v3247, %v3249
    %v3251 = vrot.slane %v3244, %v3250
    %3253 = vst.msk [vmem:[%s850] ss:$8 sm:$0x3] %vm800, %v3251
    %3254 = vst.msk [vmem:[%s850] ss:$8 sm:$0x0] %vm800, %v3251
    %v3255 = vcombine.high %v3251, %v3251
    %3257 = vst.msk [vmem:[%s855] ss:$8 sm:$0x3] %vm800, %v3255
    %3258 = vst.msk [vmem:[%s855] ss:$8 sm:$0x0] %vm800, %v3255
    %v3259 = vcombine.high %v3183, %v3184
    %v3261 = vunpack.c.l.s4 1966171168
    %v3262 = vunpack.c.0.s8 %v3261
    %v3263 = vlaneseq
    %v3264 = vshrl.u32 %v3263, 7
    %v3265 = vsub.s32 %v3262, %v3264
    %v3266 = vrot.slane %v3259, %v3265
    %v3268 = vunpack.c.l.s4 1966171168
    %v3269 = vunpack.c.0.s8 %v3268
    %v3270 = vlaneseq
    %v3271 = vshrl.u32 %v3270, 7
    %v3272 = vsub.s32 %v3269, %v3271
    %v3273 = vrot.slane %v3266, %v3272
    %3275 = vst.msk [vmem:[%s874] ss:$8 sm:$0x3] %vm800, %v3273
    %3276 = vst.msk [vmem:[%s874] ss:$8 sm:$0x0] %vm800, %v3273
    %v3277 = vcombine.high %v3273, %v3273
    %3279 = vst.msk [vmem:[%s879] ss:$8 sm:$0x3] %vm800, %v3277
    %3280 = vst.msk [vmem:[%s879] ss:$8 sm:$0x0] %vm800, %v3277
    %v3283 = vcombine.low %v3185, %v3186
    %v3285 = vunpack.c.l.s4 1966171168
    %v3286 = vunpack.c.0.s8 %v3285
    %v3287 = vlaneseq
    %v3288 = vshrl.u32 %v3287, 7
    %v3289 = vsub.s32 %v3286, %v3288
    %v3290 = vrot.slane %v3283, %v3289
    %v3292 = vunpack.c.l.s4 1966171168
    %v3293 = vunpack.c.0.s8 %v3292
    %v3294 = vlaneseq
    %v3295 = vshrl.u32 %v3294, 7
    %v3296 = vsub.s32 %v3293, %v3295
    %v3297 = vrot.slane %v3290, %v3296
    %3299 = vst.msk [vmem:[%s900] ss:$8 sm:$0x3] %vm800, %v3297
    %3300 = vst.msk [vmem:[%s900] ss:$8 sm:$0x0] %vm800, %v3297
    %v3301 = vcombine.high %v3297, %v3297
    %3303 = vst.msk [vmem:[%s905] ss:$8 sm:$0x3] %vm800, %v3301
    %3304 = vst.msk [vmem:[%s905] ss:$8 sm:$0x0] %vm800, %v3301
    %v3305 = vcombine.high %v3185, %v3186
    %v3307 = vunpack.c.l.s4 1966171168
    %v3308 = vunpack.c.0.s8 %v3307
    %v3309 = vlaneseq
    %v3310 = vshrl.u32 %v3309, 7
    %v3311 = vsub.s32 %v3308, %v3310
    %v3312 = vrot.slane %v3305, %v3311
    %v3314 = vunpack.c.l.s4 1966171168
    %v3315 = vunpack.c.0.s8 %v3314
    %v3316 = vlaneseq
    %v3317 = vshrl.u32 %v3316, 7
    %v3318 = vsub.s32 %v3315, %v3317
    %v3319 = vrot.slane %v3312, %v3318
    %3321 = vst.msk [vmem:[%s924] ss:$8 sm:$0x3] %vm800, %v3319
    %3322 = vst.msk [vmem:[%s924] ss:$8 sm:$0x0] %vm800, %v3319
    %v3323 = vcombine.high %v3319, %v3319
    %3325 = vst.msk [vmem:[%s929] ss:$8 sm:$0x3] %vm800, %v3323
    %3326 = vst.msk [vmem:[%s929] ss:$8 sm:$0x0] %vm800, %v3323
    %v3329 = vcombine.low %v3187, %v3188
    %v3331 = vunpack.c.l.s4 1966171168
    %v3332 = vunpack.c.0.s8 %v3331
    %v3333 = vlaneseq
    %v3334 = vshrl.u32 %v3333, 7
    %v3335 = vsub.s32 %v3332, %v3334
    %v3336 = vrot.slane %v3329, %v3335
    %v3338 = vunpack.c.l.s4 1966171168
    %v3339 = vunpack.c.0.s8 %v3338
    %v3340 = vlaneseq
    %v3341 = vshrl.u32 %v3340, 7
    %v3342 = vsub.s32 %v3339, %v3341
    %v3343 = vrot.slane %v3336, %v3342
    %3345 = vst.msk [vmem:[%s950] ss:$8 sm:$0x3] %vm800, %v3343
    %3346 = vst.msk [vmem:[%s950] ss:$8 sm:$0x0] %vm800, %v3343
    %v3347 = vcombine.high %v3343, %v3343
    %3349 = vst.msk [vmem:[%s955] ss:$8 sm:$0x3] %vm800, %v3347
    %3350 = vst.msk [vmem:[%s955] ss:$8 sm:$0x0] %vm800, %v3347
    %v3351 = vld [vmem:[#allocation2] sm:$0xff]
    %v3352 = vld [vmem:[#allocation2 + $0x8] sm:$0xff]
    %v3353 = vld [vmem:[#allocation2 + $0x10] sm:$0x3f]
    %v3354 = vld [vmem:[#allocation2 + $0x18] sm:$0x3f]
    %3359 = vrot.lane.b32.xlu0 %v3351, 122
    %v3360 = vpop.permute.xlu0 %3359
    %3361 = vrot.lane.b32.xlu0 %v3352, 122
    %v3362 = vpop.permute.xlu0 %3361
    %3363 = vrot.lane.b32.xlu0 %v3353, 122
    %v3364 = vpop.permute.xlu0 %3363
    %3365 = vrot.lane.b32.xlu0 %v3354, 122
    %v3366 = vpop.permute.xlu0 %3365
    %v3367 = vsel %vm974, %v3360, %v3362
    %v3368 = vsel %vm974, %v3364, %v3366
    %v3373 = vmax.f32 %v3351, %v3367
    %v3374 = vmax.f32 %v3352, %v3362
    %v3375 = vmax.f32 %v3353, %v3368
    %v3376 = vmax.f32 %v3354, %v3366
    %3377 = vst.msk [vmem:[#allocation3] sm:$0xff] %vm985, %v3373
    %3378 = vst.msk [vmem:[#allocation3 + $0x8] sm:$0x3f] %vm987, %v3375
    %3381 = vrot.lane.b32.xlu0 %v3373, 122
    %v3382 = vpop.permute.xlu0 %3381
    %3383 = vrot.lane.b32.xlu0 %v3375, 122
    %v3384 = vpop.permute.xlu0 %3383
    %3387 = vst.msk [vmem:[#allocation3] sm:$0xff] %vm997, %v3382
    %3388 = vst.msk [vmem:[#allocation3 + $0x8] sm:$0x3f] %vm999, %v3384
    %3389 = vrot.lane.b32.xlu0 %v3373, 116
    %v3390 = vpop.permute.xlu0 %3389
    %3391 = vrot.lane.b32.xlu0 %v3375, 116
    %v3392 = vpop.permute.xlu0 %3391
    %3395 = vst.msk [vmem:[#allocation3] sm:$0xff] %vm1007, %v3390
    %3396 = vst.msk [vmem:[#allocation3 + $0x8] sm:$0x3f] %vm1009, %v3392
    %3397 = vrot.lane.b32.xlu0 %v3373, 110
    %v3398 = vpop.permute.xlu0 %3397
    %3399 = vrot.lane.b32.xlu0 %v3375, 110
    %v3400 = vpop.permute.xlu0 %3399
    %3403 = vst.msk [vmem:[#allocation3] sm:$0xff] %vm1017, %v3398
    %3404 = vst.msk [vmem:[#allocation3 + $0x8] sm:$0x3f] %vm1019, %v3400
    %3405 = vrot.lane.b32.xlu0 %v3373, 104
    %v3406 = vpop.permute.xlu0 %3405
    %3407 = vrot.lane.b32.xlu0 %v3375, 104
    %v3408 = vpop.permute.xlu0 %3407
    %3411 = vst.msk [vmem:[#allocation3] sm:$0xff] %vm1027, %v3406
    %3412 = vst.msk [vmem:[#allocation3 + $0x8] sm:$0x3f] %vm1029, %v3408
    %3413 = vrot.lane.b32.xlu0 %v3373, 98
    %v3414 = vpop.permute.xlu0 %3413
    %3415 = vrot.lane.b32.xlu0 %v3375, 98
    %v3416 = vpop.permute.xlu0 %3415
    %3419 = vst.msk [vmem:[#allocation3] sm:$0xff] %vm1037, %v3414
    %3420 = vst.msk [vmem:[#allocation3 + $0x8] sm:$0x3f] %vm1039, %v3416
    %3421 = vrot.lane.b32.xlu0 %v3373, 92
    %v3422 = vpop.permute.xlu0 %3421
    %3423 = vrot.lane.b32.xlu0 %v3375, 92
    %v3424 = vpop.permute.xlu0 %3423
    %3427 = vst.msk [vmem:[#allocation3] sm:$0xff] %vm1047, %v3422
    %3428 = vst.msk [vmem:[#allocation3 + $0x8] sm:$0x3f] %vm1049, %v3424
    %3429 = vrot.lane.b32.xlu0 %v3373, 86
    %v3430 = vpop.permute.xlu0 %3429
    %3431 = vrot.lane.b32.xlu0 %v3375, 86
    %v3432 = vpop.permute.xlu0 %3431
    %3435 = vst.msk [vmem:[#allocation3] sm:$0xff] %vm1057, %v3430
    %3436 = vst.msk [vmem:[#allocation3 + $0x8] sm:$0x3f] %vm1059, %v3432
    %3437 = vrot.lane.b32.xlu0 %v3373, 80
    %v3438 = vpop.permute.xlu0 %3437
    %3439 = vrot.lane.b32.xlu0 %v3375, 80
    %v3440 = vpop.permute.xlu0 %3439
    %3443 = vst.msk [vmem:[#allocation3] sm:$0xff] %vm1067, %v3438
    %3444 = vst.msk [vmem:[#allocation3 + $0x8] sm:$0x3f] %vm1069, %v3440
    %3445 = vrot.lane.b32.xlu0 %v3373, 74
    %v3446 = vpop.permute.xlu0 %3445
    %3447 = vrot.lane.b32.xlu0 %v3375, 74
    %v3448 = vpop.permute.xlu0 %3447
    %3451 = vst.msk [vmem:[#allocation3] sm:$0xff] %vm1077, %v3446
    %3452 = vst.msk [vmem:[#allocation3 + $0x8] sm:$0x3f] %vm1079, %v3448
    %3453 = vrot.lane.b32.xlu0 %v3373, 68
    %v3454 = vpop.permute.xlu0 %3453
    %3455 = vrot.lane.b32.xlu0 %v3375, 68
    %v3456 = vpop.permute.xlu0 %3455
    %3459 = vst.msk [vmem:[#allocation3] sm:$0xff] %vm1087, %v3454
    %3460 = vst.msk [vmem:[#allocation3 + $0x8] sm:$0x3f] %vm1089, %v3456
    %3463 = vrot.lane.b32.xlu0 %v3374, 62
    %v3464 = vpop.permute.xlu0 %3463
    %3465 = vrot.lane.b32.xlu0 %v3376, 62
    %v3466 = vpop.permute.xlu0 %3465
    %3469 = vst.msk [vmem:[#allocation3] sm:$0xff] %vm1099, %v3464
    %3470 = vst.msk [vmem:[#allocation3 + $0x8] sm:$0x3f] %vm1101, %v3466
    %3471 = vrot.lane.b32.xlu0 %v3374, 56
    %v3472 = vpop.permute.xlu0 %3471
    %3473 = vrot.lane.b32.xlu0 %v3376, 56
    %v3474 = vpop.permute.xlu0 %3473
    %3477 = vst.msk [vmem:[#allocation3] sm:$0xff] %vm1109, %v3472
    %3478 = vst.msk [vmem:[#allocation3 + $0x8] sm:$0x3f] %vm1111, %v3474
    %3479 = vrot.lane.b32.xlu0 %v3374, 50
    %v3480 = vpop.permute.xlu0 %3479
    %3481 = vrot.lane.b32.xlu0 %v3376, 50
    %v3482 = vpop.permute.xlu0 %3481
    %3485 = vst.msk [vmem:[#allocation3] sm:$0xff] %vm1119, %v3480
    %3486 = vst.msk [vmem:[#allocation3 + $0x8] sm:$0x3f] %vm1121, %v3482
    %v3487 = vld [vmem:[#allocation3] sm:$0xff]
    %v3488 = vld [vmem:[#allocation3 + $0x8] sm:$0x3f]
    %v3489 = vld [vmem:[%s3] sm:$0xff]
    %v3490 = vld [vmem:[%s3 + $0x8] sm:$0xff]
    %v3491 = vld [vmem:[%s3 + $0x10] sm:$0xff]
    %v3492 = vld [vmem:[%s3 + $0x18] sm:$0xff]
    %v3493 = vld [vmem:[%s3 + $0x20] sm:$0xff]
    %v3494 = vld [vmem:[%s3 + $0x28] sm:$0xff]
    %v3495 = vld [vmem:[%s3 + $0x30] sm:$0xff]
    %v3496 = vld [vmem:[%s3 + $0x38] sm:$0xff]
    %v3497 = vld [vmem:[%s3 + $0x40] sm:$0xff]
    %v3498 = vld [vmem:[%s3 + $0x48] sm:$0xff]
    %v3499 = vld [vmem:[%s3 + $0x50] sm:$0xff]
    %v3500 = vld [vmem:[%s3 + $0x58] sm:$0xff]
    %v3501 = vld [vmem:[%s3 + $0x60] sm:$0xff]
    %v3502 = vld [vmem:[%s3 + $0x68] sm:$0xff]
    %v3503 = vld [vmem:[%s3 + $0x70] sm:$0xff]
    %v3504 = vld [vmem:[%s3 + $0x78] sm:$0xff]
    %v3505 = vld [vmem:[%s3 + $0x80] sm:$0xff]
    %v3506 = vld [vmem:[%s3 + $0x88] sm:$0xff]
    %v3507 = vld [vmem:[%s3 + $0x90] sm:$0xff]
    %v3508 = vld [vmem:[%s3 + $0x98] sm:$0xff]
    %v3509 = vld [vmem:[%s3 + $0xa0] sm:$0xf]
    %v3510 = vld [vmem:[%s3 + $0xa8] sm:$0xf]
    %v3511 = vld [vmem:[%s1147] sm:$0xff]
    %v3512 = vld [vmem:[%s1147 + $0x8] sm:$0xff]
    %v3513 = vld [vmem:[%s1147 + $0x10] sm:$0xff]
    %v3514 = vld [vmem:[%s1147 + $0x18] sm:$0xff]
    %v3515 = vld [vmem:[%s1147 + $0x20] sm:$0xff]
    %v3516 = vld [vmem:[%s1147 + $0x28] sm:$0xff]
    %v3517 = vld [vmem:[%s1147 + $0x30] sm:$0xff]
    %v3518 = vld [vmem:[%s1147 + $0x38] sm:$0xff]
    %v3519 = vld [vmem:[%s1147 + $0x40] sm:$0xff]
    %v3520 = vld [vmem:[%s1147 + $0x48] sm:$0xff]
    %v3521 = vld [vmem:[%s1147 + $0x50] sm:$0xff]
    %v3522 = vld [vmem:[%s1147 + $0x58] sm:$0xff]
    %v3523 = vld [vmem:[%s1147 + $0x60] sm:$0xff]
    %v3524 = vld [vmem:[%s1147 + $0x68] sm:$0xff]
    %v3525 = vld [vmem:[%s1147 + $0x70] sm:$0xff]
    %v3526 = vld [vmem:[%s1147 + $0x78] sm:$0xff]
    %v3527 = vld [vmem:[%s1147 + $0x80] sm:$0xff]
    %v3528 = vld [vmem:[%s1147 + $0x88] sm:$0xff]
    %v3529 = vld [vmem:[%s1147 + $0x90] sm:$0xff]
    %v3530 = vld [vmem:[%s1147 + $0x98] sm:$0xff]
    %v3531 = vld [vmem:[%s1147 + $0xa0] sm:$0xf]
    %v3532 = vld [vmem:[%s1147 + $0xa8] sm:$0xf]
    %v3535 = vrot.slane %v3487, 1
    %v3536 = vrot.slane %v3488, 1
    %v3537 = vsel %vm96, %v3535, %v3536
    %v3538 = vsel %vm1175, %v3537, 0
    %v3540 = vsel %vm1175, %v3536, 0
    %v3543 = vsel %vm600, %v3531, 0
    %v3546 = vsel %vm600, %v3532, 0
    %3548 = vmatprep.subr.mxu0 %v3512
    %3549 = vmatpush1.msra.mxu0 %v3511
    %3550 = vmatprep.subr.mxu0 %v3514
    %3551 = vmatpush1.msra.mxu0 %v3513
    %3552 = vmatprep.subr.mxu0 %v3516
    %3553 = vmatpush1.msra.mxu0 %v3515
    %3554 = vmatprep.subr.mxu0 %v3518
    %3555 = vmatpush1.msra.mxu0 %v3517
    %3556 = vmatprep.subr.mxu0 %v3520
    %3557 = vmatpush1.msra.mxu0 %v3519
    %3558 = vmatprep.subr.mxu0 %v3522
    %3559 = vmatpush1.msra.mxu0 %v3521
    %3560 = vmatprep.subr.mxu0 %v3524
    %3561 = vmatpush1.msra.mxu0 %v3523
    %3562 = vmatprep.subr.mxu0 %v3526
    %3563 = vmatpush1.msra.mxu0 %v3525
    %3564 = vmatprep.subr.mxu0 %v3528
    %3565 = vmatpush1.msra.mxu0 %v3527
    %3566 = vmatprep.subr.mxu0 %v3530
    %3567 = vmatpush1.msra.mxu0 %v3529
    %3568 = vmatprep.subr.mxu0 %v3546
    %3569 = vmatpush1.msra.mxu0 %v3543
    %3570 = vmatprep.subr.mxu0 0.0
    %3571 = vmatpush1.msra.mxu0 0.0
    %3572 = vmatprep.subr.mxu0 0.0
    %3573 = vmatpush1.msra.mxu0 0.0
    %3574 = vmatprep.subr.mxu0 0.0
    %3575 = vmatpush1.msra.mxu0 0.0
    %3576 = vmatprep.subr.mxu0 0.0
    %3577 = vmatpush1.msra.mxu0 0.0
    %3578 = vmatprep.subr.mxu0 0.0
    %3579 = vmatpush1.msra.mxu0 0.0
    %3580 = vmatprep.subr.mxu0 0.0
    %3581 = vmatpush1.msra.mxu0 0.0
    %3582 = vmatprep.subr.mxu0 0.0
    %3583 = vmatpush1.msra.mxu0 0.0
    %3584 = vmatprep.subr.mxu0 0.0
    %3585 = vmatpush1.msra.mxu0 0.0
    %3586 = vmatprep.subr.mxu0 0.0
    %3587 = vmatpush1.msra.mxu0 0.0
    %3588 = vmatprep.subr.mxu0 0.0
    %3589 = vmatpush1.msra.mxu0 0.0
    %3590 = vmatprep.subr.mxu0 0.0
    %3591 = vmatpush1.msra.mxu0 0.0
    %3592 = vmatprep.subr.mxu0 0.0
    %3593 = vmatpush1.msra.mxu0 0.0
    %3594 = vmatprep.subr.mxu0 0.0
    %3595 = vmatpush1.msra.mxu0 0.0
    %3596 = vmatprep.subr.mxu0 0.0
    %3597 = vmatpush1.msra.mxu0 0.0
    %3598 = vmatprep.subr.mxu0 0.0
    %3599 = vmatpush1.msra.mxu0 0.0
    %3600 = vmatprep.subr.mxu0 0.0
    %3601 = vmatpush1.msra.mxu0 0.0
    %3602 = vmatprep.subr.mxu0 0.0
    %3603 = vmatpush1.msra.mxu0 0.0
    %3604 = vmatprep.subr.mxu0 0.0
    %3605 = vmatpush1.msra.mxu0 0.0
    %3606 = vmatprep.subr.mxu0 0.0
    %3607 = vmatpush1.msra.mxu0 0.0
    %3608 = vmatprep.subr.mxu0 0.0
    %3609 = vmatpush1.msra.mxu0 0.0
    %3610 = vmatprep.subr.mxu0 0.0
    %3611 = vmatpush1.msra.mxu0 0.0
    %3612 = vmatprep.mubr.f32.mxu0 0.0
    %3613 = vmatmul.mubr.f32.gmra.mrb[0].mxu0 %v3538
    %v3614 = vpop.f32.mrb[0].mxu0
    %v3615 = vadd.f32 0.0, %v3614
    %v3616 = vpop.f32.mrb[0].mxu0
    %v3617 = vadd.f32 0.0, %v3616
    %3618 = vmatprep.mubr.f32.mxu0 0.0
    %3619 = vmatmul.mubr.f32.gmra.mrb[0].mxu0 %v3540
    %v3620 = vpop.f32.mrb[0].mxu0
    %v3621 = vadd.f32 0.0, %v3620
    %v3622 = vpop.f32.mrb[0].mxu0
    %v3623 = vadd.f32 0.0, %v3622
    %3624 = vdwg.mxu0
    %v3625 = vsel %vm1175, %v3487, 0
    %v3627 = vsel %vm1175, %v3488, 0
    %v3630 = vsel %vm600, %v3509, 0
    %v3633 = vsel %vm600, %v3510, 0
    %3635 = vmatprep.subr.mxu0 %v3490
    %3636 = vmatpush1.msra.mxu0 %v3489
    %3637 = vmatprep.subr.mxu0 %v3492
    %3638 = vmatpush1.msra.mxu0 %v3491
    %3639 = vmatprep.subr.mxu0 %v3494
    %3640 = vmatpush1.msra.mxu0 %v3493
    %3641 = vmatprep.subr.mxu0 %v3496
    %3642 = vmatpush1.msra.mxu0 %v3495
    %3643 = vmatprep.subr.mxu0 %v3498
    %3644 = vmatpush1.msra.mxu0 %v3497
    %3645 = vmatprep.subr.mxu0 %v3500
    %3646 = vmatpush1.msra.mxu0 %v3499
    %3647 = vmatprep.subr.mxu0 %v3502
    %3648 = vmatpush1.msra.mxu0 %v3501
    %3649 = vmatprep.subr.mxu0 %v3504
    %3650 = vmatpush1.msra.mxu0 %v3503
    %3651 = vmatprep.subr.mxu0 %v3506
    %3652 = vmatpush1.msra.mxu0 %v3505
    %3653 = vmatprep.subr.mxu0 %v3508
    %3654 = vmatpush1.msra.mxu0 %v3507
    %3655 = vmatprep.subr.mxu0 %v3633
    %3656 = vmatpush1.msra.mxu0 %v3630
    %3657 = vmatprep.subr.mxu0 0.0
    %3658 = vmatpush1.msra.mxu0 0.0
    %3659 = vmatprep.subr.mxu0 0.0
    %3660 = vmatpush1.msra.mxu0 0.0
    %3661 = vmatprep.subr.mxu0 0.0
    %3662 = vmatpush1.msra.mxu0 0.0
    %3663 = vmatprep.subr.mxu0 0.0
    %3664 = vmatpush1.msra.mxu0 0.0
    %3665 = vmatprep.subr.mxu0 0.0
    %3666 = vmatpush1.msra.mxu0 0.0
    %3667 = vmatprep.subr.mxu0 0.0
    %3668 = vmatpush1.msra.mxu0 0.0
    %3669 = vmatprep.subr.mxu0 0.0
    %3670 = vmatpush1.msra.mxu0 0.0
    %3671 = vmatprep.subr.mxu0 0.0
    %3672 = vmatpush1.msra.mxu0 0.0
    %3673 = vmatprep.subr.mxu0 0.0
    %3674 = vmatpush1.msra.mxu0 0.0
    %3675 = vmatprep.subr.mxu0 0.0
    %3676 = vmatpush1.msra.mxu0 0.0
    %3677 = vmatprep.subr.mxu0 0.0
    %3678 = vmatpush1.msra.mxu0 0.0
    %3679 = vmatprep.subr.mxu0 0.0
    %3680 = vmatpush1.msra.mxu0 0.0
    %3681 = vmatprep.subr.mxu0 0.0
    %3682 = vmatpush1.msra.mxu0 0.0
    %3683 = vmatprep.subr.mxu0 0.0
    %3684 = vmatpush1.msra.mxu0 0.0
    %3685 = vmatprep.subr.mxu0 0.0
    %3686 = vmatpush1.msra.mxu0 0.0
    %3687 = vmatprep.subr.mxu0 0.0
    %3688 = vmatpush1.msra.mxu0 0.0
    %3689 = vmatprep.subr.mxu0 0.0
    %3690 = vmatpush1.msra.mxu0 0.0
    %3691 = vmatprep.subr.mxu0 0.0
    %3692 = vmatpush1.msra.mxu0 0.0
    %3693 = vmatprep.subr.mxu0 0.0
    %3694 = vmatpush1.msra.mxu0 0.0
    %3695 = vmatprep.subr.mxu0 0.0
    %3696 = vmatpush1.msra.mxu0 0.0
    %3697 = vmatprep.subr.mxu0 0.0
    %3698 = vmatpush1.msra.mxu0 0.0
    %3699 = vmatprep.mubr.f32.mxu0 0.0
    %3700 = vmatmul.mubr.f32.gmra.mrb[0].mxu0 %v3625
    %v3701 = vpop.f32.mrb[0].mxu0
    %v3702 = vadd.f32 %v3615, %v3701
    %v3703 = vpop.f32.mrb[0].mxu0
    %v3704 = vadd.f32 %v3617, %v3703
    %3705 = vmatprep.mubr.f32.mxu0 0.0
    %3706 = vmatmul.mubr.f32.gmra.mrb[0].mxu0 %v3627
    %v3707 = vpop.f32.mrb[0].mxu0
    %v3708 = vadd.f32 %v3621, %v3707
    %v3709 = vpop.f32.mrb[0].mxu0
    %v3710 = vadd.f32 %v3623, %v3709
    %3711 = vdwg.mxu0
    %v3712 = vld [vmem:[%s1350] sm:$0xff]
    %v3713 = vld [vmem:[%s1350 + $0x8] sm:$0xff]
    %v3714 = vld [vmem:[%s1350 + $0x10] sm:$0xff]
    %v3715 = vld [vmem:[%s1350 + $0x18] sm:$0xff]
    %v3716 = vld [vmem:[%s1350 + $0x20] sm:$0xff]
    %v3717 = vld [vmem:[%s1350 + $0x28] sm:$0xff]
    %v3718 = vld [vmem:[%s1350 + $0x30] sm:$0xff]
    %v3719 = vld [vmem:[%s1350 + $0x38] sm:$0xff]
    %v3720 = vld [vmem:[%s1350 + $0x40] sm:$0xff]
    %v3721 = vld [vmem:[%s1350 + $0x48] sm:$0xff]
    %v3722 = vld [vmem:[%s1350 + $0x50] sm:$0xff]
    %v3723 = vld [vmem:[%s1350 + $0x58] sm:$0xff]
    %v3724 = vld [vmem:[%s1350 + $0x60] sm:$0xff]
    %v3725 = vld [vmem:[%s1350 + $0x68] sm:$0xff]
    %v3726 = vld [vmem:[%s1350 + $0x70] sm:$0xff]
    %v3727 = vld [vmem:[%s1350 + $0x78] sm:$0xff]
    %v3728 = vld [vmem:[%s1350 + $0x80] sm:$0xff]
    %v3729 = vld [vmem:[%s1350 + $0x88] sm:$0xff]
    %v3730 = vld [vmem:[%s1350 + $0x90] sm:$0xff]
    %v3731 = vld [vmem:[%s1350 + $0x98] sm:$0xff]
    %v3732 = vld [vmem:[%s1350 + $0xa0] sm:$0xf]
    %v3733 = vld [vmem:[%s1350 + $0xa8] sm:$0xf]
    %v3734 = vrot.slane %v3487, 2
    %v3735 = vrot.slane %v3488, 2
    %v3736 = vsel %vm324, %v3734, %v3735
    %v3737 = vsel %vm1175, %v3736, 0
    %v3739 = vsel %vm1175, %v3735, 0
    %v3742 = vsel %vm600, %v3732, 0
    %v3745 = vsel %vm600, %v3733, 0
    %3747 = vmatprep.subr.mxu0 %v3713
    %3748 = vmatpush1.msra.mxu0 %v3712
    %3749 = vmatprep.subr.mxu0 %v3715
    %3750 = vmatpush1.msra.mxu0 %v3714
    %3751 = vmatprep.subr.mxu0 %v3717
    %3752 = vmatpush1.msra.mxu0 %v3716
    %3753 = vmatprep.subr.mxu0 %v3719
    %3754 = vmatpush1.msra.mxu0 %v3718
    %3755 = vmatprep.subr.mxu0 %v3721
    %3756 = vmatpush1.msra.mxu0 %v3720
    %3757 = vmatprep.subr.mxu0 %v3723
    %3758 = vmatpush1.msra.mxu0 %v3722
    %3759 = vmatprep.subr.mxu0 %v3725
    %3760 = vmatpush1.msra.mxu0 %v3724
    %3761 = vmatprep.subr.mxu0 %v3727
    %3762 = vmatpush1.msra.mxu0 %v3726
    %3763 = vmatprep.subr.mxu0 %v3729
    %3764 = vmatpush1.msra.mxu0 %v3728
    %3765 = vmatprep.subr.mxu0 %v3731
    %3766 = vmatpush1.msra.mxu0 %v3730
    %3767 = vmatprep.subr.mxu0 %v3745
    %3768 = vmatpush1.msra.mxu0 %v3742
    %3769 = vmatprep.subr.mxu0 0.0
    %3770 = vmatpush1.msra.mxu0 0.0
    %3771 = vmatprep.subr.mxu0 0.0
    %3772 = vmatpush1.msra.mxu0 0.0
    %3773 = vmatprep.subr.mxu0 0.0
    %3774 = vmatpush1.msra.mxu0 0.0
    %3775 = vmatprep.subr.mxu0 0.0
    %3776 = vmatpush1.msra.mxu0 0.0
    %3777 = vmatprep.subr.mxu0 0.0
    %3778 = vmatpush1.msra.mxu0 0.0
    %3779 = vmatprep.subr.mxu0 0.0
    %3780 = vmatpush1.msra.mxu0 0.0
    %3781 = vmatprep.subr.mxu0 0.0
    %3782 = vmatpush1.msra.mxu0 0.0
    %3783 = vmatprep.subr.mxu0 0.0
    %3784 = vmatpush1.msra.mxu0 0.0
    %3785 = vmatprep.subr.mxu0 0.0
    %3786 = vmatpush1.msra.mxu0 0.0
    %3787 = vmatprep.subr.mxu0 0.0
    %3788 = vmatpush1.msra.mxu0 0.0
    %3789 = vmatprep.subr.mxu0 0.0
    %3790 = vmatpush1.msra.mxu0 0.0
    %3791 = vmatprep.subr.mxu0 0.0
    %3792 = vmatpush1.msra.mxu0 0.0
    %3793 = vmatprep.subr.mxu0 0.0
    %3794 = vmatpush1.msra.mxu0 0.0
    %3795 = vmatprep.subr.mxu0 0.0
    %3796 = vmatpush1.msra.mxu0 0.0
    %3797 = vmatprep.subr.mxu0 0.0
    %3798 = vmatpush1.msra.mxu0 0.0
    %3799 = vmatprep.subr.mxu0 0.0
    %3800 = vmatpush1.msra.mxu0 0.0
    %3801 = vmatprep.subr.mxu0 0.0
    %3802 = vmatpush1.msra.mxu0 0.0
    %3803 = vmatprep.subr.mxu0 0.0
    %3804 = vmatpush1.msra.mxu0 0.0
    %3805 = vmatprep.subr.mxu0 0.0
    %3806 = vmatpush1.msra.mxu0 0.0
    %3807 = vmatprep.subr.mxu0 0.0
    %3808 = vmatpush1.msra.mxu0 0.0
    %3809 = vmatprep.subr.mxu0 0.0
    %3810 = vmatpush1.msra.mxu0 0.0
    %3811 = vmatprep.mubr.f32.mxu0 0.0
    %3812 = vmatmul.mubr.f32.gmra.mrb[0].mxu0 %v3737
    %v3813 = vpop.f32.mrb[0].mxu0
    %v3814 = vadd.f32 0.0, %v3813
    %v3815 = vpop.f32.mrb[0].mxu0
    %v3816 = vadd.f32 0.0, %v3815
    %3817 = vmatprep.mubr.f32.mxu0 0.0
    %3818 = vmatmul.mubr.f32.gmra.mrb[0].mxu0 %v3739
    %v3819 = vpop.f32.mrb[0].mxu0
    %v3820 = vadd.f32 0.0, %v3819
    %v3821 = vpop.f32.mrb[0].mxu0
    %v3822 = vadd.f32 0.0, %v3821
    %3823 = vdwg.mxu0
    %v3824 = vadd.f32 %v3702, %v3814
    %v3825 = vadd.f32 %v3704, %v3816
    %v3826 = vadd.f32 %v3708, %v3820
    %v3827 = vadd.f32 %v3710, %v3822
    %v3828 = vld [vmem:[%s1467] sm:$0xff]
    %v3829 = vld [vmem:[%s1467 + $0x8] sm:$0xff]
    %v3830 = vld [vmem:[%s1467 + $0x10] sm:$0xff]
    %v3831 = vld [vmem:[%s1467 + $0x18] sm:$0xff]
    %v3832 = vld [vmem:[%s1467 + $0x20] sm:$0xff]
    %v3833 = vld [vmem:[%s1467 + $0x28] sm:$0xff]
    %v3834 = vld [vmem:[%s1467 + $0x30] sm:$0xff]
    %v3835 = vld [vmem:[%s1467 + $0x38] sm:$0xff]
    %v3836 = vld [vmem:[%s1467 + $0x40] sm:$0xff]
    %v3837 = vld [vmem:[%s1467 + $0x48] sm:$0xff]
    %v3838 = vld [vmem:[%s1467 + $0x50] sm:$0xff]
    %v3839 = vld [vmem:[%s1467 + $0x58] sm:$0xff]
    %v3840 = vld [vmem:[%s1467 + $0x60] sm:$0xff]
    %v3841 = vld [vmem:[%s1467 + $0x68] sm:$0xff]
    %v3842 = vld [vmem:[%s1467 + $0x70] sm:$0xff]
    %v3843 = vld [vmem:[%s1467 + $0x78] sm:$0xff]
    %v3844 = vld [vmem:[%s1467 + $0x80] sm:$0xff]
    %v3845 = vld [vmem:[%s1467 + $0x88] sm:$0xff]
    %v3846 = vld [vmem:[%s1467 + $0x90] sm:$0xff]
    %v3847 = vld [vmem:[%s1467 + $0x98] sm:$0xff]
    %v3848 = vld [vmem:[%s1467 + $0xa0] sm:$0xf]
    %v3849 = vld [vmem:[%s1467 + $0xa8] sm:$0xf]
    %v3850 = vrot.slane %v3487, 3
    %v3851 = vrot.slane %v3488, 3
    %v3852 = vsel %vm462, %v3850, %v3851
    %v3853 = vsel %vm1175, %v3852, 0
    %v3855 = vsel %vm1175, %v3851, 0
    %v3858 = vsel %vm600, %v3848, 0
    %v3861 = vsel %vm600, %v3849, 0
    %3863 = vmatprep.subr.mxu0 %v3829
    %3864 = vmatpush1.msra.mxu0 %v3828
    %3865 = vmatprep.subr.mxu0 %v3831
    %3866 = vmatpush1.msra.mxu0 %v3830
    %3867 = vmatprep.subr.mxu0 %v3833
    %3868 = vmatpush1.msra.mxu0 %v3832
    %3869 = vmatprep.subr.mxu0 %v3835
    %3870 = vmatpush1.msra.mxu0 %v3834
    %3871 = vmatprep.subr.mxu0 %v3837
    %3872 = vmatpush1.msra.mxu0 %v3836
    %3873 = vmatprep.subr.mxu0 %v3839
    %3874 = vmatpush1.msra.mxu0 %v3838
    %3875 = vmatprep.subr.mxu0 %v3841
    %3876 = vmatpush1.msra.mxu0 %v3840
    %3877 = vmatprep.subr.mxu0 %v3843
    %3878 = vmatpush1.msra.mxu0 %v3842
    %3879 = vmatprep.subr.mxu0 %v3845
    %3880 = vmatpush1.msra.mxu0 %v3844
    %3881 = vmatprep.subr.mxu0 %v3847
    %3882 = vmatpush1.msra.mxu0 %v3846
    %3883 = vmatprep.subr.mxu0 %v3861
    %3884 = vmatpush1.msra.mxu0 %v3858
    %3885 = vmatprep.subr.mxu0 0.0
    %3886 = vmatpush1.msra.mxu0 0.0
    %3887 = vmatprep.subr.mxu0 0.0
    %3888 = vmatpush1.msra.mxu0 0.0
    %3889 = vmatprep.subr.mxu0 0.0
    %3890 = vmatpush1.msra.mxu0 0.0
    %3891 = vmatprep.subr.mxu0 0.0
    %3892 = vmatpush1.msra.mxu0 0.0
    %3893 = vmatprep.subr.mxu0 0.0
    %3894 = vmatpush1.msra.mxu0 0.0
    %3895 = vmatprep.subr.mxu0 0.0
    %3896 = vmatpush1.msra.mxu0 0.0
    %3897 = vmatprep.subr.mxu0 0.0
    %3898 = vmatpush1.msra.mxu0 0.0
    %3899 = vmatprep.subr.mxu0 0.0
    %3900 = vmatpush1.msra.mxu0 0.0
    %3901 = vmatprep.subr.mxu0 0.0
    %3902 = vmatpush1.msra.mxu0 0.0
    %3903 = vmatprep.subr.mxu0 0.0
    %3904 = vmatpush1.msra.mxu0 0.0
    %3905 = vmatprep.subr.mxu0 0.0
    %3906 = vmatpush1.msra.mxu0 0.0
    %3907 = vmatprep.subr.mxu0 0.0
    %3908 = vmatpush1.msra.mxu0 0.0
    %3909 = vmatprep.subr.mxu0 0.0
    %3910 = vmatpush1.msra.mxu0 0.0
    %3911 = vmatprep.subr.mxu0 0.0
    %3912 = vmatpush1.msra.mxu0 0.0
    %3913 = vmatprep.subr.mxu0 0.0
    %3914 = vmatpush1.msra.mxu0 0.0
    %3915 = vmatprep.subr.mxu0 0.0
    %3916 = vmatpush1.msra.mxu0 0.0
    %3917 = vmatprep.subr.mxu0 0.0
    %3918 = vmatpush1.msra.mxu0 0.0
    %3919 = vmatprep.subr.mxu0 0.0
    %3920 = vmatpush1.msra.mxu0 0.0
    %3921 = vmatprep.subr.mxu0 0.0
    %3922 = vmatpush1.msra.mxu0 0.0
    %3923 = vmatprep.subr.mxu0 0.0
    %3924 = vmatpush1.msra.mxu0 0.0
    %3925 = vmatprep.subr.mxu0 0.0
    %3926 = vmatpush1.msra.mxu0 0.0
    %3927 = vmatprep.mubr.f32.mxu0 0.0
    %3928 = vmatmul.mubr.f32.gmra.mrb[0].mxu0 %v3853
    %v3929 = vpop.f32.mrb[0].mxu0
    %v3930 = vadd.f32 0.0, %v3929
    %v3931 = vpop.f32.mrb[0].mxu0
    %v3932 = vadd.f32 0.0, %v3931
    %3933 = vmatprep.mubr.f32.mxu0 0.0
    %3934 = vmatmul.mubr.f32.gmra.mrb[0].mxu0 %v3855
    %v3935 = vpop.f32.mrb[0].mxu0
    %v3936 = vadd.f32 0.0, %v3935
    %v3937 = vpop.f32.mrb[0].mxu0
    %v3938 = vadd.f32 0.0, %v3937
    %3939 = vdwg.mxu0
    %v3940 = vadd.f32 %v3824, %v3930
    %v3941 = vadd.f32 %v3825, %v3932
    %v3942 = vadd.f32 %v3826, %v3936
    %v3943 = vadd.f32 %v3827, %v3938
    %v3944 = vld [vmem:[%s1584] sm:$0xff]
    %v3945 = vld [vmem:[%s1584 + $0x8] sm:$0xff]
    %v3946 = vld [vmem:[%s1584 + $0x10] sm:$0xff]
    %v3947 = vld [vmem:[%s1584 + $0x18] sm:$0xff]
    %v3948 = vld [vmem:[%s1584 + $0x20] sm:$0xff]
    %v3949 = vld [vmem:[%s1584 + $0x28] sm:$0xff]
    %v3950 = vld [vmem:[%s1584 + $0x30] sm:$0xff]
    %v3951 = vld [vmem:[%s1584 + $0x38] sm:$0xff]
    %v3952 = vld [vmem:[%s1584 + $0x40] sm:$0xff]
    %v3953 = vld [vmem:[%s1584 + $0x48] sm:$0xff]
    %v3954 = vld [vmem:[%s1584 + $0x50] sm:$0xff]
    %v3955 = vld [vmem:[%s1584 + $0x58] sm:$0xff]
    %v3956 = vld [vmem:[%s1584 + $0x60] sm:$0xff]
    %v3957 = vld [vmem:[%s1584 + $0x68] sm:$0xff]
    %v3958 = vld [vmem:[%s1584 + $0x70] sm:$0xff]
    %v3959 = vld [vmem:[%s1584 + $0x78] sm:$0xff]
    %v3960 = vld [vmem:[%s1584 + $0x80] sm:$0xff]
    %v3961 = vld [vmem:[%s1584 + $0x88] sm:$0xff]
    %v3962 = vld [vmem:[%s1584 + $0x90] sm:$0xff]
    %v3963 = vld [vmem:[%s1584 + $0x98] sm:$0xff]
    %v3964 = vld [vmem:[%s1584 + $0xa0] sm:$0xf]
    %v3965 = vld [vmem:[%s1584 + $0xa8] sm:$0xf]
    %v3966 = vrot.slane %v3487, 4
    %v3967 = vrot.slane %v3488, 4
    %v3968 = vsel %vm600, %v3966, %v3967
    %v3969 = vsel %vm1175, %v3968, 0
    %v3971 = vsel %vm1175, %v3967, 0
    %v3974 = vsel %vm600, %v3964, 0
    %v3977 = vsel %vm600, %v3965, 0
    %3979 = vmatprep.subr.mxu0 %v3945
    %3980 = vmatpush1.msra.mxu0 %v3944
    %3981 = vmatprep.subr.mxu0 %v3947
    %3982 = vmatpush1.msra.mxu0 %v3946
    %3983 = vmatprep.subr.mxu0 %v3949
    %3984 = vmatpush1.msra.mxu0 %v3948
    %3985 = vmatprep.subr.mxu0 %v3951
    %3986 = vmatpush1.msra.mxu0 %v3950
    %3987 = vmatprep.subr.mxu0 %v3953
    %3988 = vmatpush1.msra.mxu0 %v3952
    %3989 = vmatprep.subr.mxu0 %v3955
    %3990 = vmatpush1.msra.mxu0 %v3954
    %3991 = vmatprep.subr.mxu0 %v3957
    %3992 = vmatpush1.msra.mxu0 %v3956
    %3993 = vmatprep.subr.mxu0 %v3959
    %3994 = vmatpush1.msra.mxu0 %v3958
    %3995 = vmatprep.subr.mxu0 %v3961
    %3996 = vmatpush1.msra.mxu0 %v3960
    %3997 = vmatprep.subr.mxu0 %v3963
    %3998 = vmatpush1.msra.mxu0 %v3962
    %3999 = vmatprep.subr.mxu0 %v3977
    %4000 = vmatpush1.msra.mxu0 %v3974
    %4001 = vmatprep.subr.mxu0 0.0
    %4002 = vmatpush1.msra.mxu0 0.0
    %4003 = vmatprep.subr.mxu0 0.0
    %4004 = vmatpush1.msra.mxu0 0.0
    %4005 = vmatprep.subr.mxu0 0.0
    %4006 = vmatpush1.msra.mxu0 0.0
    %4007 = vmatprep.subr.mxu0 0.0
    %4008 = vmatpush1.msra.mxu0 0.0
    %4009 = vmatprep.subr.mxu0 0.0
    %4010 = vmatpush1.msra.mxu0 0.0
    %4011 = vmatprep.subr.mxu0 0.0
    %4012 = vmatpush1.msra.mxu0 0.0
    %4013 = vmatprep.subr.mxu0 0.0
    %4014 = vmatpush1.msra.mxu0 0.0
    %4015 = vmatprep.subr.mxu0 0.0
    %4016 = vmatpush1.msra.mxu0 0.0
    %4017 = vmatprep.subr.mxu0 0.0
    %4018 = vmatpush1.msra.mxu0 0.0
    %4019 = vmatprep.subr.mxu0 0.0
    %4020 = vmatpush1.msra.mxu0 0.0
    %4021 = vmatprep.subr.mxu0 0.0
    %4022 = vmatpush1.msra.mxu0 0.0
    %4023 = vmatprep.subr.mxu0 0.0
    %4024 = vmatpush1.msra.mxu0 0.0
    %4025 = vmatprep.subr.mxu0 0.0
    %4026 = vmatpush1.msra.mxu0 0.0
    %4027 = vmatprep.subr.mxu0 0.0
    %4028 = vmatpush1.msra.mxu0 0.0
    %4029 = vmatprep.subr.mxu0 0.0
    %4030 = vmatpush1.msra.mxu0 0.0
    %4031 = vmatprep.subr.mxu0 0.0
    %4032 = vmatpush1.msra.mxu0 0.0
    %4033 = vmatprep.subr.mxu0 0.0
    %4034 = vmatpush1.msra.mxu0 0.0
    %4035 = vmatprep.subr.mxu0 0.0
    %4036 = vmatpush1.msra.mxu0 0.0
    %4037 = vmatprep.subr.mxu0 0.0
    %4038 = vmatpush1.msra.mxu0 0.0
    %4039 = vmatprep.subr.mxu0 0.0
    %4040 = vmatpush1.msra.mxu0 0.0
    %4041 = vmatprep.subr.mxu0 0.0
    %4042 = vmatpush1.msra.mxu0 0.0
    %4043 = vmatprep.mubr.f32.mxu0 0.0
    %4044 = vmatmul.mubr.f32.gmra.mrb[0].mxu0 %v3969
    %v4045 = vpop.f32.mrb[0].mxu0
    %v4046 = vadd.f32 0.0, %v4045
    %v4047 = vpop.f32.mrb[0].mxu0
    %v4048 = vadd.f32 0.0, %v4047
    %4049 = vmatprep.mubr.f32.mxu0 0.0
    %4050 = vmatmul.mubr.f32.gmra.mrb[0].mxu0 %v3971
    %v4051 = vpop.f32.mrb[0].mxu0
    %v4052 = vadd.f32 0.0, %v4051
    %v4053 = vpop.f32.mrb[0].mxu0
    %v4054 = vadd.f32 0.0, %v4053
    %4055 = vdwg.mxu0
    %v4056 = vadd.f32 %v3940, %v4046
    %v4057 = vadd.f32 %v3941, %v4048
    %v4058 = vadd.f32 %v3942, %v4052
    %v4059 = vadd.f32 %v3943, %v4054
    %v4060 = vld [vmem:[%s4] sm:$0x3]
    %v4062 = vlaneseq
    %v4063 = vshrl.u32 %v4062, 7
    %v4064 = vsub.s32 0, %v4063
    %v4065 = vrot.slane %v4060, %v4064
    %v4066 = vlaneseq
    %v4067 = vshrl.u32 %v4066, 7
    %v4068 = vsub.s32 1, %v4067
    %v4069 = vrot.slane %v4060, %v4068
    %v4072 = vadd.f32 %v4056, %v4065
    %v4073 = vadd.f32 %v4057, %v4069
    %v4074 = vadd.f32 %v4058, %v4065
    %v4075 = vadd.f32 %v4059, %v4069
    %v4076 = vtanh.pop %v4072
    %v4077 = vtanh.pop %v4073
    %v4078 = vtanh.pop %v4074
    %v4079 = vtanh.pop %v4075
    %v4084 = vrot.slane %v4076, 1
    %v4085 = vrot.slane %v4078, 1
    %v4086 = vsel %vm96, %v4084, %v4085
    %v4087 = vrot.slane %v4077, 1
    %v4088 = vrot.slane %v4079, 1
    %v4089 = vsel %vm96, %v4087, %v4088
    %v4094 = vmax.f32 %v4076, %v4086
    %v4095 = vmax.f32 %v4077, %v4089
    %v4096 = vmax.f32 %v4078, %v4085
    %v4097 = vmax.f32 %v4079, %v4088
    %v4100 = vcombine.low %v4094, %v4095
    %v4102 = vunpack.c.l.s4 1966171168
    %v4103 = vunpack.c.0.s8 %v4102
    %v4104 = vlaneseq
    %v4105 = vshrl.u32 %v4104, 7
    %v4106 = vsub.s32 %v4103, %v4105
    %v4107 = vrot.slane %v4100, %v4106
    %v4109 = vunpack.c.l.s4 1966171168
    %v4110 = vunpack.c.0.s8 %v4109
    %v4111 = vlaneseq
    %v4112 = vshrl.u32 %v4111, 7
    %v4113 = vsub.s32 %v4110, %v4112
    %v4114 = vrot.slane %v4107, %v4113
    %4116 = vst.msk [vmem:[#allocation4] ss:$8 sm:$0x3] %vm1758, %v4114
    %4117 = vst.msk [vmem:[#allocation4] ss:$8 sm:$0x0] %vm1758, %v4114
    %v4118 = vcombine.high %v4114, %v4114
    %4120 = vst.msk [vmem:[%s1763] ss:$8 sm:$0x3] %vm1758, %v4118
    %4121 = vst.msk [vmem:[%s1763] ss:$8 sm:$0x0] %vm1758, %v4118
    %v4122 = vcombine.high %v4094, %v4095
    %v4124 = vunpack.c.l.s4 1966171168
    %v4125 = vunpack.c.0.s8 %v4124
    %v4126 = vlaneseq
    %v4127 = vshrl.u32 %v4126, 7
    %v4128 = vsub.s32 %v4125, %v4127
    %v4129 = vrot.slane %v4122, %v4128
    %v4131 = vunpack.c.l.s4 1966171168
    %v4132 = vunpack.c.0.s8 %v4131
    %v4133 = vlaneseq
    %v4134 = vshrl.u32 %v4133, 7
    %v4135 = vsub.s32 %v4132, %v4134
    %v4136 = vrot.slane %v4129, %v4135
    %4138 = vst.msk [vmem:[%s1782] ss:$8 sm:$0x3] %vm1758, %v4136
    %4139 = vst.msk [vmem:[%s1782] ss:$8 sm:$0x0] %vm1758, %v4136
    %v4140 = vcombine.high %v4136, %v4136
    %4142 = vst.msk [vmem:[%s1787] ss:$8 sm:$0x3] %vm1758, %v4140
    %4143 = vst.msk [vmem:[%s1787] ss:$8 sm:$0x0] %vm1758, %v4140
    %v4146 = vcombine.low %v4096, %v4097
    %v4148 = vunpack.c.l.s4 1966171168
    %v4149 = vunpack.c.0.s8 %v4148
    %v4150 = vlaneseq
    %v4151 = vshrl.u32 %v4150, 7
    %v4152 = vsub.s32 %v4149, %v4151
    %v4153 = vrot.slane %v4146, %v4152
    %v4155 = vunpack.c.l.s4 1966171168
    %v4156 = vunpack.c.0.s8 %v4155
    %v4157 = vlaneseq
    %v4158 = vshrl.u32 %v4157, 7
    %v4159 = vsub.s32 %v4156, %v4158
    %v4160 = vrot.slane %v4153, %v4159
    %4162 = vst.msk [vmem:[%s1808] ss:$8 sm:$0x3] %vm1758, %v4160
    %4163 = vst.msk [vmem:[%s1808] ss:$8 sm:$0x0] %vm1758, %v4160
    %v4164 = vld [vmem:[#allocation4] sm:$0x1f]
    %v4165 = vld [vmem:[#allocation4 + $0x8] sm:$0x1f]
    %4168 = vrot.lane.b32.xlu0 %v4164, 112
    %v4169 = vpop.permute.xlu0 %4168
    %4170 = vrot.lane.b32.xlu0 %v4165, 112
    %v4171 = vpop.permute.xlu0 %4170
    %v4172 = vsel %vm1819, %v4169, %v4171
    %v4175 = vmax.f32 %v4164, %v4172
    %v4176 = vmax.f32 %v4165, %v4171
    %4177 = vst.msk [vmem:[#allocation5] sm:$0x1f] %vm1825, %v4175
    %4179 = vrot.lane.b32.xlu0 %v4175, 112
    %v4180 = vpop.permute.xlu0 %4179
    %4182 = vst.msk [vmem:[#allocation5] sm:$0x1f] %vm1831, %v4180
    %4183 = vrot.lane.b32.xlu0 %v4175, 96
    %v4184 = vpop.permute.xlu0 %4183
    %4186 = vst.msk [vmem:[#allocation5] sm:$0x1f] %vm1836, %v4184
    %4187 = vrot.lane.b32.xlu0 %v4175, 80
    %v4188 = vpop.permute.xlu0 %4187
    %4190 = vst.msk [vmem:[#allocation5] sm:$0x1f] %vm1841, %v4188
    %4192 = vrot.lane.b32.xlu0 %v4176, 64
    %v4193 = vpop.permute.xlu0 %4192
    %4195 = vst.msk [vmem:[#allocation5] sm:$0x1f] %vm1847, %v4193
    %v4196 = vld [vmem:[#allocation5] sm:$0x1f]
    %v4197 = vld [vmem:[%s5] sm:$0xff]
    %v4198 = vld [vmem:[%s5 + $0x8] sm:$0xff]
    %v4199 = vld [vmem:[%s5 + $0x10] sm:$0xff]
    %v4200 = vld [vmem:[%s5 + $0x18] sm:$0xff]
    %v4201 = vld [vmem:[%s5 + $0x20] sm:$0xff]
    %v4202 = vld [vmem:[%s5 + $0x28] sm:$0xff]
    %v4203 = vld [vmem:[%s5 + $0x30] sm:$0xff]
    %v4204 = vld [vmem:[%s5 + $0x38] sm:$0xff]
    %v4205 = vld [vmem:[%s5 + $0x40] sm:$0xff]
    %v4206 = vld [vmem:[%s5 + $0x48] sm:$0xff]
    %v4207 = vld [vmem:[%s1860] sm:$0xff]
    %v4208 = vld [vmem:[%s1860 + $0x8] sm:$0xff]
    %v4209 = vld [vmem:[%s1860 + $0x10] sm:$0xff]
    %v4210 = vld [vmem:[%s1860 + $0x18] sm:$0xff]
    %v4211 = vld [vmem:[%s1860 + $0x20] sm:$0xff]
    %v4212 = vld [vmem:[%s1860 + $0x28] sm:$0xff]
    %v4213 = vld [vmem:[%s1860 + $0x30] sm:$0xff]
    %v4214 = vld [vmem:[%s1860 + $0x38] sm:$0xff]
    %v4215 = vld [vmem:[%s1860 + $0x40] sm:$0xff]
    %v4216 = vld [vmem:[%s1860 + $0x48] sm:$0xff]
    %v4218 = vrot.slane %v4196, 1
    %v4219 = vsel %vm1873, %v4218, 0
    %4221 = vmatprep.subr.mxu0 0.0
    %4222 = vmatpush1.msra.mxu0 %v4207
    %4223 = vmatprep.subr.mxu0 0.0
    %4224 = vmatpush1.msra.mxu0 %v4208
    %4225 = vmatprep.subr.mxu0 0.0
    %4226 = vmatpush1.msra.mxu0 %v4209
    %4227 = vmatprep.subr.mxu0 0.0
    %4228 = vmatpush1.msra.mxu0 %v4210
    %4229 = vmatprep.subr.mxu0 0.0
    %4230 = vmatpush1.msra.mxu0 %v4211
    %4231 = vmatprep.subr.mxu0 0.0
    %4232 = vmatpush1.msra.mxu0 %v4212
    %4233 = vmatprep.subr.mxu0 0.0
    %4234 = vmatpush1.msra.mxu0 %v4213
    %4235 = vmatprep.subr.mxu0 0.0
    %4236 = vmatpush1.msra.mxu0 %v4214
    %4237 = vmatprep.subr.mxu0 0.0
    %4238 = vmatpush1.msra.mxu0 %v4215
    %4239 = vmatprep.subr.mxu0 0.0
    %4240 = vmatpush1.msra.mxu0 %v4216
    %4241 = vmatprep.subr.mxu0 0.0
    %4242 = vmatpush1.msra.mxu0 0.0
    %4243 = vmatprep.subr.mxu0 0.0
    %4244 = vmatpush1.msra.mxu0 0.0
    %4245 = vmatprep.subr.mxu0 0.0
    %4246 = vmatpush1.msra.mxu0 0.0
    %4247 = vmatprep.subr.mxu0 0.0
    %4248 = vmatpush1.msra.mxu0 0.0
    %4249 = vmatprep.subr.mxu0 0.0
    %4250 = vmatpush1.msra.mxu0 0.0
    %4251 = vmatprep.subr.mxu0 0.0
    %4252 = vmatpush1.msra.mxu0 0.0
    %4253 = vmatprep.subr.mxu0 0.0
    %4254 = vmatpush1.msra.mxu0 0.0
    %4255 = vmatprep.subr.mxu0 0.0
    %4256 = vmatpush1.msra.mxu0 0.0
    %4257 = vmatprep.subr.mxu0 0.0
    %4258 = vmatpush1.msra.mxu0 0.0
    %4259 = vmatprep.subr.mxu0 0.0
    %4260 = vmatpush1.msra.mxu0 0.0
    %4261 = vmatprep.subr.mxu0 0.0
    %4262 = vmatpush1.msra.mxu0 0.0
    %4263 = vmatprep.subr.mxu0 0.0
    %4264 = vmatpush1.msra.mxu0 0.0
    %4265 = vmatprep.subr.mxu0 0.0
    %4266 = vmatpush1.msra.mxu0 0.0
    %4267 = vmatprep.subr.mxu0 0.0
    %4268 = vmatpush1.msra.mxu0 0.0
    %4269 = vmatprep.subr.mxu0 0.0
    %4270 = vmatpush1.msra.mxu0 0.0
    %4271 = vmatprep.subr.mxu0 0.0
    %4272 = vmatpush1.msra.mxu0 0.0
    %4273 = vmatprep.subr.mxu0 0.0
    %4274 = vmatpush1.msra.mxu0 0.0
    %4275 = vmatprep.subr.mxu0 0.0
    %4276 = vmatpush1.msra.mxu0 0.0
    %4277 = vmatprep.subr.mxu0 0.0
    %4278 = vmatpush1.msra.mxu0 0.0
    %4279 = vmatprep.subr.mxu0 0.0
    %4280 = vmatpush1.msra.mxu0 0.0
    %4281 = vmatprep.subr.mxu0 0.0
    %4282 = vmatpush1.msra.mxu0 0.0
    %4283 = vmatprep.subr.mxu0 0.0
    %4284 = vmatpush1.msra.mxu0 0.0
    %4285 = vmatprep.mubr.f32.mxu0 0.0
    %4286 = vmatmul.mubr.f32.gmra.mrb[0].mxu0 %v4219
    %v4287 = vpop.f32.mrb[0].mxu0
    %v4288 = vadd.f32 0.0, %v4287
    %v4289 = vpop.f32.mrb[0].mxu0
    %4290 = vdwg.mxu0
    %v4291 = vsel %vm1873, %v4196, 0
    %4293 = vmatprep.subr.mxu0 0.0
    %4294 = vmatpush1.msra.mxu0 %v4197
    %4295 = vmatprep.subr.mxu0 0.0
    %4296 = vmatpush1.msra.mxu0 %v4198
    %4297 = vmatprep.subr.mxu0 0.0
    %4298 = vmatpush1.msra.mxu0 %v4199
    %4299 = vmatprep.subr.mxu0 0.0
    %4300 = vmatpush1.msra.mxu0 %v4200
    %4301 = vmatprep.subr.mxu0 0.0
    %4302 = vmatpush1.msra.mxu0 %v4201
    %4303 = vmatprep.subr.mxu0 0.0
    %4304 = vmatpush1.msra.mxu0 %v4202
    %4305 = vmatprep.subr.mxu0 0.0
    %4306 = vmatpush1.msra.mxu0 %v4203
    %4307 = vmatprep.subr.mxu0 0.0
    %4308 = vmatpush1.msra.mxu0 %v4204
    %4309 = vmatprep.subr.mxu0 0.0
    %4310 = vmatpush1.msra.mxu0 %v4205
    %4311 = vmatprep.subr.mxu0 0.0
    %4312 = vmatpush1.msra.mxu0 %v4206
    %4313 = vmatprep.subr.mxu0 0.0
    %4314 = vmatpush1.msra.mxu0 0.0
    %4315 = vmatprep.subr.mxu0 0.0
    %4316 = vmatpush1.msra.mxu0 0.0
    %4317 = vmatprep.subr.mxu0 0.0
    %4318 = vmatpush1.msra.mxu0 0.0
    %4319 = vmatprep.subr.mxu0 0.0
    %4320 = vmatpush1.msra.mxu0 0.0
    %4321 = vmatprep.subr.mxu0 0.0
    %4322 = vmatpush1.msra.mxu0 0.0
    %4323 = vmatprep.subr.mxu0 0.0
    %4324 = vmatpush1.msra.mxu0 0.0
    %4325 = vmatprep.subr.mxu0 0.0
    %4326 = vmatpush1.msra.mxu0 0.0
    %4327 = vmatprep.subr.mxu0 0.0
    %4328 = vmatpush1.msra.mxu0 0.0
    %4329 = vmatprep.subr.mxu0 0.0
    %4330 = vmatpush1.msra.mxu0 0.0
    %4331 = vmatprep.subr.mxu0 0.0
    %4332 = vmatpush1.msra.mxu0 0.0
    %4333 = vmatprep.subr.mxu0 0.0
    %4334 = vmatpush1.msra.mxu0 0.0
    %4335 = vmatprep.subr.mxu0 0.0
    %4336 = vmatpush1.msra.mxu0 0.0
    %4337 = vmatprep.subr.mxu0 0.0
    %4338 = vmatpush1.msra.mxu0 0.0
    %4339 = vmatprep.subr.mxu0 0.0
    %4340 = vmatpush1.msra.mxu0 0.0
    %4341 = vmatprep.subr.mxu0 0.0
    %4342 = vmatpush1.msra.mxu0 0.0
    %4343 = vmatprep.subr.mxu0 0.0
    %4344 = vmatpush1.msra.mxu0 0.0
    %4345 = vmatprep.subr.mxu0 0.0
    %4346 = vmatpush1.msra.mxu0 0.0
    %4347 = vmatprep.subr.mxu0 0.0
    %4348 = vmatpush1.msra.mxu0 0.0
    %4349 = vmatprep.subr.mxu0 0.0
    %4350 = vmatpush1.msra.mxu0 0.0
    %4351 = vmatprep.subr.mxu0 0.0
    %4352 = vmatpush1.msra.mxu0 0.0
    %4353 = vmatprep.subr.mxu0 0.0
    %4354 = vmatpush1.msra.mxu0 0.0
    %4355 = vmatprep.subr.mxu0 0.0
    %4356 = vmatpush1.msra.mxu0 0.0
    %4357 = vmatprep.mubr.f32.mxu0 0.0
    %4358 = vmatmul.mubr.f32.gmra.mrb[0].mxu0 %v4291
    %v4359 = vpop.f32.mrb[0].mxu0
    %v4360 = vadd.f32 %v4288, %v4359
    %v4361 = vpop.f32.mrb[0].mxu0
    %4362 = vdwg.mxu0
    %v4363 = vld [vmem:[%s2018] sm:$0xff]
    %v4364 = vld [vmem:[%s2018 + $0x8] sm:$0xff]
    %v4365 = vld [vmem:[%s2018 + $0x10] sm:$0xff]
    %v4366 = vld [vmem:[%s2018 + $0x18] sm:$0xff]
    %v4367 = vld [vmem:[%s2018 + $0x20] sm:$0xff]
    %v4368 = vld [vmem:[%s2018 + $0x28] sm:$0xff]
    %v4369 = vld [vmem:[%s2018 + $0x30] sm:$0xff]
    %v4370 = vld [vmem:[%s2018 + $0x38] sm:$0xff]
    %v4371 = vld [vmem:[%s2018 + $0x40] sm:$0xff]
    %v4372 = vld [vmem:[%s2018 + $0x48] sm:$0xff]
    %v4373 = vrot.slane %v4196, 2
    %v4374 = vsel %vm1873, %v4373, 0
    %4376 = vmatprep.subr.mxu0 0.0
    %4377 = vmatpush1.msra.mxu0 %v4363
    %4378 = vmatprep.subr.mxu0 0.0
    %4379 = vmatpush1.msra.mxu0 %v4364
    %4380 = vmatprep.subr.mxu0 0.0
    %4381 = vmatpush1.msra.mxu0 %v4365
    %4382 = vmatprep.subr.mxu0 0.0
    %4383 = vmatpush1.msra.mxu0 %v4366
    %4384 = vmatprep.subr.mxu0 0.0
    %4385 = vmatpush1.msra.mxu0 %v4367
    %4386 = vmatprep.subr.mxu0 0.0
    %4387 = vmatpush1.msra.mxu0 %v4368
    %4388 = vmatprep.subr.mxu0 0.0
    %4389 = vmatpush1.msra.mxu0 %v4369
    %4390 = vmatprep.subr.mxu0 0.0
    %4391 = vmatpush1.msra.mxu0 %v4370
    %4392 = vmatprep.subr.mxu0 0.0
    %4393 = vmatpush1.msra.mxu0 %v4371
    %4394 = vmatprep.subr.mxu0 0.0
    %4395 = vmatpush1.msra.mxu0 %v4372
    %4396 = vmatprep.subr.mxu0 0.0
    %4397 = vmatpush1.msra.mxu0 0.0
    %4398 = vmatprep.subr.mxu0 0.0
    %4399 = vmatpush1.msra.mxu0 0.0
    %4400 = vmatprep.subr.mxu0 0.0
    %4401 = vmatpush1.msra.mxu0 0.0
    %4402 = vmatprep.subr.mxu0 0.0
    %4403 = vmatpush1.msra.mxu0 0.0
    %4404 = vmatprep.subr.mxu0 0.0
    %4405 = vmatpush1.msra.mxu0 0.0
    %4406 = vmatprep.subr.mxu0 0.0
    %4407 = vmatpush1.msra.mxu0 0.0
    %4408 = vmatprep.subr.mxu0 0.0
    %4409 = vmatpush1.msra.mxu0 0.0
    %4410 = vmatprep.subr.mxu0 0.0
    %4411 = vmatpush1.msra.mxu0 0.0
    %4412 = vmatprep.subr.mxu0 0.0
    %4413 = vmatpush1.msra.mxu0 0.0
    %4414 = vmatprep.subr.mxu0 0.0
    %4415 = vmatpush1.msra.mxu0 0.0
    %4416 = vmatprep.subr.mxu0 0.0
    %4417 = vmatpush1.msra.mxu0 0.0
    %4418 = vmatprep.subr.mxu0 0.0
    %4419 = vmatpush1.msra.mxu0 0.0
    %4420 = vmatprep.subr.mxu0 0.0
    %4421 = vmatpush1.msra.mxu0 0.0
    %4422 = vmatprep.subr.mxu0 0.0
    %4423 = vmatpush1.msra.mxu0 0.0
    %4424 = vmatprep.subr.mxu0 0.0
    %4425 = vmatpush1.msra.mxu0 0.0
    %4426 = vmatprep.subr.mxu0 0.0
    %4427 = vmatpush1.msra.mxu0 0.0
    %4428 = vmatprep.subr.mxu0 0.0
    %4429 = vmatpush1.msra.mxu0 0.0
    %4430 = vmatprep.subr.mxu0 0.0
    %4431 = vmatpush1.msra.mxu0 0.0
    %4432 = vmatprep.subr.mxu0 0.0
    %4433 = vmatpush1.msra.mxu0 0.0
    %4434 = vmatprep.subr.mxu0 0.0
    %4435 = vmatpush1.msra.mxu0 0.0
    %4436 = vmatprep.subr.mxu0 0.0
    %4437 = vmatpush1.msra.mxu0 0.0
    %4438 = vmatprep.subr.mxu0 0.0
    %4439 = vmatpush1.msra.mxu0 0.0
    %4440 = vmatprep.mubr.f32.mxu0 0.0
    %4441 = vmatmul.mubr.f32.gmra.mrb[0].mxu0 %v4374
    %v4442 = vpop.f32.mrb[0].mxu0
    %v4443 = vadd.f32 0.0, %v4442
    %v4444 = vpop.f32.mrb[0].mxu0
    %4445 = vdwg.mxu0
    %v4446 = vadd.f32 %v4360, %v4443
    %v4447 = vld [vmem:[%s2103] sm:$0xff]
    %v4448 = vld [vmem:[%s2103 + $0x8] sm:$0xff]
    %v4449 = vld [vmem:[%s2103 + $0x10] sm:$0xff]
    %v4450 = vld [vmem:[%s2103 + $0x18] sm:$0xff]
    %v4451 = vld [vmem:[%s2103 + $0x20] sm:$0xff]
    %v4452 = vld [vmem:[%s2103 + $0x28] sm:$0xff]
    %v4453 = vld [vmem:[%s2103 + $0x30] sm:$0xff]
    %v4454 = vld [vmem:[%s2103 + $0x38] sm:$0xff]
    %v4455 = vld [vmem:[%s2103 + $0x40] sm:$0xff]
    %v4456 = vld [vmem:[%s2103 + $0x48] sm:$0xff]
    %v4457 = vrot.slane %v4196, 3
    %v4458 = vsel %vm1873, %v4457, 0
    %4460 = vmatprep.subr.mxu0 0.0
    %4461 = vmatpush1.msra.mxu0 %v4447
    %4462 = vmatprep.subr.mxu0 0.0
    %4463 = vmatpush1.msra.mxu0 %v4448
    %4464 = vmatprep.subr.mxu0 0.0
    %4465 = vmatpush1.msra.mxu0 %v4449
    %4466 = vmatprep.subr.mxu0 0.0
    %4467 = vmatpush1.msra.mxu0 %v4450
    %4468 = vmatprep.subr.mxu0 0.0
    %4469 = vmatpush1.msra.mxu0 %v4451
    %4470 = vmatprep.subr.mxu0 0.0
    %4471 = vmatpush1.msra.mxu0 %v4452
    %4472 = vmatprep.subr.mxu0 0.0
    %4473 = vmatpush1.msra.mxu0 %v4453
    %4474 = vmatprep.subr.mxu0 0.0
    %4475 = vmatpush1.msra.mxu0 %v4454
    %4476 = vmatprep.subr.mxu0 0.0
    %4477 = vmatpush1.msra.mxu0 %v4455
    %4478 = vmatprep.subr.mxu0 0.0
    %4479 = vmatpush1.msra.mxu0 %v4456
    %4480 = vmatprep.subr.mxu0 0.0
    %4481 = vmatpush1.msra.mxu0 0.0
    %4482 = vmatprep.subr.mxu0 0.0
    %4483 = vmatpush1.msra.mxu0 0.0
    %4484 = vmatprep.subr.mxu0 0.0
    %4485 = vmatpush1.msra.mxu0 0.0
    %4486 = vmatprep.subr.mxu0 0.0
    %4487 = vmatpush1.msra.mxu0 0.0
    %4488 = vmatprep.subr.mxu0 0.0
    %4489 = vmatpush1.msra.mxu0 0.0
    %4490 = vmatprep.subr.mxu0 0.0
    %4491 = vmatpush1.msra.mxu0 0.0
    %4492 = vmatprep.subr.mxu0 0.0
    %4493 = vmatpush1.msra.mxu0 0.0
    %4494 = vmatprep.subr.mxu0 0.0
    %4495 = vmatpush1.msra.mxu0 0.0
    %4496 = vmatprep.subr.mxu0 0.0
    %4497 = vmatpush1.msra.mxu0 0.0
    %4498 = vmatprep.subr.mxu0 0.0
    %4499 = vmatpush1.msra.mxu0 0.0
    %4500 = vmatprep.subr.mxu0 0.0
    %4501 = vmatpush1.msra.mxu0 0.0
    %4502 = vmatprep.subr.mxu0 0.0
    %4503 = vmatpush1.msra.mxu0 0.0
    %4504 = vmatprep.subr.mxu0 0.0
    %4505 = vmatpush1.msra.mxu0 0.0
    %4506 = vmatprep.subr.mxu0 0.0
    %4507 = vmatpush1.msra.mxu0 0.0
    %4508 = vmatprep.subr.mxu0 0.0
    %4509 = vmatpush1.msra.mxu0 0.0
    %4510 = vmatprep.subr.mxu0 0.0
    %4511 = vmatpush1.msra.mxu0 0.0
    %4512 = vmatprep.subr.mxu0 0.0
    %4513 = vmatpush1.msra.mxu0 0.0
    %4514 = vmatprep.subr.mxu0 0.0
    %4515 = vmatpush1.msra.mxu0 0.0
    %4516 = vmatprep.subr.mxu0 0.0
    %4517 = vmatpush1.msra.mxu0 0.0
    %4518 = vmatprep.subr.mxu0 0.0
    %4519 = vmatpush1.msra.mxu0 0.0
    %4520 = vmatprep.subr.mxu0 0.0
    %4521 = vmatpush1.msra.mxu0 0.0
    %4522 = vmatprep.subr.mxu0 0.0
    %4523 = vmatpush1.msra.mxu0 0.0
    %4524 = vmatprep.mubr.f32.mxu0 0.0
    %4525 = vmatmul.mubr.f32.gmra.mrb[0].mxu0 %v4458
    %v4526 = vpop.f32.mrb[0].mxu0
    %v4527 = vadd.f32 0.0, %v4526
    %v4528 = vpop.f32.mrb[0].mxu0
    %4529 = vdwg.mxu0
    %v4530 = vadd.f32 %v4446, %v4527
    %v4531 = vld [vmem:[%s2188] sm:$0xff]
    %v4532 = vld [vmem:[%s2188 + $0x8] sm:$0xff]
    %v4533 = vld [vmem:[%s2188 + $0x10] sm:$0xff]
    %v4534 = vld [vmem:[%s2188 + $0x18] sm:$0xff]
    %v4535 = vld [vmem:[%s2188 + $0x20] sm:$0xff]
    %v4536 = vld [vmem:[%s2188 + $0x28] sm:$0xff]
    %v4537 = vld [vmem:[%s2188 + $0x30] sm:$0xff]
    %v4538 = vld [vmem:[%s2188 + $0x38] sm:$0xff]
    %v4539 = vld [vmem:[%s2188 + $0x40] sm:$0xff]
    %v4540 = vld [vmem:[%s2188 + $0x48] sm:$0xff]
    %v4541 = vrot.slane %v4196, 4
    %v4542 = vsel %vm1873, %v4541, 0
    %4544 = vmatprep.subr.mxu0 0.0
    %4545 = vmatpush1.msra.mxu0 %v4531
    %4546 = vmatprep.subr.mxu0 0.0
    %4547 = vmatpush1.msra.mxu0 %v4532
    %4548 = vmatprep.subr.mxu0 0.0
    %4549 = vmatpush1.msra.mxu0 %v4533
    %4550 = vmatprep.subr.mxu0 0.0
    %4551 = vmatpush1.msra.mxu0 %v4534
    %4552 = vmatprep.subr.mxu0 0.0
    %4553 = vmatpush1.msra.mxu0 %v4535
    %4554 = vmatprep.subr.mxu0 0.0
    %4555 = vmatpush1.msra.mxu0 %v4536
    %4556 = vmatprep.subr.mxu0 0.0
    %4557 = vmatpush1.msra.mxu0 %v4537
    %4558 = vmatprep.subr.mxu0 0.0
    %4559 = vmatpush1.msra.mxu0 %v4538
    %4560 = vmatprep.subr.mxu0 0.0
    %4561 = vmatpush1.msra.mxu0 %v4539
    %4562 = vmatprep.subr.mxu0 0.0
    %4563 = vmatpush1.msra.mxu0 %v4540
    %4564 = vmatprep.subr.mxu0 0.0
    %4565 = vmatpush1.msra.mxu0 0.0
    %4566 = vmatprep.subr.mxu0 0.0
    %4567 = vmatpush1.msra.mxu0 0.0
    %4568 = vmatprep.subr.mxu0 0.0
    %4569 = vmatpush1.msra.mxu0 0.0
    %4570 = vmatprep.subr.mxu0 0.0
    %4571 = vmatpush1.msra.mxu0 0.0
    %4572 = vmatprep.subr.mxu0 0.0
    %4573 = vmatpush1.msra.mxu0 0.0
    %4574 = vmatprep.subr.mxu0 0.0
    %4575 = vmatpush1.msra.mxu0 0.0
    %4576 = vmatprep.subr.mxu0 0.0
    %4577 = vmatpush1.msra.mxu0 0.0
    %4578 = vmatprep.subr.mxu0 0.0
    %4579 = vmatpush1.msra.mxu0 0.0
    %4580 = vmatprep.subr.mxu0 0.0
    %4581 = vmatpush1.msra.mxu0 0.0
    %4582 = vmatprep.subr.mxu0 0.0
    %4583 = vmatpush1.msra.mxu0 0.0
    %4584 = vmatprep.subr.mxu0 0.0
    %4585 = vmatpush1.msra.mxu0 0.0
    %4586 = vmatprep.subr.mxu0 0.0
    %4587 = vmatpush1.msra.mxu0 0.0
    %4588 = vmatprep.subr.mxu0 0.0
    %4589 = vmatpush1.msra.mxu0 0.0
    %4590 = vmatprep.subr.mxu0 0.0
    %4591 = vmatpush1.msra.mxu0 0.0
    %4592 = vmatprep.subr.mxu0 0.0
    %4593 = vmatpush1.msra.mxu0 0.0
    %4594 = vmatprep.subr.mxu0 0.0
    %4595 = vmatpush1.msra.mxu0 0.0
    %4596 = vmatprep.subr.mxu0 0.0
    %4597 = vmatpush1.msra.mxu0 0.0
    %4598 = vmatprep.subr.mxu0 0.0
    %4599 = vmatpush1.msra.mxu0 0.0
    %4600 = vmatprep.subr.mxu0 0.0
    %4601 = vmatpush1.msra.mxu0 0.0
    %4602 = vmatprep.subr.mxu0 0.0
    %4603 = vmatpush1.msra.mxu0 0.0
    %4604 = vmatprep.subr.mxu0 0.0
    %4605 = vmatpush1.msra.mxu0 0.0
    %4606 = vmatprep.subr.mxu0 0.0
    %4607 = vmatpush1.msra.mxu0 0.0
    %4608 = vmatprep.mubr.f32.mxu0 0.0
    %4609 = vmatmul.mubr.f32.gmra.mrb[0].mxu0 %v4542
    %v4610 = vpop.f32.mrb[0].mxu0
    %v4611 = vadd.f32 0.0, %v4610
    %v4612 = vpop.f32.mrb[0].mxu0
    %4613 = vdwg.mxu0
    %v4614 = vadd.f32 %v4530, %v4611
    %v4615 = vld [vmem:[%s6] sm:$0x1]
    %v4616 = vadd.f32 %v4614, %v4615
    %v4617 = vtanh.pop %v4616
    %v4618 = vld [vmem:[%s7] sm:$0xff]
    %v4619 = vld [vmem:[%s7 + $0x8] sm:$0xff]
    %v4620 = vld [vmem:[%s7 + $0x10] sm:$0xff]
    %v4621 = vld [vmem:[%s7 + $0x18] sm:$0xff]
    %v4622 = vld [vmem:[%s7 + $0x20] sm:$0xff]
    %v4623 = vld [vmem:[%s7 + $0x28] sm:$0xff]
    %v4624 = vld [vmem:[%s7 + $0x30] sm:$0xff]
    %v4625 = vld [vmem:[%s7 + $0x38] sm:$0xff]
    %v4626 = vld [vmem:[%s7 + $0x40] sm:$0xff]
    %v4627 = vld [vmem:[%s7 + $0x48] sm:$0xff]
    %v4628 = vld [vmem:[%s7 + $0x50] sm:$0xff]
    %v4629 = vld [vmem:[%s7 + $0x58] sm:$0xff]
    %v4630 = vld [vmem:[%s7 + $0x60] sm:$0xff]
    %v4631 = vld [vmem:[%s7 + $0x68] sm:$0xff]
    %v4632 = vld [vmem:[%s7 + $0x70] sm:$0xff]
    %v4633 = vld [vmem:[%s8] sm:$0x1]
    %v4635 = vsel %vm2292, %v4617, 0
    %4637 = vmatprep.subr.mxu0 0.0
    %4638 = vmatpush1.msra.mxu0 %v4618
    %4639 = vmatprep.subr.mxu0 0.0
    %4640 = vmatpush1.msra.mxu0 %v4619
    %4641 = vmatprep.subr.mxu0 0.0
    %4642 = vmatpush1.msra.mxu0 %v4620
    %4643 = vmatprep.subr.mxu0 0.0
    %4644 = vmatpush1.msra.mxu0 %v4621
    %4645 = vmatprep.subr.mxu0 0.0
    %4646 = vmatpush1.msra.mxu0 %v4622
    %4647 = vmatprep.subr.mxu0 0.0
    %4648 = vmatpush1.msra.mxu0 %v4623
    %4649 = vmatprep.subr.mxu0 0.0
    %4650 = vmatpush1.msra.mxu0 %v4624
    %4651 = vmatprep.subr.mxu0 0.0
    %4652 = vmatpush1.msra.mxu0 %v4625
    %4653 = vmatprep.subr.mxu0 0.0
    %4654 = vmatpush1.msra.mxu0 %v4626
    %4655 = vmatprep.subr.mxu0 0.0
    %4656 = vmatpush1.msra.mxu0 %v4627
    %4657 = vmatprep.subr.mxu0 0.0
    %4658 = vmatpush1.msra.mxu0 %v4628
    %4659 = vmatprep.subr.mxu0 0.0
    %4660 = vmatpush1.msra.mxu0 %v4629
    %4661 = vmatprep.subr.mxu0 0.0
    %4662 = vmatpush1.msra.mxu0 %v4630
    %4663 = vmatprep.subr.mxu0 0.0
    %4664 = vmatpush1.msra.mxu0 %v4631
    %4665 = vmatprep.subr.mxu0 0.0
    %4666 = vmatpush1.msra.mxu0 %v4632
    %4667 = vmatprep.subr.mxu0 0.0
    %4668 = vmatpush1.msra.mxu0 0.0
    %4669 = vmatprep.subr.mxu0 0.0
    %4670 = vmatpush1.msra.mxu0 0.0
    %4671 = vmatprep.subr.mxu0 0.0
    %4672 = vmatpush1.msra.mxu0 0.0
    %4673 = vmatprep.subr.mxu0 0.0
    %4674 = vmatpush1.msra.mxu0 0.0
    %4675 = vmatprep.subr.mxu0 0.0
    %4676 = vmatpush1.msra.mxu0 0.0
    %4677 = vmatprep.subr.mxu0 0.0
    %4678 = vmatpush1.msra.mxu0 0.0
    %4679 = vmatprep.subr.mxu0 0.0
    %4680 = vmatpush1.msra.mxu0 0.0
    %4681 = vmatprep.subr.mxu0 0.0
    %4682 = vmatpush1.msra.mxu0 0.0
    %4683 = vmatprep.subr.mxu0 0.0
    %4684 = vmatpush1.msra.mxu0 0.0
    %4685 = vmatprep.subr.mxu0 0.0
    %4686 = vmatpush1.msra.mxu0 0.0
    %4687 = vmatprep.subr.mxu0 0.0
    %4688 = vmatpush1.msra.mxu0 0.0
    %4689 = vmatprep.subr.mxu0 0.0
    %4690 = vmatpush1.msra.mxu0 0.0
    %4691 = vmatprep.subr.mxu0 0.0
    %4692 = vmatpush1.msra.mxu0 0.0
    %4693 = vmatprep.subr.mxu0 0.0
    %4694 = vmatpush1.msra.mxu0 0.0
    %4695 = vmatprep.subr.mxu0 0.0
    %4696 = vmatpush1.msra.mxu0 0.0
    %4697 = vmatprep.subr.mxu0 0.0
    %4698 = vmatpush1.msra.mxu0 0.0
    %4699 = vmatprep.subr.mxu0 0.0
    %4700 = vmatpush1.msra.mxu0 0.0
    %4701 = vmatprep.mubr.f32.mxu0 0.0
    %4702 = vmatmul.mubr.f32.gmra.mrb[0].mxu0 %v4635
    %v4703 = vpop.f32.mrb[0].mxu0
    %v4704 = vadd.f32 %v4633, %v4703
    %v4705 = vpop.f32.mrb[0].mxu0
    %4706 = vdwg.mxu0
    %v4707 = vtanh.pop %v4704
    %v4708 = vld [vmem:[%s9] sm:$0xff]
    %v4709 = vld [vmem:[%s9 + $0x8] sm:$0xff]
    %v4710 = vld [vmem:[%s9 + $0x10] sm:$0xff]
    %v4711 = vld [vmem:[%s9 + $0x18] sm:$0xff]
    %v4712 = vld [vmem:[%s9 + $0x20] sm:$0xff]
    %v4713 = vld [vmem:[%s9 + $0x28] sm:$0xff]
    %v4714 = vld [vmem:[%s9 + $0x30] sm:$0xff]
    %v4715 = vld [vmem:[%s9 + $0x38] sm:$0xff]
    %v4716 = vld [vmem:[%s9 + $0x40] sm:$0xff]
    %v4717 = vld [vmem:[%s9 + $0x48] sm:$0xff]
    %v4718 = vld [vmem:[%s9 + $0x50] sm:$0xf]
    %v4719 = vld [vmem:[%s10] sm:$0x1]
    %v4721 = vsel %vm1175, %v4707, 0
    %v4724 = vsel %vm600, %v4718, 0
    %4726 = vmatprep.subr.mxu0 0.0
    %4727 = vmatpush1.msra.mxu0 %v4708
    %4728 = vmatprep.subr.mxu0 0.0
    %4729 = vmatpush1.msra.mxu0 %v4709
    %4730 = vmatprep.subr.mxu0 0.0
    %4731 = vmatpush1.msra.mxu0 %v4710
    %4732 = vmatprep.subr.mxu0 0.0
    %4733 = vmatpush1.msra.mxu0 %v4711
    %4734 = vmatprep.subr.mxu0 0.0
    %4735 = vmatpush1.msra.mxu0 %v4712
    %4736 = vmatprep.subr.mxu0 0.0
    %4737 = vmatpush1.msra.mxu0 %v4713
    %4738 = vmatprep.subr.mxu0 0.0
    %4739 = vmatpush1.msra.mxu0 %v4714
    %4740 = vmatprep.subr.mxu0 0.0
    %4741 = vmatpush1.msra.mxu0 %v4715
    %4742 = vmatprep.subr.mxu0 0.0
    %4743 = vmatpush1.msra.mxu0 %v4716
    %4744 = vmatprep.subr.mxu0 0.0
    %4745 = vmatpush1.msra.mxu0 %v4717
    %4746 = vmatprep.subr.mxu0 0.0
    %4747 = vmatpush1.msra.mxu0 %v4724
    %4748 = vmatprep.subr.mxu0 0.0
    %4749 = vmatpush1.msra.mxu0 0.0
    %4750 = vmatprep.subr.mxu0 0.0
    %4751 = vmatpush1.msra.mxu0 0.0
    %4752 = vmatprep.subr.mxu0 0.0
    %4753 = vmatpush1.msra.mxu0 0.0
    %4754 = vmatprep.subr.mxu0 0.0
    %4755 = vmatpush1.msra.mxu0 0.0
    %4756 = vmatprep.subr.mxu0 0.0
    %4757 = vmatpush1.msra.mxu0 0.0
    %4758 = vmatprep.subr.mxu0 0.0
    %4759 = vmatpush1.msra.mxu0 0.0
    %4760 = vmatprep.subr.mxu0 0.0
    %4761 = vmatpush1.msra.mxu0 0.0
    %4762 = vmatprep.subr.mxu0 0.0
    %4763 = vmatpush1.msra.mxu0 0.0
    %4764 = vmatprep.subr.mxu0 0.0
    %4765 = vmatpush1.msra.mxu0 0.0
    %4766 = vmatprep.subr.mxu0 0.0
    %4767 = vmatpush1.msra.mxu0 0.0
    %4768 = vmatprep.subr.mxu0 0.0
    %4769 = vmatpush1.msra.mxu0 0.0
    %4770 = vmatprep.subr.mxu0 0.0
    %4771 = vmatpush1.msra.mxu0 0.0
    %4772 = vmatprep.subr.mxu0 0.0
    %4773 = vmatpush1.msra.mxu0 0.0
    %4774 = vmatprep.subr.mxu0 0.0
    %4775 = vmatpush1.msra.mxu0 0.0
    %4776 = vmatprep.subr.mxu0 0.0
    %4777 = vmatpush1.msra.mxu0 0.0
    %4778 = vmatprep.subr.mxu0 0.0
    %4779 = vmatpush1.msra.mxu0 0.0
    %4780 = vmatprep.subr.mxu0 0.0
    %4781 = vmatpush1.msra.mxu0 0.0
    %4782 = vmatprep.subr.mxu0 0.0
    %4783 = vmatpush1.msra.mxu0 0.0
    %4784 = vmatprep.subr.mxu0 0.0
    %4785 = vmatpush1.msra.mxu0 0.0
    %4786 = vmatprep.subr.mxu0 0.0
    %4787 = vmatpush1.msra.mxu0 0.0
    %4788 = vmatprep.subr.mxu0 0.0
    %4789 = vmatpush1.msra.mxu0 0.0
    %4790 = vmatprep.mubr.f32.mxu0 0.0
    %4791 = vmatmul.mubr.f32.gmra.mrb[0].mxu0 %v4721
    %v4792 = vpop.f32.mrb[0].mxu0
    %v4793 = vadd.f32 %v4719, %v4792
    %v4794 = vpop.f32.mrb[0].mxu0
    %4795 = vdwg.mxu0
    %4796 = vst.msk [vmem:[#allocation6 + $0x1] sm:$0x1] %vm2455, %v4793
    // Predicated region
    $region46: #{custom_cnn_forward.1} parent=1 // pred_check
      _
    $region47: #{custom_cnn_forward.1} parent=1 // pred_check_branch
      %4798 = sbr.rel (0) target = $region49
    $region48: #{custom_cnn_forward.1} parent=1 // pred_region
      %s4800 = ssub.s32 32, 32
      %4801 = vsyncadd [#allocation7], %s4800
      %s4803 = sshll.u32 [#allocation6], 4
      %s4804 = int_to_ptr.vmem [resolvable:$true] %s4803
      %4806 = dma.vmem_to_hbm [thread:$0]  %s4804, 32, %s11, [#allocation7]
    $region49: #{custom_cnn_forward.1} parent=1 // pred_fallthru
      _
    // Predicated region
    $region50: #{custom_cnn_forward.1} parent=1 // pred_check
      _
    $region51: #{custom_cnn_forward.1} parent=1 // pred_check_branch
      %4808 = sbr.rel (0) target = $region53
    $region52: #{custom_cnn_forward.1} parent=1 // pred_region
      %4809 = dma.done [#allocation7], 32
    $region53: #{custom_cnn_forward.1} parent=1 // pred_fallthru
      _
    %4810 = vsyncpa [#allocation7], 1

</llo_original>
